<compile_context>
chip_gen: v6e
topology: v6e:2x2x1
jax: 0.10.0
libtpu: 0.0.40
codegen_flags: <defaults>
</compile_context>

<pallas_src>
from functools import partial

import numpy as np
import jax
import jax.numpy as jnp
from jax import lax
from jax.experimental import pallas as pl
from jax.experimental.pallas import tpu as pltpu

# vgg11_bn feature config ('M' = pool position)
CFG = [64, "M", 128, "M", 256, 256, "M", 512, 512, "M", 512, 512, "M"]
# avg-pool kernel sizes / strides (kH, kW) -- typical OCR config
KS = [(2, 2), (2, 2), (2, 1), (2, 1), (1, 1)]
SS = [(2, 2), (2, 2), (2, 1), (2, 1), (1, 1)]
HIDDEN = 32
BN_EPS = 1e-5

PAD = 1          # 'same' padding for the 3x3 convs
EXTRA_ROWS = 1   # one extra zero row so the last-tap slab slice never reads OOB
LANE = 128


def _round_up(x, m):
    return (x + m - 1) // m * m


# ----------------------------------------------------------------------------
# Pallas kernels
# ----------------------------------------------------------------------------
def conv_bn_relu_pool_kernel(x_ref, w_ref, scale_ref, bias_ref, s_ref, o_ref, *,
                             H, Wp, KH, KW, kh, sh, Ho, Wo, pad_out):
    """Fused 3x3 conv + folded-BN affine + ReLU + avg-pool + re-pad.

    One grid step = one image x one Cout tile.

    x_ref:     (1, Lp, Cin)      bf16 zero-padded image, rows of width Wp (Wp % 8 == 0)
    w_ref:     (KH*KW, Cin, TC)  bf16 conv taps (Cout tile)
    scale_ref: (1, TC)           f32 folded BN scale
    bias_ref:  (1, TC)           f32 folded BN bias (includes conv bias)
    s_ref:     (Wo, Wp)          f32 column pool/select matrix, entries {0, 1/(kh*kw)}
    o_ref:     (1, Hp_out, Wp_out, TC)  bf16, zero-padded output for the next conv
                                        (or (1, Ho, Wo, TC) unpadded for the last layer)
    """
    TC = o_ref.shape[-1]
    M = H * Wp                     # conv output rows (junk columns dropped by s_ref)
    Lm = (H + KH - 1) * Wp         # slab rows needed to cover all kh taps

    # 9 large-M MXU dots, fed from 3 kw-shifted slabs so the per-tap sub-slices
    # below start at multiples of Wp (sublane aligned).
    # TODO(synk): tile M (row chunks) for very large images to keep the f32
    # accumulator out of VMEM-spill territory.
    acc = jnp.zeros((M, TC), jnp.float32)
    for dkw in range(KW):
        xs = x_ref[0, pl.ds(dkw, Lm), :]                         # (Lm, Cin) bf16
        for dkh in range(KH):
            acc = acc + jnp.dot(xs[dkh * Wp:dkh * Wp + M, :],
                                w_ref[dkh * KW + dkw],
                                preferred_element_type=jnp.float32)

    y = jnp.maximum(acc * scale_ref[...] + bias_ref[...], 0.0)   # (M, TC) f32

    if pad_out:
        o_ref[...] = jnp.zeros_like(o_ref)     # zero padding for the next 3x3 conv
        ro = co = PAD
    else:
        ro = co = 0

    # Row (H) pooling with plain VPU adds; column (W) pooling + junk-column drop with a
    # tiny (Wo, Wp) matmul; each pooled row is stored straight into the padded output.
    smat = s_ref[...]
    for ho in range(Ho):
        rs = y[(ho * sh) * Wp:(ho * sh) * Wp + Wp, :]
        for di in range(1, kh):
            rs = rs + y[(ho * sh + di) * Wp:(ho * sh + di) * Wp + Wp, :]
        prow = jnp.dot(smat, rs, preferred_element_type=jnp.float32)   # (Wo, TC)
        o_ref[0, ro + ho, co:co + Wo, :] = prow.astype(o_ref.dtype)


def pointwise_conv_kernel(x_ref, w_ref, b_ref, o_ref):
    """Final 1x1 conv: (1,S,Cin) bf16 @ (Cin,128) bf16 + bias, f32 out (lane-dense)."""
    acc = jnp.dot(x_ref[0], w_ref[...], preferred_element_type=jnp.float32)
    o_ref[0] = (acc + b_ref[...]).astype(o_ref.dtype)


# ----------------------------------------------------------------------------
# Static plan: spatial sizes + per-layer column-pool matrices
# ----------------------------------------------------------------------------
def build_plan(H, W):
    n_convs = sum(1 for v in CFG if v != "M")
    specs = []
    h, w = H, W
    pool_i = conv_i = i = 0
    while i < len(CFG):
        v = CFG[i]
        assert v != "M"
        conv_i += 1
        if i + 1 < len(CFG) and CFG[i + 1] == "M":
            (kh, kw), (sh, sw) = KS[pool_i], SS[pool_i]
            pool_i += 1
            i += 2
        else:
            kh = kw = sh = sw = 1           # no pool after this conv
            i += 1
        ho = (h - kh) // sh + 1
        wo = (w - kw) // sw + 1
        specs.append(dict(H=h, W=w, Wp=_round_up(w + 2 * PAD, 8),
                          kh=kh, kw=kw, sh=sh, sw=sw, Ho=ho, Wo=wo,
                          Cout=v, last=(conv_i == n_convs)))
        h, w = ho, wo
    return specs


def build_colpool_matrix(spec):
    """(Wo, Wp) matrix: selects/averages the kw pooled columns, drops junk columns."""
    Wo, Wp = spec["Wo"], spec["Wp"]
    kh, kw, sw = spec["kh"], spec["kw"], spec["sw"]
    inv = 1.0 / float(kh * kw)
    S = np.zeros((Wo, Wp), np.float32)
    for v in range(Wo):
        for j in range(kw):
            S[v, v * sw + j] += inv
    return S


# ----------------------------------------------------------------------------
# Wrappers around pallas_call
# ----------------------------------------------------------------------------
def _vmem_limit_bytes():
    try:
        cap = int(pltpu.get_tpu_info().vmem_capacity_bytes)
    except Exception:
        cap = 64 * 1024 * 1024          # conservative fallback (safe on v7x)
    return int(min(0.6 * cap, 100 * 1024 * 1024))


def _compiler_params(n_parallel_axes):
    return pltpu.CompilerParams(
        dimension_semantics=("parallel",) * n_parallel_axes,
        vmem_limit_bytes=_vmem_limit_bytes())


def conv_layer(x_flat, w_taps, scale, bias, smat, *, spec):
    N, Lp, Cin = x_flat.shape
    KHW, _, Cout = w_taps.shape
    H, Wp = spec["H"], spec["Wp"]
    Ho, Wo = spec["Ho"], spec["Wo"]
    kh, sh = spec["kh"], spec["sh"]

    TC = min(Cout, 256)                       # Cout tile (fills MXU N dim on v6e/v7x)
    assert Cout % TC == 0
    n_ct = Cout // TC

    if spec["last"]:
        Hp_out, Wp_out = Ho, Wo               # last feature layer: unpadded output
        pad_out = False
    else:
        Hp_out = Ho + 2 * PAD + EXTRA_ROWS
        Wp_out = _round_up(Wo + 2 * PAD, 8)
        pad_out = True

    kernel = partial(conv_bn_relu_pool_kernel, H=H, Wp=Wp, KH=3, KW=3,
                     kh=kh, sh=sh, Ho=Ho, Wo=Wo, pad_out=pad_out)
    return pl.pallas_call(
        kernel,
        out_shape=jax.ShapeDtypeStruct((N, Hp_out, Wp_out, Cout), jnp.bfloat16),
        grid=(N, n_ct),
        in_specs=[
            pl.BlockSpec((1, Lp, Cin), lambda n, c: (n, 0, 0)),
            pl.BlockSpec((KHW, Cin, TC), lambda n, c: (0, 0, c)),
            pl.BlockSpec((1, TC), lambda n, c: (0, c)),
            pl.BlockSpec((1, TC), lambda n, c: (0, c)),
            pl.BlockSpec((Wo, Wp), lambda n, c: (0, 0)),
        ],
        out_specs=pl.BlockSpec((1, Hp_out, Wp_out, TC), lambda n, c: (n, 0, 0, c)),
        compiler_params=_compiler_params(2),
    )(x_flat, w_taps, scale, bias, smat)


def pointwise_conv(x_seq, w, b):
    N, S, Cin = x_seq.shape
    Cout = w.shape[-1]
    return pl.pallas_call(
        pointwise_conv_kernel,
        out_shape=jax.ShapeDtypeStruct((N, S, Cout), jnp.float32),
        grid=(N,),
        in_specs=[
            pl.BlockSpec((1, S, Cin), lambda n: (n, 0, 0)),
            pl.BlockSpec((Cin, Cout), lambda n: (0, 0)),
            pl.BlockSpec((1, Cout), lambda n: (0, 0)),
        ],
        out_specs=pl.BlockSpec((1, S, Cout), lambda n: (n, 0, 0)),
        compiler_params=_compiler_params(1),
    )(x_seq, w, b)


# ----------------------------------------------------------------------------
# Full forward pass (Pallas path)
# ----------------------------------------------------------------------------
def vgg_forward(x_nchw, conv_layers, last_w, last_b):
    N, Cin0, H0, W0 = x_nchw.shape
    specs = build_plan(H0, W0)

    x = jnp.transpose(x_nchw, (0, 2, 3, 1)).astype(jnp.float32)   # NCHW -> NHWC
    # Zero-pad ONCE; every later layer is emitted pre-padded by its predecessor.
    Wp0 = specs[0]["Wp"]
    xp = jnp.pad(x, ((0, 0), (PAD, PAD + EXTRA_ROWS), (PAD, Wp0 - W0 - PAD), (0, 0)))
    x_flat = xp.reshape(N, -1, Cin0).astype(jnp.bfloat16)

    # TODO(synk): first conv (Cin=3) still uses 9 K=3 dots; a mini-im2col (K=27) would
    # improve MXU contraction depth but it is a tiny fraction of total FLOPs.
    feat = None
    for spec, (w, s, b) in zip(specs, conv_layers):
        cin, cout = w.shape[2], w.shape[3]
        w_taps = w.reshape(9, cin, cout).astype(jnp.bfloat16)
        smat = jnp.asarray(build_colpool_matrix(spec))
        out = conv_layer(x_flat, w_taps,
                         s.reshape(1, -1).astype(jnp.float32),
                         b.reshape(1, -1).astype(jnp.float32),
                         smat, spec=spec)
        if spec["last"]:
            feat = out                               # (N, Hf, Wf, 512) bf16, unpadded
        else:
            x_flat = out.reshape(N, -1, cout)        # free reshape: already re-padded

    # PyTorch seq order is w-major (seq index = w*H + h): tiny XLA transpose.
    Hf, Wf = specs[-1]["Ho"], specs[-1]["Wo"]
    seq = jnp.transpose(feat, (0, 2, 1, 3)).reshape(N, Wf * Hf, feat.shape[-1])

    # TODO(synk): nn.Dropout is identity in eval mode; train-mode stochastic mask not implemented.
    w1 = last_w.reshape(last_w.shape[2], last_w.shape[3])
    cpad = LANE - HIDDEN
    w1p = jnp.pad(w1, ((0, 0), (0, cpad))).astype(jnp.bfloat16)       # lane-dense output
    b1p = jnp.pad(last_b.reshape(1, -1), ((0, 0), (0, cpad))).astype(jnp.float32)
    y = pointwise_conv(seq, w1p, b1p)[:, :, :HIDDEN]

    return jnp.transpose(y, (1, 0, 2))               # (W*H, N, hidden)


# ----------------------------------------------------------------------------
# Pure-JAX reference with matching bf16 cast points (for correctness check)
# ----------------------------------------------------------------------------
def reference_forward(x_nchw, conv_layers, last_w, last_b):
    x = jnp.transpose(x_nchw, (0, 2, 3, 1)).astype(jnp.float32)
    conv_i, pool_i = 0, 0
    for v in CFG:
        if v == "M":
            kh, kw = KS[pool_i]
            sh, sw = SS[pool_i]
            s = lax.reduce_window(x, 0.0, lax.add, (1, kh, kw, 1), (1, sh, sw, 1), "VALID")
            x = s / float(kh * kw)
            pool_i += 1
        else:
            w, sc, b = conv_layers[conv_i]
            y = lax.conv_general_dilated(
                x.astype(jnp.bfloat16), w.astype(jnp.bfloat16), (1, 1), "SAME",
                dimension_numbers=("NHWC", "HWIO", "NHWC"),
                preferred_element_type=jnp.float32)
            x = jnp.maximum(y * sc + b, 0.0)
            conv_i += 1
    y = lax.conv_general_dilated(
        x.astype(jnp.bfloat16), last_w.astype(jnp.bfloat16), (1, 1), "VALID",
        dimension_numbers=("NHWC", "HWIO", "NHWC"),
        preferred_element_type=jnp.float32) + last_b
    N, H, W, C = y.shape
    out = jnp.transpose(y, (0, 2, 1, 3)).reshape(N, W * H, C)
    return jnp.transpose(out, (1, 0, 2))


# ----------------------------------------------------------------------------
# Deterministic parameter init (BN folded into per-channel scale/bias)
# ----------------------------------------------------------------------------
def make_params(key):
    conv_layers = []
    cin = 3
    for v in CFG:
        if v == "M":
            continue
        key, kw_, kb, kg, kbe, km, kv = jax.random.split(key, 7)
        w = jax.random.normal(kw_, (3, 3, cin, v), jnp.float32) * np.sqrt(2.0 / (9 * cin))
        b = jax.random.normal(kb, (v,), jnp.float32) * 0.01
        gamma = 1.0 + 0.1 * jax.random.normal(kg, (v,), jnp.float32)
        beta = 0.1 * jax.random.normal(kbe, (v,), jnp.float32)
        mean = 0.1 * jax.random.normal(km, (v,), jnp.float32)
        var = 0.5 + jnp.abs(jax.random.normal(kv, (v,), jnp.float32))
        s = gamma / jnp.sqrt(var + BN_EPS)
        bias = s * (b - mean) + beta
        conv_layers.append((w, s, bias))
        cin = v
    key, k1, k2 = jax.random.split(key, 3)
    last_w = jax.random.normal(k1, (1, 1, 512, HIDDEN), jnp.float32) * np.sqrt(2.0 / 512)
    last_b = jax.random.normal(k2, (HIDDEN,), jnp.float32) * 0.01
    return conv_layers, last_w, last_b


if __name__ == "__main__":
    key = jax.random.PRNGKey(0)
    key, kx = jax.random.split(key)
    x = jax.random.normal(kx, (2, 3, 16, 16), jnp.float32)   # (N, C, H, W)

    conv_layers, last_w, last_b = make_params(key)

    out = jax.block_until_ready(vgg_forward(x, conv_layers, last_w, last_b))
    ref = jax.block_until_ready(reference_forward(x, conv_layers, last_w, last_b))

    assert out.shape == (4, 2, HIDDEN), out.shape   # (W*H, N, hidden)
    np.testing.assert_allclose(np.asarray(out), np.asarray(ref), rtol=1e-2, atol=1e-2)

    print("KERNEL_OK")
</pallas_src>

<mosaic_0001>
module attributes {stable_mosaic.version = 11 : i64} {
  func.func @conv_bn_relu_pool_kernel(%arg0: i32, %arg1: i32, %arg2: memref<1x456x3xbf16, #tpu.memory_space<vmem>>, %arg3: memref<9x3x64xbf16, #tpu.memory_space<vmem>>, %arg4: memref<1x64xf32, #tpu.memory_space<vmem>>, %arg5: memref<1x64xf32, #tpu.memory_space<vmem>>, %arg6: memref<8x24xf32, #tpu.memory_space<vmem>>, %arg7: memref<1x11x16x64xbf16, #tpu.memory_space<vmem>>) attributes {dimension_semantics = [#tpu.dimension_semantics<parallel>, #tpu.dimension_semantics<parallel>], iteration_bounds = array<i64: 2, 1>, scalar_prefetch = 0 : i64, scratch_operands = 0 : i64, tpu.core_type = #tpu.core_type<tc>, window_params = [{transform_indices = @transform_0, window_bounds = array<i64: 1, 456, 3>}, {transform_indices = @transform_1, window_bounds = array<i64: 9, 3, 64>}, {transform_indices = @transform_2, window_bounds = array<i64: 1, 64>}, {transform_indices = @transform_3, window_bounds = array<i64: 1, 64>}, {pipeline_mode = #tpu.pipeline_mode<synchronous>, transform_indices = @transform_4, window_bounds = array<i64: 8, 24>}, {transform_indices = @transform_5, window_bounds = array<i64: 1, 11, 16, 64>}]} {
    %cst = arith.constant 0.000000e+00 : f32
    %0 = vector.broadcast %cst : f32 to vector<384x64xf32>
    %c0 = arith.constant 0 : index
    %c0_0 = arith.constant 0 : index
    %c0_1 = arith.constant 0 : index
    %1 = vector.load %arg2[%c0, %c0_0, %c0_1] : memref<1x456x3xbf16, #tpu.memory_space<vmem>>, vector<1x432x3xbf16>
    %2 = vector.shape_cast %1 : vector<1x432x3xbf16> to vector<432x3xbf16>
    %3 = vector.extract_strided_slice %2 {offsets = [0, 0], sizes = [384, 3], strides = [1, 1]} : vector<432x3xbf16> to vector<384x3xbf16>
    %c0_2 = arith.constant 0 : index
    %c0_3 = arith.constant 0 : index
    %c0_4 = arith.constant 0 : index
    %4 = vector.load %arg3[%c0_2, %c0_3, %c0_4] : memref<9x3x64xbf16, #tpu.memory_space<vmem>>, vector<1x3x64xbf16>
    %5 = vector.shape_cast %4 : vector<1x3x64xbf16> to vector<3x64xbf16>
    %cst_5 = arith.constant dense<0.000000e+00> : vector<384x64xf32>
    %6 = tpu.matmul %3, %5, %cst_5 {dimension_numbers = #tpu.dot_dimension_numbers<[1], [0], [0], [1], [0, 0, 1, 1], [], []>} : vector<384x3xbf16>, vector<3x64xbf16>, vector<384x64xf32> -> vector<384x64xf32>
    %7 = arith.addf %0, %6 : vector<384x64xf32>
    %8 = vector.extract_strided_slice %2 {offsets = [24, 0], sizes = [384, 3], strides = [1, 1]} : vector<432x3xbf16> to vector<384x3xbf16>
    %c3 = arith.constant 3 : index
    %c0_6 = arith.constant 0 : index
    %c0_7 = arith.constant 0 : index
    %9 = vector.load %arg3[%c3, %c0_6, %c0_7] : memref<9x3x64xbf16, #tpu.memory_space<vmem>>, vector<1x3x64xbf16>
    %10 = vector.shape_cast %9 : vector<1x3x64xbf16> to vector<3x64xbf16>
    %cst_8 = arith.constant dense<0.000000e+00> : vector<384x64xf32>
    %11 = tpu.matmul %8, %10, %cst_8 {dimension_numbers = #tpu.dot_dimension_numbers<[1], [0], [0], [1], [0, 0, 1, 1], [], []>} : vector<384x3xbf16>, vector<3x64xbf16>, vector<384x64xf32> -> vector<384x64xf32>
    %12 = arith.addf %7, %11 : vector<384x64xf32>
    %13 = vector.extract_strided_slice %2 {offsets = [48, 0], sizes = [384, 3], strides = [1, 1]} : vector<432x3xbf16> to vector<384x3xbf16>
    %c6 = arith.constant 6 : index
    %c0_9 = arith.constant 0 : index
    %c0_10 = arith.constant 0 : index
    %14 = vector.load %arg3[%c6, %c0_9, %c0_10] : memref<9x3x64xbf16, #tpu.memory_space<vmem>>, vector<1x3x64xbf16>
    %15 = vector.shape_cast %14 : vector<1x3x64xbf16> to vector<3x64xbf16>
    %cst_11 = arith.constant dense<0.000000e+00> : vector<384x64xf32>
    %16 = tpu.matmul %13, %15, %cst_11 {dimension_numbers = #tpu.dot_dimension_numbers<[1], [0], [0], [1], [0, 0, 1, 1], [], []>} : vector<384x3xbf16>, vector<3x64xbf16>, vector<384x64xf32> -> vector<384x64xf32>
    %17 = arith.addf %12, %16 : vector<384x64xf32>
    %c0_12 = arith.constant 0 : index
    %c1 = arith.constant 1 : index
    %c0_13 = arith.constant 0 : index
    %18 = vector.load %arg2[%c0_12, %c1, %c0_13] : memref<1x456x3xbf16, #tpu.memory_space<vmem>>, vector<1x432x3xbf16>
    %19 = vector.shape_cast %18 : vector<1x432x3xbf16> to vector<432x3xbf16>
    %20 = vector.extract_strided_slice %19 {offsets = [0, 0], sizes = [384, 3], strides = [1, 1]} : vector<432x3xbf16> to vector<384x3xbf16>
    %c1_14 = arith.constant 1 : index
    %c0_15 = arith.constant 0 : index
    %c0_16 = arith.constant 0 : index
    %21 = vector.load %arg3[%c1_14, %c0_15, %c0_16] : memref<9x3x64xbf16, #tpu.memory_space<vmem>>, vector<1x3x64xbf16>
    %22 = vector.shape_cast %21 : vector<1x3x64xbf16> to vector<3x64xbf16>
    %cst_17 = arith.constant dense<0.000000e+00> : vector<384x64xf32>
    %23 = tpu.matmul %20, %22, %cst_17 {dimension_numbers = #tpu.dot_dimension_numbers<[1], [0], [0], [1], [0, 0, 1, 1], [], []>} : vector<384x3xbf16>, vector<3x64xbf16>, vector<384x64xf32> -> vector<384x64xf32>
    %24 = arith.addf %17, %23 : vector<384x64xf32>
    %25 = vector.extract_strided_slice %19 {offsets = [24, 0], sizes = [384, 3], strides = [1, 1]} : vector<432x3xbf16> to vector<384x3xbf16>
    %c4 = arith.constant 4 : index
    %c0_18 = arith.constant 0 : index
    %c0_19 = arith.constant 0 : index
    %26 = vector.load %arg3[%c4, %c0_18, %c0_19] : memref<9x3x64xbf16, #tpu.memory_space<vmem>>, vector<1x3x64xbf16>
    %27 = vector.shape_cast %26 : vector<1x3x64xbf16> to vector<3x64xbf16>
    %cst_20 = arith.constant dense<0.000000e+00> : vector<384x64xf32>
    %28 = tpu.matmul %25, %27, %cst_20 {dimension_numbers = #tpu.dot_dimension_numbers<[1], [0], [0], [1], [0, 0, 1, 1], [], []>} : vector<384x3xbf16>, vector<3x64xbf16>, vector<384x64xf32> -> vector<384x64xf32>
    %29 = arith.addf %24, %28 : vector<384x64xf32>
    %30 = vector.extract_strided_slice %19 {offsets = [48, 0], sizes = [384, 3], strides = [1, 1]} : vector<432x3xbf16> to vector<384x3xbf16>
    %c7 = arith.constant 7 : index
    %c0_21 = arith.constant 0 : index
    %c0_22 = arith.constant 0 : index
    %31 = vector.load %arg3[%c7, %c0_21, %c0_22] : memref<9x3x64xbf16, #tpu.memory_space<vmem>>, vector<1x3x64xbf16>
    %32 = vector.shape_cast %31 : vector<1x3x64xbf16> to vector<3x64xbf16>
    %cst_23 = arith.constant dense<0.000000e+00> : vector<384x64xf32>
    %33 = tpu.matmul %30, %32, %cst_23 {dimension_numbers = #tpu.dot_dimension_numbers<[1], [0], [0], [1], [0, 0, 1, 1], [], []>} : vector<384x3xbf16>, vector<3x64xbf16>, vector<384x64xf32> -> vector<384x64xf32>
    %34 = arith.addf %29, %33 : vector<384x64xf32>
    %c0_24 = arith.constant 0 : index
    %c2 = arith.constant 2 : index
    %c0_25 = arith.constant 0 : index
    %35 = vector.load %arg2[%c0_24, %c2, %c0_25] : memref<1x456x3xbf16, #tpu.memory_space<vmem>>, vector<1x432x3xbf16>
    %36 = vector.shape_cast %35 : vector<1x432x3xbf16> to vector<432x3xbf16>
    %37 = vector.extract_strided_slice %36 {offsets = [0, 0], sizes = [384, 3], strides = [1, 1]} : vector<432x3xbf16> to vector<384x3xbf16>
    %c2_26 = arith.constant 2 : index
    %c0_27 = arith.constant 0 : index
    %c0_28 = arith.constant 0 : index
    %38 = vector.load %arg3[%c2_26, %c0_27, %c0_28] : memref<9x3x64xbf16, #tpu.memory_space<vmem>>, vector<1x3x64xbf16>
    %39 = vector.shape_cast %38 : vector<1x3x64xbf16> to vector<3x64xbf16>
    %cst_29 = arith.constant dense<0.000000e+00> : vector<384x64xf32>
    %40 = tpu.matmul %37, %39, %cst_29 {dimension_numbers = #tpu.dot_dimension_numbers<[1], [0], [0], [1], [0, 0, 1, 1], [], []>} : vector<384x3xbf16>, vector<3x64xbf16>, vector<384x64xf32> -> vector<384x64xf32>
    %41 = arith.addf %34, %40 : vector<384x64xf32>
    %42 = vector.extract_strided_slice %36 {offsets = [24, 0], sizes = [384, 3], strides = [1, 1]} : vector<432x3xbf16> to vector<384x3xbf16>
    %c5 = arith.constant 5 : index
    %c0_30 = arith.constant 0 : index
    %c0_31 = arith.constant 0 : index
    %43 = vector.load %arg3[%c5, %c0_30, %c0_31] : memref<9x3x64xbf16, #tpu.memory_space<vmem>>, vector<1x3x64xbf16>
    %44 = vector.shape_cast %43 : vector<1x3x64xbf16> to vector<3x64xbf16>
    %cst_32 = arith.constant dense<0.000000e+00> : vector<384x64xf32>
    %45 = tpu.matmul %42, %44, %cst_32 {dimension_numbers = #tpu.dot_dimension_numbers<[1], [0], [0], [1], [0, 0, 1, 1], [], []>} : vector<384x3xbf16>, vector<3x64xbf16>, vector<384x64xf32> -> vector<384x64xf32>
    %46 = arith.addf %41, %45 : vector<384x64xf32>
    %47 = vector.extract_strided_slice %36 {offsets = [48, 0], sizes = [384, 3], strides = [1, 1]} : vector<432x3xbf16> to vector<384x3xbf16>
    %c8 = arith.constant 8 : index
    %c0_33 = arith.constant 0 : index
    %c0_34 = arith.constant 0 : index
    %48 = vector.load %arg3[%c8, %c0_33, %c0_34] : memref<9x3x64xbf16, #tpu.memory_space<vmem>>, vector<1x3x64xbf16>
    %49 = vector.shape_cast %48 : vector<1x3x64xbf16> to vector<3x64xbf16>
    %cst_35 = arith.constant dense<0.000000e+00> : vector<384x64xf32>
    %50 = tpu.matmul %47, %49, %cst_35 {dimension_numbers = #tpu.dot_dimension_numbers<[1], [0], [0], [1], [0, 0, 1, 1], [], []>} : vector<384x3xbf16>, vector<3x64xbf16>, vector<384x64xf32> -> vector<384x64xf32>
    %51 = arith.addf %46, %50 : vector<384x64xf32>
    %c0_36 = arith.constant 0 : index
    %c0_37 = arith.constant 0 : index
    %52 = vector.load %arg4[%c0_36, %c0_37] : memref<1x64xf32, #tpu.memory_space<vmem>>, vector<1x64xf32>
    %53 = vector.broadcast %52 : vector<1x64xf32> to vector<384x64xf32>
    %54 = arith.mulf %51, %53 : vector<384x64xf32>
    %c0_38 = arith.constant 0 : index
    %c0_39 = arith.constant 0 : index
    %55 = vector.load %arg5[%c0_38, %c0_39] : memref<1x64xf32, #tpu.memory_space<vmem>>, vector<1x64xf32>
    %56 = vector.broadcast %55 : vector<1x64xf32> to vector<384x64xf32>
    %57 = arith.addf %54, %56 : vector<384x64xf32>
    %cst_40 = arith.constant 0.000000e+00 : f32
    %58 = vector.broadcast %cst_40 : f32 to vector<384x64xf32>
    %59 = arith.maximumf %57, %58 : vector<384x64xf32>
    %cst_41 = arith.constant 0.000000e+00 : bf16
    %60 = vector.broadcast %cst_41 : bf16 to vector<1x11x16x64xbf16>
    %c0_42 = arith.constant 0 : index
    %c0_43 = arith.constant 0 : index
    %c0_44 = arith.constant 0 : index
    %c0_45 = arith.constant 0 : index
    %61 = vector.load %arg7[%c0_42, %c0_43, %c0_44, %c0_45] : memref<1x11x16x64xbf16, #tpu.memory_space<vmem>>, vector<1x11x16x64xbf16>
    tpu.vector_store %arg7[%c0_42, %c0_43, %c0_44, %c0_45], %60 {strides = array<i32>} : memref<1x11x16x64xbf16, #tpu.memory_space<vmem>>, vector<1x11x16x64xbf16>,
    %c0_46 = arith.constant 0 : index
    %c0_47 = arith.constant 0 : index
    %62 = vector.load %arg6[%c0_46, %c0_47] : memref<8x24xf32, #tpu.memory_space<vmem>>, vector<8x24xf32>
    %63 = vector.extract_strided_slice %59 {offsets = [0, 0], sizes = [24, 64], strides = [1, 1]} : vector<384x64xf32> to vector<24x64xf32>
    %64 = vector.extract_strided_slice %59 {offsets = [24, 0], sizes = [24, 64], strides = [1, 1]} : vector<384x64xf32> to vector<24x64xf32>
    %65 = arith.addf %63, %64 : vector<24x64xf32>
    %cst_48 = arith.constant dense<0.000000e+00> : vector<8x64xf32>
    %66 = tpu.matmul %62, %65, %cst_48 {dimension_numbers = #tpu.dot_dimension_numbers<[1], [0], [0], [1], [0, 0, 1, 1], [], []>} : vector<8x24xf32>, vector<24x64xf32>, vector<8x64xf32> -> vector<8x64xf32>
    %67 = arith.truncf %66 : vector<8x64xf32> to vector<8x64xbf16>
    %c0_49 = arith.constant 0 : index
    %c1_50 = arith.constant 1 : index
    %c1_51 = arith.constant 1 : index
    %c0_52 = arith.constant 0 : index
    %68 = vector.load %arg7[%c0_49, %c1_50, %c1_51, %c0_52] : memref<1x11x16x64xbf16, #tpu.memory_space<vmem>>, vector<1x1x8x64xbf16>
    %69 = vector.shape_cast %68 : vector<1x1x8x64xbf16> to vector<8x64xbf16>
    %70 = vector.shape_cast %67 : vector<8x64xbf16> to vector<1x1x8x64xbf16>
    tpu.vector_store %arg7[%c0_49, %c1_50, %c1_51, %c0_52], %70 {strides = array<i32>} : memref<1x11x16x64xbf16, #tpu.memory_space<vmem>>, vector<1x1x8x64xbf16>,
    %71 = vector.extract_strided_slice %59 {offsets = [48, 0], sizes = [24, 64], strides = [1, 1]} : vector<384x64xf32> to vector<24x64xf32>
    %72 = vector.extract_strided_slice %59 {offsets = [72, 0], sizes = [24, 64], strides = [1, 1]} : vector<384x64xf32> to vector<24x64xf32>
    %73 = arith.addf %71, %72 : vector<24x64xf32>
    %cst_53 = arith.constant dense<0.000000e+00> : vector<8x64xf32>
    %74 = tpu.matmul %62, %73, %cst_53 {dimension_numbers = #tpu.dot_dimension_numbers<[1], [0], [0], [1], [0, 0, 1, 1], [], []>} : vector<8x24xf32>, vector<24x64xf32>, vector<8x64xf32> -> vector<8x64xf32>
    %75 = arith.truncf %74 : vector<8x64xf32> to vector<8x64xbf16>
    %c0_54 = arith.constant 0 : index
    %c2_55 = arith.constant 2 : index
    %c1_56 = arith.constant 1 : index
    %c0_57 = arith.constant 0 : index
    %76 = vector.load %arg7[%c0_54, %c2_55, %c1_56, %c0_57] : memref<1x11x16x64xbf16, #tpu.memory_space<vmem>>, vector<1x1x8x64xbf16>
    %77 = vector.shape_cast %76 : vector<1x1x8x64xbf16> to vector<8x64xbf16>
    %78 = vector.shape_cast %75 : vector<8x64xbf16> to vector<1x1x8x64xbf16>
    tpu.vector_store %arg7[%c0_54, %c2_55, %c1_56, %c0_57], %78 {strides = array<i32>} : memref<1x11x16x64xbf16, #tpu.memory_space<vmem>>, vector<1x1x8x64xbf16>,
    %79 = vector.extract_strided_slice %59 {offsets = [96, 0], sizes = [24, 64], strides = [1, 1]} : vector<384x64xf32> to vector<24x64xf32>
    %80 = vector.extract_strided_slice %59 {offsets = [120, 0], sizes = [24, 64], strides = [1, 1]} : vector<384x64xf32> to vector<24x64xf32>
    %81 = arith.addf %79, %80 : vector<24x64xf32>
    %cst_58 = arith.constant dense<0.000000e+00> : vector<8x64xf32>
    %82 = tpu.matmul %62, %81, %cst_58 {dimension_numbers = #tpu.dot_dimension_numbers<[1], [0], [0], [1], [0, 0, 1, 1], [], []>} : vector<8x24xf32>, vector<24x64xf32>, vector<8x64xf32> -> vector<8x64xf32>
    %83 = arith.truncf %82 : vector<8x64xf32> to vector<8x64xbf16>
    %c0_59 = arith.constant 0 : index
    %c3_60 = arith.constant 3 : index
    %c1_61 = arith.constant 1 : index
    %c0_62 = arith.constant 0 : index
    %84 = vector.load %arg7[%c0_59, %c3_60, %c1_61, %c0_62] : memref<1x11x16x64xbf16, #tpu.memory_space<vmem>>, vector<1x1x8x64xbf16>
    %85 = vector.shape_cast %84 : vector<1x1x8x64xbf16> to vector<8x64xbf16>
    %86 = vector.shape_cast %83 : vector<8x64xbf16> to vector<1x1x8x64xbf16>
    tpu.vector_store %arg7[%c0_59, %c3_60, %c1_61, %c0_62], %86 {strides = array<i32>} : memref<1x11x16x64xbf16, #tpu.memory_space<vmem>>, vector<1x1x8x64xbf16>,
    %87 = vector.extract_strided_slice %59 {offsets = [144, 0], sizes = [24, 64], strides = [1, 1]} : vector<384x64xf32> to vector<24x64xf32>
    %88 = vector.extract_strided_slice %59 {offsets = [168, 0], sizes = [24, 64], strides = [1, 1]} : vector<384x64xf32> to vector<24x64xf32>
    %89 = arith.addf %87, %88 : vector<24x64xf32>
    %cst_63 = arith.constant dense<0.000000e+00> : vector<8x64xf32>
    %90 = tpu.matmul %62, %89, %cst_63 {dimension_numbers = #tpu.dot_dimension_numbers<[1], [0], [0], [1], [0, 0, 1, 1], [], []>} : vector<8x24xf32>, vector<24x64xf32>, vector<8x64xf32> -> vector<8x64xf32>
    %91 = arith.truncf %90 : vector<8x64xf32> to vector<8x64xbf16>
    %c0_64 = arith.constant 0 : index
    %c4_65 = arith.constant 4 : index
    %c1_66 = arith.constant 1 : index
    %c0_67 = arith.constant 0 : index
    %92 = vector.load %arg7[%c0_64, %c4_65, %c1_66, %c0_67] : memref<1x11x16x64xbf16, #tpu.memory_space<vmem>>, vector<1x1x8x64xbf16>
    %93 = vector.shape_cast %92 : vector<1x1x8x64xbf16> to vector<8x64xbf16>
    %94 = vector.shape_cast %91 : vector<8x64xbf16> to vector<1x1x8x64xbf16>
    tpu.vector_store %arg7[%c0_64, %c4_65, %c1_66, %c0_67], %94 {strides = array<i32>} : memref<1x11x16x64xbf16, #tpu.memory_space<vmem>>, vector<1x1x8x64xbf16>,
    %95 = vector.extract_strided_slice %59 {offsets = [192, 0], sizes = [24, 64], strides = [1, 1]} : vector<384x64xf32> to vector<24x64xf32>
    %96 = vector.extract_strided_slice %59 {offsets = [216, 0], sizes = [24, 64], strides = [1, 1]} : vector<384x64xf32> to vector<24x64xf32>
    %97 = arith.addf %95, %96 : vector<24x64xf32>
    %cst_68 = arith.constant dense<0.000000e+00> : vector<8x64xf32>
    %98 = tpu.matmul %62, %97, %cst_68 {dimension_numbers = #tpu.dot_dimension_numbers<[1], [0], [0], [1], [0, 0, 1, 1], [], []>} : vector<8x24xf32>, vector<24x64xf32>, vector<8x64xf32> -> vector<8x64xf32>
    %99 = arith.truncf %98 : vector<8x64xf32> to vector<8x64xbf16>
    %c0_69 = arith.constant 0 : index
    %c5_70 = arith.constant 5 : index
    %c1_71 = arith.constant 1 : index
    %c0_72 = arith.constant 0 : index
    %100 = vector.load %arg7[%c0_69, %c5_70, %c1_71, %c0_72] : memref<1x11x16x64xbf16, #tpu.memory_space<vmem>>, vector<1x1x8x64xbf16>
    %101 = vector.shape_cast %100 : vector<1x1x8x64xbf16> to vector<8x64xbf16>
    %102 = vector.shape_cast %99 : vector<8x64xbf16> to vector<1x1x8x64xbf16>
    tpu.vector_store %arg7[%c0_69, %c5_70, %c1_71, %c0_72], %102 {strides = array<i32>} : memref<1x11x16x64xbf16, #tpu.memory_space<vmem>>, vector<1x1x8x64xbf16>,
    %103 = vector.extract_strided_slice %59 {offsets = [240, 0], sizes = [24, 64], strides = [1, 1]} : vector<384x64xf32> to vector<24x64xf32>
    %104 = vector.extract_strided_slice %59 {offsets = [264, 0], sizes = [24, 64], strides = [1, 1]} : vector<384x64xf32> to vector<24x64xf32>
    %105 = arith.addf %103, %104 : vector<24x64xf32>
    %cst_73 = arith.constant dense<0.000000e+00> : vector<8x64xf32>
    %106 = tpu.matmul %62, %105, %cst_73 {dimension_numbers = #tpu.dot_dimension_numbers<[1], [0], [0], [1], [0, 0, 1, 1], [], []>} : vector<8x24xf32>, vector<24x64xf32>, vector<8x64xf32> -> vector<8x64xf32>
    %107 = arith.truncf %106 : vector<8x64xf32> to vector<8x64xbf16>
    %c0_74 = arith.constant 0 : index
    %c6_75 = arith.constant 6 : index
    %c1_76 = arith.constant 1 : index
    %c0_77 = arith.constant 0 : index
    %108 = vector.load %arg7[%c0_74, %c6_75, %c1_76, %c0_77] : memref<1x11x16x64xbf16, #tpu.memory_space<vmem>>, vector<1x1x8x64xbf16>
    %109 = vector.shape_cast %108 : vector<1x1x8x64xbf16> to vector<8x64xbf16>
    %110 = vector.shape_cast %107 : vector<8x64xbf16> to vector<1x1x8x64xbf16>
    tpu.vector_store %arg7[%c0_74, %c6_75, %c1_76, %c0_77], %110 {strides = array<i32>} : memref<1x11x16x64xbf16, #tpu.memory_space<vmem>>, vector<1x1x8x64xbf16>,
    %111 = vector.extract_strided_slice %59 {offsets = [288, 0], sizes = [24, 64], strides = [1, 1]} : vector<384x64xf32> to vector<24x64xf32>
    %112 = vector.extract_strided_slice %59 {offsets = [312, 0], sizes = [24, 64], strides = [1, 1]} : vector<384x64xf32> to vector<24x64xf32>
    %113 = arith.addf %111, %112 : vector<24x64xf32>
    %cst_78 = arith.constant dense<0.000000e+00> : vector<8x64xf32>
    %114 = tpu.matmul %62, %113, %cst_78 {dimension_numbers = #tpu.dot_dimension_numbers<[1], [0], [0], [1], [0, 0, 1, 1], [], []>} : vector<8x24xf32>, vector<24x64xf32>, vector<8x64xf32> -> vector<8x64xf32>
    %115 = arith.truncf %114 : vector<8x64xf32> to vector<8x64xbf16>
    %c0_79 = arith.constant 0 : index
    %c7_80 = arith.constant 7 : index
    %c1_81 = arith.constant 1 : index
    %c0_82 = arith.constant 0 : index
    %116 = vector.load %arg7[%c0_79, %c7_80, %c1_81, %c0_82] : memref<1x11x16x64xbf16, #tpu.memory_space<vmem>>, vector<1x1x8x64xbf16>
    %117 = vector.shape_cast %116 : vector<1x1x8x64xbf16> to vector<8x64xbf16>
    %118 = vector.shape_cast %115 : vector<8x64xbf16> to vector<1x1x8x64xbf16>
    tpu.vector_store %arg7[%c0_79, %c7_80, %c1_81, %c0_82], %118 {strides = array<i32>} : memref<1x11x16x64xbf16, #tpu.memory_space<vmem>>, vector<1x1x8x64xbf16>,
    %119 = vector.extract_strided_slice %59 {offsets = [336, 0], sizes = [24, 64], strides = [1, 1]} : vector<384x64xf32> to vector<24x64xf32>
    %120 = vector.extract_strided_slice %59 {offsets = [360, 0], sizes = [24, 64], strides = [1, 1]} : vector<384x64xf32> to vector<24x64xf32>
    %121 = arith.addf %119, %120 : vector<24x64xf32>
    %cst_83 = arith.constant dense<0.000000e+00> : vector<8x64xf32>
    %122 = tpu.matmul %62, %121, %cst_83 {dimension_numbers = #tpu.dot_dimension_numbers<[1], [0], [0], [1], [0, 0, 1, 1], [], []>} : vector<8x24xf32>, vector<24x64xf32>, vector<8x64xf32> -> vector<8x64xf32>
    %123 = arith.truncf %122 : vector<8x64xf32> to vector<8x64xbf16>
    %c0_84 = arith.constant 0 : index
    %c8_85 = arith.constant 8 : index
    %c1_86 = arith.constant 1 : index
    %c0_87 = arith.constant 0 : index
    %124 = vector.load %arg7[%c0_84, %c8_85, %c1_86, %c0_87] : memref<1x11x16x64xbf16, #tpu.memory_space<vmem>>, vector<1x1x8x64xbf16>
    %125 = vector.shape_cast %124 : vector<1x1x8x64xbf16> to vector<8x64xbf16>
    %126 = vector.shape_cast %123 : vector<8x64xbf16> to vector<1x1x8x64xbf16>
    tpu.vector_store %arg7[%c0_84, %c8_85, %c1_86, %c0_87], %126 {strides = array<i32>} : memref<1x11x16x64xbf16, #tpu.memory_space<vmem>>, vector<1x1x8x64xbf16>,
    return
  }
  func.func @transform_0(%arg0: i32, %arg1: i32) -> (i32, i32, i32) {
    %c0_i32 = arith.constant 0 : i32
    %c0_i32_0 = arith.constant 0 : i32
    %c0_i32_1 = arith.constant 0 : i32
    return %arg0, %c0_i32, %c0_i32_0 : i32, i32, i32
  }
  func.func @transform_1(%arg0: i32, %arg1: i32) -> (i32, i32, i32) {
    %c0_i32 = arith.constant 0 : i32
    %c0_i32_0 = arith.constant 0 : i32
    %c0_i32_1 = arith.constant 0 : i32
    return %c0_i32, %c0_i32_0, %arg1 : i32, i32, i32
  }
  func.func @transform_2(%arg0: i32, %arg1: i32) -> (i32, i32) {
    %c0_i32 = arith.constant 0 : i32
    %c0_i32_0 = arith.constant 0 : i32
    return %c0_i32, %arg1 : i32, i32
  }
  func.func @transform_3(%arg0: i32, %arg1: i32) -> (i32, i32) {
    %c0_i32 = arith.constant 0 : i32
    %c0_i32_0 = arith.constant 0 : i32
    return %c0_i32, %arg1 : i32, i32
  }
  func.func @transform_4(%arg0: i32, %arg1: i32) -> (i32, i32) {
    %c0_i32 = arith.constant 0 : i32
    %c0_i32_0 = arith.constant 0 : i32
    %c0_i32_1 = arith.constant 0 : i32
    return %c0_i32, %c0_i32_0 : i32, i32
  }
  func.func @transform_5(%arg0: i32, %arg1: i32) -> (i32, i32, i32, i32) {
    %c0_i32 = arith.constant 0 : i32
    %c0_i32_0 = arith.constant 0 : i32
    %c0_i32_1 = arith.constant 0 : i32
    return %arg0, %c0_i32, %c0_i32_0, %arg1 : i32, i32, i32, i32
  }
}

</mosaic_0001>

<llo_original>
// kernel: tpu_custom_call.1
$region0: #{tpu_custom_call.1}
  #allocation0 [shape = 'u32[]', space=smem, size = 0x4, offset = 0x4, fixed_abs, tag = 'smem constant byte address 0x4 - core index']
  #allocation1 [shape = 'u32[144,128]{1,0:T(1,128)}', space=vmem, size = 0x12000, scoped, tag = 'internal scratch']
  %s0 = inlined_call_operand.vmem [shape: bf16[2,456,3], index: 0, kind: input, shape index: {}]
  %s1 = inlined_call_operand.vmem [shape: bf16[9,3,64], index: 1, kind: input, shape index: {}]
  %s2 = inlined_call_operand.vmem [shape: f32[1,64], index: 2, kind: input, shape index: {}]
  %s3 = inlined_call_operand.vmem [shape: f32[1,64], index: 3, kind: input, shape index: {}]
  %s4 = inlined_call_operand.vmem [shape: f32[8,24], index: 4, kind: input, shape index: {}]
  %s5 = inlined_call_operand.hbm [shape: bf16[2,11,16,64], index: 5, kind: output, shape index: {}]
  %s6 = sld [smem:[#allocation0]]
  $region53: #{tpu_custom_call.1} parent=0
    _
  %s8 = ssub.s32 1, %s6
  %s9 = scalar_select 0, %s8, %s6
  $region1: #{tpu_custom_call.1} parent=0
    #allocation2 [shape = 'u8[90112]{0}', space=vmem, size = 0x16000, scoped, tag = 'output window, operand 0']
    #allocation3 [shape = 's32[2]{0}', space=sflag, size = 0x8, scoped, tag = 'scoped memory for tpu_custom_call.1']
    %10 = vsyncpa [#allocation3], 0
    %s11 = scalar_lea.sflag [#allocation3], 1
    %12 = vsyncpa %s11, 0
    loop: start=0, step=1, limit=4
    $region2: #{tpu_custom_call.1} parent=1 // loop_pre_header
      _
    $region3: #{tpu_custom_call.1} parent=1 // loop_header
      %s14 = sphi 0, %s18
      %p15 = scmp.ge.s32.totalorder %s14, 4
      %s21 = sphi 0, %s33
      %s22 = sphi 0, %s29
      %s23 = sphi 0, %s21
      %s24 = sphi 0, %s22
      %s25 = sphi 0, %s23
      %s26 = sphi 0, %s24
      %s36 = sphi 0, %s38
      %s39 = sphi 0, %s36
      %s40 = sphi 0, %s39
      %s56 = sphi 0, %s40
      %s62 = sphi 0, %s64
      %s65 = sphi 0, %s62
      %s66 = sphi 0, %s65
      %s82 = sphi 0, %s66
      %s88 = sphi 0, %s90
      %s91 = sphi 0, %s88
      %s92 = sphi 0, %s91
      %s108 = sphi 0, %s92
      %s114 = sphi 0, %s116
      %s117 = sphi 0, %s114
      %s118 = sphi 0, %s117
      %s134 = sphi 0, %s118
      %s138 = sphi 0, %s138
      %s140 = sphi 0, %s138
      %s141 = sphi 0, %s140
      %s155 = sphi 0, %s141
      %s163 = sphi 0, %s165
      %s166 = sphi 0, %s163
      %s167 = sphi 0, %s166
      %s183 = sphi 0, %s167
    $region4: #{tpu_custom_call.1} parent=1 // loop_header_branch
      %17 = sbr.rel (%p15) target = $region8
    $region5: #{tpu_custom_call.1} parent=1 // loop_body
      %s19 = ssub.s32 %s14, 1
      %s20 = ssub.s32 %s14, 2
      %s27 = sadd.s32 1, %s22
      %p28 = scmp.ge.s32.totalorder %s27, 1
      %s29 = scalar_select %p28, 0, %s27
      %s30 = sadd.s32 1, %s21
      %s31 = scalar_select %p28, %s30, %s21
      %p32 = scmp.ge.s32.totalorder %s31, 2
      %s33 = scalar_select %p32, 0, %s31
      %s34 = ssub.s32 %s21, %s33
      %p35 = scmp.eq.s32.totalorder %s34, 0
      %s37 = sadd.s32 %s36, 1
      %s38 = scalar_select %p35, %s36, %s37
      %p41 = pneg %p35
      %p42 = scmp.eq.s32.totalorder %s14, 1
      %p43 = por %p41, %p42
      %p44 = scmp.ne.s32.totalorder %s36, %s39
      %p45 = scmp.eq.s32.totalorder %s14, 0
      %p46 = por %p44, %p45
      %p47 = scmp.ne.s32.totalorder %s36, %s39
      %p48 = scmp.eq.s32.totalorder %s19, 1
      %p49 = por %p47, %p48
      %p50 = scmp.ne.s32.totalorder %s39, %s40
      %p51 = scmp.eq.s32.totalorder %s19, 0
      %p52 = por %p50, %p51
      %p53 = scmp.ne.s32.totalorder %s39, %s40
      %p54 = scmp.eq.s32.totalorder %s20, 1
      %p55 = por %p53, %p54
      %p57 = scmp.ne.s32.totalorder %s40, %s56
      %p58 = scmp.eq.s32.totalorder %s20, 0
      %p59 = por %p57, %p58
      %s60 = ssub.s32 %s22, %s29
      %p61 = scmp.eq.s32.totalorder %s60, 0
      %s63 = sadd.s32 %s62, 1
      %s64 = scalar_select %p61, %s62, %s63
      %p67 = pneg %p61
      %p68 = scmp.eq.s32.totalorder %s14, 1
      %p69 = por %p67, %p68
      %p70 = scmp.ne.s32.totalorder %s62, %s65
      %p71 = scmp.eq.s32.totalorder %s14, 0
      %p72 = por %p70, %p71
      %p73 = scmp.ne.s32.totalorder %s62, %s65
      %p74 = scmp.eq.s32.totalorder %s19, 1
      %p75 = por %p73, %p74
      %p76 = scmp.ne.s32.totalorder %s65, %s66
      %p77 = scmp.eq.s32.totalorder %s19, 0
      %p78 = por %p76, %p77
      %p79 = scmp.ne.s32.totalorder %s65, %s66
      %p80 = scmp.eq.s32.totalorder %s20, 1
      %p81 = por %p79, %p80
      %p83 = scmp.ne.s32.totalorder %s66, %s82
      %p84 = scmp.eq.s32.totalorder %s20, 0
      %p85 = por %p83, %p84
      %s86 = ssub.s32 %s22, %s29
      %p87 = scmp.eq.s32.totalorder %s86, 0
      %s89 = sadd.s32 %s88, 1
      %s90 = scalar_select %p87, %s88, %s89
      %p93 = pneg %p87
      %p94 = scmp.eq.s32.totalorder %s14, 1
      %p95 = por %p93, %p94
      %p96 = scmp.ne.s32.totalorder %s88, %s91
      %p97 = scmp.eq.s32.totalorder %s14, 0
      %p98 = por %p96, %p97
      %p99 = scmp.ne.s32.totalorder %s88, %s91
      %p100 = scmp.eq.s32.totalorder %s19, 1
      %p101 = por %p99, %p100
      %p102 = scmp.ne.s32.totalorder %s91, %s92
      %p103 = scmp.eq.s32.totalorder %s19, 0
      %p104 = por %p102, %p103
      %p105 = scmp.ne.s32.totalorder %s91, %s92
      %p106 = scmp.eq.s32.totalorder %s20, 1
      %p107 = por %p105, %p106
      %p109 = scmp.ne.s32.totalorder %s92, %s108
      %p110 = scmp.eq.s32.totalorder %s20, 0
      %p111 = por %p109, %p110
      %s112 = ssub.s32 %s22, %s29
      %p113 = scmp.eq.s32.totalorder %s112, 0
      %s115 = sadd.s32 %s114, 1
      %s116 = scalar_select %p113, %s114, %s115
      %p119 = pneg %p113
      %p120 = scmp.eq.s32.totalorder %s14, 1
      %p121 = por %p119, %p120
      %p122 = scmp.ne.s32.totalorder %s114, %s117
      %p123 = scmp.eq.s32.totalorder %s14, 0
      %p124 = por %p122, %p123
      %p125 = scmp.ne.s32.totalorder %s114, %s117
      %p126 = scmp.eq.s32.totalorder %s19, 1
      %p127 = por %p125, %p126
      %p128 = scmp.ne.s32.totalorder %s117, %s118
      %p129 = scmp.eq.s32.totalorder %s19, 0
      %p130 = por %p128, %p129
      %p131 = scmp.ne.s32.totalorder %s117, %s118
      %p132 = scmp.eq.s32.totalorder %s20, 1
      %p133 = por %p131, %p132
      %p135 = scmp.ne.s32.totalorder %s118, %s134
      %p136 = scmp.eq.s32.totalorder %s20, 0
      %p137 = por %p135, %p136
      %s139 = sadd.s32 %s138, 1
      %p142 = scmp.eq.s32.totalorder %s14, 1
      %p143 = scmp.ne.s32.totalorder %s138, %s140
      %p144 = scmp.eq.s32.totalorder %s14, 0
      %p145 = por %p143, %p144
      %p146 = scmp.ne.s32.totalorder %s138, %s140
      %p147 = scmp.eq.s32.totalorder %s19, 1
      %p148 = por %p146, %p147
      %p149 = scmp.ne.s32.totalorder %s140, %s141
      %p150 = scmp.eq.s32.totalorder %s19, 0
      %p151 = por %p149, %p150
      %p152 = scmp.ne.s32.totalorder %s140, %s141
      %p153 = scmp.eq.s32.totalorder %s20, 1
      %p154 = por %p152, %p153
      %p156 = scmp.ne.s32.totalorder %s141, %s155
      %p157 = scmp.eq.s32.totalorder %s20, 0
      %p158 = por %p156, %p157
      %s159 = ssub.s32 %s21, %s33
      %s160 = ssub.s32 %s22, %s29
      %s161 = sor.u32 %s159, %s160
      %p162 = scmp.eq.s32.totalorder %s161, 0
      %s164 = sadd.s32 %s163, 1
      %s165 = scalar_select %p162, %s163, %s164
      %p168 = pneg %p162
      %p169 = scmp.eq.s32.totalorder %s14, 1
      %p170 = por %p168, %p169
      %p171 = scmp.ne.s32.totalorder %s163, %s166
      %p172 = scmp.eq.s32.totalorder %s14, 0
      %p173 = por %p171, %p172
      %p174 = scmp.ne.s32.totalorder %s163, %s166
      %p175 = scmp.eq.s32.totalorder %s19, 1
      %p176 = por %p174, %p175
      %p177 = scmp.ne.s32.totalorder %s166, %s167
      %p178 = scmp.eq.s32.totalorder %s19, 0
      %p179 = por %p177, %p178
      %p180 = scmp.ne.s32.totalorder %s166, %s167
      %p181 = scmp.eq.s32.totalorder %s20, 1
      %p182 = por %p180, %p181
      %p184 = scmp.ne.s32.totalorder %s167, %s183
      %p185 = scmp.eq.s32.totalorder %s20, 0
      %p186 = por %p184, %p185
      %p187 = scmp.le.s32.totalorder 1, %s14
      %p188 = scmp.lt.s32.totalorder %s14, 3
      %p189 = pnand %p187, %p188
      %p190 = pneg %p189
      // Predicated region
      $region9: #{tpu_custom_call.1} parent=5 // pred_check
        _
      $region10: #{tpu_custom_call.1} parent=5 // pred_check_branch
        %192 = sbr.rel (%p189) target = $region12
      $region11: #{tpu_custom_call.1} parent=5 // pred_region
        %s193 = ssub.s32 %s14, 1
        // Predicated region
        $region13: #{tpu_custom_call.1} parent=11 // pred_check
          %p194 = pneg %p78
        $region14: #{tpu_custom_call.1} parent=11 // pred_check_branch
          %196 = sbr.rel (%p194) target = $region16
        $region15: #{tpu_custom_call.1} parent=11 // pred_region
          %p197 = scmp.lt.s32.totalorder %s24, 0
          %s198 = scalar_select %p197, %s24, 0
          %s199 = smul.addr %s198, 2
          %s200 = scalar_lea.vmem %s1, %s199
        $region16: #{tpu_custom_call.1} parent=11 // pred_fallthru
          _
        // Predicated region
        $region17: #{tpu_custom_call.1} parent=11 // pred_check
          %p201 = pneg %p104
        $region18: #{tpu_custom_call.1} parent=11 // pred_check_branch
          %203 = sbr.rel (%p201) target = $region20
        $region19: #{tpu_custom_call.1} parent=11 // pred_region
          %p204 = scmp.lt.s32.totalorder %s24, 0
          %s205 = scalar_select %p204, %s24, 0
          %s206 = scalar_lea.vmem %s2, %s205
        $region20: #{tpu_custom_call.1} parent=11 // pred_fallthru
          _
        // Predicated region
        $region21: #{tpu_custom_call.1} parent=11 // pred_check
          %p207 = pneg %p130
        $region22: #{tpu_custom_call.1} parent=11 // pred_check_branch
          %209 = sbr.rel (%p207) target = $region24
        $region23: #{tpu_custom_call.1} parent=11 // pred_region
          %p210 = scmp.lt.s32.totalorder %s24, 0
          %s211 = scalar_select %p210, %s24, 0
          %s212 = scalar_lea.vmem %s3, %s211
        $region24: #{tpu_custom_call.1} parent=11 // pred_fallthru
          _
        // Predicated region
        $region25: #{tpu_custom_call.1} parent=11 // pred_check
          %p213 = pneg %p151
        $region26: #{tpu_custom_call.1} parent=11 // pred_check_branch
          %215 = sbr.rel (%p213) target = $region28
        $region27: #{tpu_custom_call.1} parent=11 // pred_region
          _
        $region28: #{tpu_custom_call.1} parent=11 // pred_fallthru
          _
      $region12: #{tpu_custom_call.1} parent=5 // pred_fallthru
        _
      %p216 = scmp.lt.s32.totalorder %s14, 2
      // Predicated region
      $region29: #{tpu_custom_call.1} parent=5 // pred_check
        %p217 = pneg %p216
      $region30: #{tpu_custom_call.1} parent=5 // pred_check_branch
        %219 = sbr.rel (%p217) target = $region32
      $region31: #{tpu_custom_call.1} parent=5 // pred_region
        // Predicated region
        $region33: #{tpu_custom_call.1} parent=31 // pred_check
          %p220 = pneg %p46
        $region34: #{tpu_custom_call.1} parent=31 // pred_check_branch
          %222 = sbr.rel (%p220) target = $region36
        $region35: #{tpu_custom_call.1} parent=31 // pred_region
          %p223 = scmp.lt.s32.totalorder %s21, 1
          %s224 = scalar_select %p223, %s21, 1
          %s225 = smul.addr %s224, 57
          %s226 = smul.addr %s225, 4
          %s227 = scalar_lea.vmem %s0, %s226
        $region36: #{tpu_custom_call.1} parent=31 // pred_fallthru
          _
      $region32: #{tpu_custom_call.1} parent=5 // pred_fallthru
        _
      %p228 = scmp.le.s32.totalorder 1, %s14
      %p229 = scmp.lt.s32.totalorder %s14, 3
      %p230 = pnand %p228, %p229
      %p231 = pneg %p230
      // Predicated region
      $region37: #{tpu_custom_call.1} parent=5 // pred_check
        _
      $region38: #{tpu_custom_call.1} parent=5 // pred_check_branch
        %233 = sbr.rel (%p230) target = $region40
      $region39: #{tpu_custom_call.1} parent=5 // pred_region
        %s234 = ssub.s32 %s14, 1
        %p235 = scmp.lt.s32.totalorder %s23, 1
        %s236 = scalar_select %p235, %s23, 1
        %s237 = smul.addr %s236, 57
        %s238 = smul.addr %s237, 4
        %s239 = scalar_lea.vmem %s0, %s238
        %p240 = pneg %p52
        %p241 = pneg %p49
        %p242 = scmp.lt.s32.totalorder %s24, 0
        %s243 = scalar_select %p242, %s24, 0
        %s244 = smul.addr %s243, 2
        %s245 = scalar_lea.vmem %s1, %s244
        %p246 = pneg %p78
        %p247 = pneg %p75
        %p248 = scmp.lt.s32.totalorder %s24, 0
        %s249 = scalar_select %p248, %s24, 0
        %s250 = scalar_lea.vmem %s2, %s249
        %p251 = pneg %p104
        %p252 = pneg %p101
        %p253 = scmp.lt.s32.totalorder %s24, 0
        %s254 = scalar_select %p253, %s24, 0
        %s255 = scalar_lea.vmem %s3, %s254
        %p256 = pneg %p130
        %p257 = pneg %p127
        %p258 = pneg %p151
        %p259 = pneg %p148
        %p260 = pneg %p179
        %p261 = pneg %p176
        %s262 = sand.u32 %s166, 1
        %s263 = scalar_lea.sflag [#allocation3], %s262
        %s264 = sand.u32 %s166, 1
        %s265 = smul.addr %s264, 88
        %s266 = scalar_lea.vmem [#allocation2], %s265
        %p267 = scmp.lt.s32.totalorder %s23, 1
        %s268 = scalar_select %p267, %s23, 1
        %s269 = smul.addr %s268, 57
        %s270 = smul.addr %s269, 4
        %s271 = scalar_lea.vmem %s0, %s270
        %p272 = scmp.lt.s32.totalorder %s24, 0
        %s273 = scalar_select %p272, %s24, 0
        %s274 = smul.addr %s273, 2
        %s275 = scalar_lea.vmem %s1, %s274
        %p276 = scmp.lt.s32.totalorder %s24, 0
        %s277 = scalar_select %p276, %s24, 0
        %s278 = scalar_lea.vmem %s2, %s277
        %p279 = scmp.lt.s32.totalorder %s24, 0
        %s280 = scalar_select %p279, %s24, 0
        %s281 = scalar_lea.vmem %s3, %s280
        %v283 = vld [vmem:[%s271] sm:$0xf]
        %v284 = vld [vmem:[%s271 + $0x4] sm:$0xf]
        %v285 = vld [vmem:[%s271 + $0x8] sm:$0xf]
        %v286 = vld [vmem:[%s271 + $0xc] sm:$0xf]
        %v287 = vld [vmem:[%s271 + $0x10] sm:$0xf]
        %v288 = vld [vmem:[%s271 + $0x14] sm:$0xf]
        %v289 = vld [vmem:[%s271 + $0x18] sm:$0xf]
        %v290 = vld [vmem:[%s271 + $0x1c] sm:$0xf]
        %v291 = vld [vmem:[%s271 + $0x20] sm:$0xf]
        %v292 = vld [vmem:[%s271 + $0x24] sm:$0xf]
        %v293 = vld [vmem:[%s271 + $0x28] sm:$0xf]
        %v294 = vld [vmem:[%s271 + $0x2c] sm:$0xf]
        %v295 = vld [vmem:[%s271 + $0x30] sm:$0xf]
        %v296 = vld [vmem:[%s271 + $0x34] sm:$0xf]
        %v297 = vld [vmem:[%s271 + $0x38] sm:$0xf]
        %v298 = vld [vmem:[%s271 + $0x3c] sm:$0xf]
        %v299 = vld [vmem:[%s271 + $0x40] sm:$0xf]
        %v300 = vld [vmem:[%s271 + $0x44] sm:$0xf]
        %v301 = vld [vmem:[%s271 + $0x48] sm:$0xf]
        %v302 = vld [vmem:[%s271 + $0x4c] sm:$0xf]
        %v303 = vld [vmem:[%s271 + $0x50] sm:$0xf]
        %v304 = vld [vmem:[%s271 + $0x54] sm:$0xf]
        %v305 = vld [vmem:[%s271 + $0x58] sm:$0xf]
        %v306 = vld [vmem:[%s271 + $0x5c] sm:$0xf]
        %v307 = vld [vmem:[%s271 + $0x60] sm:$0xf]
        %v308 = vld [vmem:[%s271 + $0x64] sm:$0xf]
        %v309 = vld [vmem:[%s271 + $0x68] sm:$0xf]
        %v310 = vld [vmem:[%s271 + $0x6c] sm:$0xf]
        %v311 = vld [vmem:[%s271 + $0x70] sm:$0xf]
        %v312 = vld [vmem:[%s271 + $0x74] sm:$0xf]
        %v313 = vld [vmem:[%s271 + $0x78] sm:$0xf]
        %v314 = vld [vmem:[%s271 + $0x7c] sm:$0xf]
        %v315 = vld [vmem:[%s271 + $0x80] sm:$0xf]
        %v316 = vld [vmem:[%s271 + $0x84] sm:$0xf]
        %v317 = vld [vmem:[%s271 + $0x88] sm:$0xf]
        %v318 = vld [vmem:[%s271 + $0x8c] sm:$0xf]
        %v319 = vld [vmem:[%s271 + $0x90] sm:$0xf]
        %v320 = vld [vmem:[%s271 + $0x94] sm:$0xf]
        %v321 = vld [vmem:[%s271 + $0x98] sm:$0xf]
        %v322 = vld [vmem:[%s271 + $0x9c] sm:$0xf]
        %v323 = vld [vmem:[%s271 + $0xa0] sm:$0xf]
        %v324 = vld [vmem:[%s271 + $0xa4] sm:$0xf]
        %v325 = vld [vmem:[%s271 + $0xa8] sm:$0xf]
        %v326 = vld [vmem:[%s271 + $0xac] sm:$0xf]
        %v327 = vld [vmem:[%s271 + $0xb0] sm:$0xf]
        %v328 = vld [vmem:[%s271 + $0xb4] sm:$0xf]
        %v329 = vld [vmem:[%s271 + $0xb8] sm:$0xf]
        %v330 = vld [vmem:[%s271 + $0xbc] sm:$0xf]
        %v331 = vld [vmem:[%s271 + $0xc0] sm:$0xf]
        %v332 = vld [vmem:[%s271 + $0xc4] sm:$0xf]
        %v333 = vld [vmem:[%s271 + $0xc8] sm:$0xf]
        %v334 = vld [vmem:[%s271 + $0xcc] sm:$0xf]
        %v335 = vld [vmem:[%s271 + $0xd0] sm:$0xf]
        %v336 = vld [vmem:[%s271 + $0xd4] sm:$0xf]
        %v337 = vld [vmem:[%s275] sm:$0x3]
        %s338 = scalar_lea.vmem %s275, 6
        %v339 = vld [vmem:[%s338] sm:$0x3]
        %v388 = vunpack.c.l.b16 %v286
        %v389 = vunpack.c.l.b16 %v287
        %v390 = vunpack.c.l.b16 %v288
        %v391 = vunpack.c.l.b16 %v289
        %v392 = vunpack.c.l.b16 %v290
        %v393 = vunpack.c.l.b16 %v291
        %v394 = vunpack.c.l.b16 %v292
        %v395 = vunpack.c.l.b16 %v293
        %v396 = vunpack.c.l.b16 %v294
        %v397 = vunpack.c.l.b16 %v295
        %v398 = vunpack.c.l.b16 %v296
        %v399 = vunpack.c.l.b16 %v297
        %v400 = vunpack.c.l.b16 %v298
        %v401 = vunpack.c.l.b16 %v299
        %v402 = vunpack.c.l.b16 %v300
        %v403 = vunpack.c.l.b16 %v301
        %v404 = vunpack.c.l.b16 %v302
        %v405 = vunpack.c.l.b16 %v303
        %v406 = vunpack.c.l.b16 %v304
        %v407 = vunpack.c.l.b16 %v305
        %v408 = vunpack.c.l.b16 %v306
        %v409 = vunpack.c.l.b16 %v307
        %v410 = vunpack.c.l.b16 %v308
        %v411 = vunpack.c.l.b16 %v309
        %v412 = vunpack.c.l.b16 %v310
        %v413 = vunpack.c.l.b16 %v311
        %v414 = vunpack.c.l.b16 %v312
        %v415 = vunpack.c.l.b16 %v313
        %v416 = vunpack.c.l.b16 %v314
        %v417 = vunpack.c.l.b16 %v315
        %v418 = vunpack.c.l.b16 %v316
        %v419 = vunpack.c.l.b16 %v317
        %v420 = vunpack.c.l.b16 %v318
        %v421 = vunpack.c.l.b16 %v319
        %v422 = vunpack.c.l.b16 %v320
        %v423 = vunpack.c.l.b16 %v321
        %v424 = vunpack.c.l.b16 %v322
        %v425 = vunpack.c.l.b16 %v323
        %v426 = vunpack.c.l.b16 %v324
        %v427 = vunpack.c.l.b16 %v325
        %v428 = vunpack.c.l.b16 %v326
        %v429 = vunpack.c.l.b16 %v327
        %v430 = vunpack.c.l.b16 %v328
        %v431 = vunpack.c.l.b16 %v329
        %v432 = vunpack.c.l.b16 %v330
        %v433 = vunpack.c.l.b16 %v331
        %v434 = vunpack.c.l.b16 %v332
        %v435 = vunpack.c.l.b16 %v333
        %v436 = vpack.c.b16 %v389, %v388
        %v437 = vpack.c.b16 %v391, %v390
        %v438 = vpack.c.b16 %v393, %v392
        %v439 = vpack.c.b16 %v395, %v394
        %v440 = vpack.c.b16 %v397, %v396
        %v441 = vpack.c.b16 %v399, %v398
        %v442 = vpack.c.b16 %v401, %v400
        %v443 = vpack.c.b16 %v403, %v402
        %v444 = vpack.c.b16 %v405, %v404
        %v445 = vpack.c.b16 %v407, %v406
        %v446 = vpack.c.b16 %v409, %v408
        %v447 = vpack.c.b16 %v411, %v410
        %v448 = vpack.c.b16 %v413, %v412
        %v449 = vpack.c.b16 %v415, %v414
        %v450 = vpack.c.b16 %v417, %v416
        %v451 = vpack.c.b16 %v419, %v418
        %v452 = vpack.c.b16 %v421, %v420
        %v453 = vpack.c.b16 %v423, %v422
        %v454 = vpack.c.b16 %v425, %v424
        %v455 = vpack.c.b16 %v427, %v426
        %v456 = vpack.c.b16 %v429, %v428
        %v457 = vpack.c.b16 %v431, %v430
        %v458 = vpack.c.b16 %v433, %v432
        %v459 = vpack.c.b16 %v435, %v434
        %vm460 = vcmask 23552
        %v462 = vsel %vm460, %v436, 0
        %v465 = vsel %vm460, %v437, 0
        %v468 = vsel %vm460, %v438, 0
        %v471 = vsel %vm460, %v439, 0
        %v474 = vsel %vm460, %v440, 0
        %v477 = vsel %vm460, %v441, 0
        %v480 = vsel %vm460, %v442, 0
        %v483 = vsel %vm460, %v443, 0
        %v486 = vsel %vm460, %v444, 0
        %v489 = vsel %vm460, %v445, 0
        %v492 = vsel %vm460, %v446, 0
        %v495 = vsel %vm460, %v447, 0
        %v498 = vsel %vm460, %v448, 0
        %v501 = vsel %vm460, %v449, 0
        %v504 = vsel %vm460, %v450, 0
        %v507 = vsel %vm460, %v451, 0
        %v510 = vsel %vm460, %v452, 0
        %v513 = vsel %vm460, %v453, 0
        %v516 = vsel %vm460, %v454, 0
        %v519 = vsel %vm460, %v455, 0
        %v522 = vsel %vm460, %v456, 0
        %v525 = vsel %vm460, %v457, 0
        %v528 = vsel %vm460, %v458, 0
        %v531 = vsel %vm460, %v459, 0
        %vm533 = vcmask 1040384
        %vm534 = vcmask 1041408
        %v535 = vsel %vm533, 4294967295, 65535
        %v536 = vsel %vm534, %v535, 0
        %v538 = vand.u32 %v339, %v536
        %540 = vmatprep.subr.bf16.mxu0 0
        %541 = vmatpush1.bf16.msra.mxu0 0
        %542 = vmatprep.subr.bf16.mxu0 0
        %543 = vmatpush1.bf16.msra.mxu0 0
        %544 = vmatprep.subr.bf16.mxu0 0
        %545 = vmatpush1.bf16.msra.mxu0 0
        %546 = vmatprep.subr.bf16.mxu0 0
        %547 = vmatpush1.bf16.msra.mxu0 0
        %548 = vmatprep.subr.bf16.mxu0 0
        %549 = vmatpush1.bf16.msra.mxu0 0
        %550 = vmatprep.subr.bf16.mxu0 0
        %551 = vmatpush1.bf16.msra.mxu0 0
        %552 = vmatprep.subr.bf16.mxu0 0
        %553 = vmatpush1.bf16.msra.mxu0 0
        %554 = vmatprep.subr.bf16.mxu0 0
        %555 = vmatpush1.bf16.msra.mxu0 %v538
        %556 = vmatprep.subr.bf16.mxu0 0
        %557 = vmatpush2.bf16.msra.mxu0 0
        %558 = vmatprep.subr.bf16.mxu0 0
        %559 = vmatpush2.bf16.msra.mxu0 0
        %560 = vmatprep.subr.bf16.mxu0 0
        %561 = vmatpush2.bf16.msra.mxu0 0
        %562 = vmatprep.subr.bf16.mxu0 0
        %563 = vmatpush2.bf16.msra.mxu0 0
        %564 = vmatprep.subr.bf16.mxu0 0
        %565 = vmatpush2.bf16.msra.mxu0 0
        %566 = vmatprep.subr.bf16.mxu0 0
        %567 = vmatpush2.bf16.msra.mxu0 0
        %568 = vmatprep.subr.bf16.mxu0 0
        %569 = vmatpush2.bf16.msra.mxu0 0
        %570 = vmatprep.subr.bf16.mxu0 0
        %571 = vmatpush2.bf16.msra.mxu0 0
        %572 = vmatprep.mubr.bf16.mxu0 0
        %573 = vmatmul.mubr.bf16.gmra.mxu0 %v462
        %v574 = vpop.f32.mrf.mxu0
        %v575 = vadd.f32 0.0, %v574
        %v576 = vpop.f32.mrf.mxu0
        %v577 = vpop.f32.mrf.mxu0
        %v578 = vadd.f32 0.0, %v577
        %v579 = vpop.f32.mrf.mxu0
        %580 = vmatprep.mubr.bf16.mxu0 0
        %581 = vmatmul.mubr.bf16.gmra.mxu0 %v465
        %v582 = vpop.f32.mrf.mxu0
        %v583 = vadd.f32 0.0, %v582
        %v584 = vpop.f32.mrf.mxu0
        %v585 = vpop.f32.mrf.mxu0
        %v586 = vadd.f32 0.0, %v585
        %v587 = vpop.f32.mrf.mxu0
        %588 = vmatprep.mubr.bf16.mxu0 0
        %589 = vmatmul.mubr.bf16.gmra.mxu0 %v468
        %v590 = vpop.f32.mrf.mxu0
        %v591 = vadd.f32 0.0, %v590
        %v592 = vpop.f32.mrf.mxu0
        %v593 = vpop.f32.mrf.mxu0
        %v594 = vadd.f32 0.0, %v593
        %v595 = vpop.f32.mrf.mxu0
        %596 = vmatprep.mubr.bf16.mxu0 0
        %597 = vmatmul.mubr.bf16.gmra.mxu0 %v471
        %v598 = vpop.f32.mrf.mxu0
        %v599 = vadd.f32 0.0, %v598
        %v600 = vpop.f32.mrf.mxu0
        %v601 = vpop.f32.mrf.mxu0
        %v602 = vadd.f32 0.0, %v601
        %v603 = vpop.f32.mrf.mxu0
        %604 = vmatprep.mubr.bf16.mxu0 0
        %605 = vmatmul.mubr.bf16.gmra.mxu0 %v474
        %v606 = vpop.f32.mrf.mxu0
        %v607 = vadd.f32 0.0, %v606
        %v608 = vpop.f32.mrf.mxu0
        %v609 = vpop.f32.mrf.mxu0
        %v610 = vadd.f32 0.0, %v609
        %v611 = vpop.f32.mrf.mxu0
        %612 = vmatprep.mubr.bf16.mxu0 0
        %613 = vmatmul.mubr.bf16.gmra.mxu0 %v477
        %v614 = vpop.f32.mrf.mxu0
        %v615 = vadd.f32 0.0, %v614
        %v616 = vpop.f32.mrf.mxu0
        %v617 = vpop.f32.mrf.mxu0
        %v618 = vadd.f32 0.0, %v617
        %v619 = vpop.f32.mrf.mxu0
        %620 = vmatprep.mubr.bf16.mxu0 0
        %621 = vmatmul.mubr.bf16.gmra.mxu0 %v480
        %v622 = vpop.f32.mrf.mxu0
        %v623 = vadd.f32 0.0, %v622
        %v624 = vpop.f32.mrf.mxu0
        %v625 = vpop.f32.mrf.mxu0
        %v626 = vadd.f32 0.0, %v625
        %v627 = vpop.f32.mrf.mxu0
        %628 = vmatprep.mubr.bf16.mxu0 0
        %629 = vmatmul.mubr.bf16.gmra.mxu0 %v483
        %v630 = vpop.f32.mrf.mxu0
        %v631 = vadd.f32 0.0, %v630
        %v632 = vpop.f32.mrf.mxu0
        %v633 = vpop.f32.mrf.mxu0
        %v634 = vadd.f32 0.0, %v633
        %v635 = vpop.f32.mrf.mxu0
        %636 = vmatprep.mubr.bf16.mxu0 0
        %637 = vmatmul.mubr.bf16.gmra.mxu0 %v486
        %v638 = vpop.f32.mrf.mxu0
        %v639 = vadd.f32 0.0, %v638
        %v640 = vpop.f32.mrf.mxu0
        %v641 = vpop.f32.mrf.mxu0
        %v642 = vadd.f32 0.0, %v641
        %v643 = vpop.f32.mrf.mxu0
        %644 = vmatprep.mubr.bf16.mxu0 0
        %645 = vmatmul.mubr.bf16.gmra.mxu0 %v489
        %v646 = vpop.f32.mrf.mxu0
        %v647 = vadd.f32 0.0, %v646
        %v648 = vpop.f32.mrf.mxu0
        %v649 = vpop.f32.mrf.mxu0
        %v650 = vadd.f32 0.0, %v649
        %v651 = vpop.f32.mrf.mxu0
        %652 = vmatprep.mubr.bf16.mxu0 0
        %653 = vmatmul.mubr.bf16.gmra.mxu0 %v492
        %v654 = vpop.f32.mrf.mxu0
        %v655 = vadd.f32 0.0, %v654
        %v656 = vpop.f32.mrf.mxu0
        %v657 = vpop.f32.mrf.mxu0
        %v658 = vadd.f32 0.0, %v657
        %v659 = vpop.f32.mrf.mxu0
        %660 = vmatprep.mubr.bf16.mxu0 0
        %661 = vmatmul.mubr.bf16.gmra.mxu0 %v495
        %v662 = vpop.f32.mrf.mxu0
        %v663 = vadd.f32 0.0, %v662
        %v664 = vpop.f32.mrf.mxu0
        %v665 = vpop.f32.mrf.mxu0
        %v666 = vadd.f32 0.0, %v665
        %v667 = vpop.f32.mrf.mxu0
        %668 = vmatprep.mubr.bf16.mxu0 0
        %669 = vmatmul.mubr.bf16.gmra.mxu0 %v498
        %v670 = vpop.f32.mrf.mxu0
        %v671 = vadd.f32 0.0, %v670
        %v672 = vpop.f32.mrf.mxu0
        %v673 = vpop.f32.mrf.mxu0
        %v674 = vadd.f32 0.0, %v673
        %v675 = vpop.f32.mrf.mxu0
        %676 = vmatprep.mubr.bf16.mxu0 0
        %677 = vmatmul.mubr.bf16.gmra.mxu0 %v501
        %v678 = vpop.f32.mrf.mxu0
        %v679 = vadd.f32 0.0, %v678
        %v680 = vpop.f32.mrf.mxu0
        %v681 = vpop.f32.mrf.mxu0
        %v682 = vadd.f32 0.0, %v681
        %v683 = vpop.f32.mrf.mxu0
        %684 = vmatprep.mubr.bf16.mxu0 0
        %685 = vmatmul.mubr.bf16.gmra.mxu0 %v504
        %v686 = vpop.f32.mrf.mxu0
        %v687 = vadd.f32 0.0, %v686
        %v688 = vpop.f32.mrf.mxu0
        %v689 = vpop.f32.mrf.mxu0
        %v690 = vadd.f32 0.0, %v689
        %v691 = vpop.f32.mrf.mxu0
        %692 = vmatprep.mubr.bf16.mxu0 0
        %693 = vmatmul.mubr.bf16.gmra.mxu0 %v507
        %v694 = vpop.f32.mrf.mxu0
        %v695 = vadd.f32 0.0, %v694
        %v696 = vpop.f32.mrf.mxu0
        %v697 = vpop.f32.mrf.mxu0
        %v698 = vadd.f32 0.0, %v697
        %v699 = vpop.f32.mrf.mxu0
        %700 = vmatprep.mubr.bf16.mxu0 0
        %701 = vmatmul.mubr.bf16.gmra.mxu0 %v510
        %v702 = vpop.f32.mrf.mxu0
        %v703 = vadd.f32 0.0, %v702
        %v704 = vpop.f32.mrf.mxu0
        %v705 = vpop.f32.mrf.mxu0
        %v706 = vadd.f32 0.0, %v705
        %v707 = vpop.f32.mrf.mxu0
        %708 = vmatprep.mubr.bf16.mxu0 0
        %709 = vmatmul.mubr.bf16.gmra.mxu0 %v513
        %v710 = vpop.f32.mrf.mxu0
        %v711 = vadd.f32 0.0, %v710
        %v712 = vpop.f32.mrf.mxu0
        %v713 = vpop.f32.mrf.mxu0
        %v714 = vadd.f32 0.0, %v713
        %v715 = vpop.f32.mrf.mxu0
        %716 = vmatprep.mubr.bf16.mxu0 0
        %717 = vmatmul.mubr.bf16.gmra.mxu0 %v516
        %v718 = vpop.f32.mrf.mxu0
        %v719 = vadd.f32 0.0, %v718
        %v720 = vpop.f32.mrf.mxu0
        %v721 = vpop.f32.mrf.mxu0
        %v722 = vadd.f32 0.0, %v721
        %v723 = vpop.f32.mrf.mxu0
        %724 = vmatprep.mubr.bf16.mxu0 0
        %725 = vmatmul.mubr.bf16.gmra.mxu0 %v519
        %v726 = vpop.f32.mrf.mxu0
        %v727 = vadd.f32 0.0, %v726
        %v728 = vpop.f32.mrf.mxu0
        %v729 = vpop.f32.mrf.mxu0
        %v730 = vadd.f32 0.0, %v729
        %v731 = vpop.f32.mrf.mxu0
        %732 = vmatprep.mubr.bf16.mxu0 0
        %733 = vmatmul.mubr.bf16.gmra.mxu0 %v522
        %v734 = vpop.f32.mrf.mxu0
        %v735 = vadd.f32 0.0, %v734
        %v736 = vpop.f32.mrf.mxu0
        %v737 = vpop.f32.mrf.mxu0
        %v738 = vadd.f32 0.0, %v737
        %v739 = vpop.f32.mrf.mxu0
        %740 = vmatprep.mubr.bf16.mxu0 0
        %741 = vmatmul.mubr.bf16.gmra.mxu0 %v525
        %v742 = vpop.f32.mrf.mxu0
        %v743 = vadd.f32 0.0, %v742
        %v744 = vpop.f32.mrf.mxu0
        %v745 = vpop.f32.mrf.mxu0
        %v746 = vadd.f32 0.0, %v745
        %v747 = vpop.f32.mrf.mxu0
        %748 = vmatprep.mubr.bf16.mxu0 0
        %749 = vmatmul.mubr.bf16.gmra.mxu0 %v528
        %v750 = vpop.f32.mrf.mxu0
        %v751 = vadd.f32 0.0, %v750
        %v752 = vpop.f32.mrf.mxu0
        %v753 = vpop.f32.mrf.mxu0
        %v754 = vadd.f32 0.0, %v753
        %v755 = vpop.f32.mrf.mxu0
        %756 = vmatprep.mubr.bf16.mxu0 0
        %757 = vmatmul.mubr.bf16.gmra.mxu0 %v531
        %v758 = vpop.f32.mrf.mxu0
        %v759 = vadd.f32 0.0, %v758
        %v760 = vpop.f32.mrf.mxu0
        %v761 = vpop.f32.mrf.mxu0
        %v762 = vadd.f32 0.0, %v761
        %v763 = vpop.f32.mrf.mxu0
        %764 = vdwg.mxu0
        %v768 = vunpack.c.l.b16 %v283
        %v769 = vunpack.c.l.b16 %v284
        %v770 = vunpack.c.l.b16 %v285
        %v771 = vpack.c.b16 %v769, %v768
        %v772 = vpack.c.b16 %v388, %v770
        %v773 = vpack.c.b16 %v390, %v389
        %v774 = vpack.c.b16 %v392, %v391
        %v775 = vpack.c.b16 %v394, %v393
        %v776 = vpack.c.b16 %v396, %v395
        %v777 = vpack.c.b16 %v398, %v397
        %v778 = vpack.c.b16 %v400, %v399
        %v779 = vpack.c.b16 %v402, %v401
        %v780 = vpack.c.b16 %v404, %v403
        %v781 = vpack.c.b16 %v406, %v405
        %v782 = vpack.c.b16 %v408, %v407
        %v783 = vpack.c.b16 %v410, %v409
        %v784 = vpack.c.b16 %v412, %v411
        %v785 = vpack.c.b16 %v414, %v413
        %v786 = vpack.c.b16 %v416, %v415
        %v787 = vpack.c.b16 %v418, %v417
        %v788 = vpack.c.b16 %v420, %v419
        %v789 = vpack.c.b16 %v422, %v421
        %v790 = vpack.c.b16 %v424, %v423
        %v791 = vpack.c.b16 %v426, %v425
        %v792 = vpack.c.b16 %v428, %v427
        %v793 = vpack.c.b16 %v430, %v429
        %v794 = vpack.c.b16 %v432, %v431
        %v796 = vsel %vm460, %v771, 0
        %v799 = vsel %vm460, %v772, 0
        %v802 = vsel %vm460, %v773, 0
        %v805 = vsel %vm460, %v774, 0
        %v808 = vsel %vm460, %v775, 0
        %v811 = vsel %vm460, %v776, 0
        %v814 = vsel %vm460, %v777, 0
        %v817 = vsel %vm460, %v778, 0
        %v820 = vsel %vm460, %v779, 0
        %v823 = vsel %vm460, %v780, 0
        %v826 = vsel %vm460, %v781, 0
        %v829 = vsel %vm460, %v782, 0
        %v832 = vsel %vm460, %v783, 0
        %v835 = vsel %vm460, %v784, 0
        %v838 = vsel %vm460, %v785, 0
        %v841 = vsel %vm460, %v786, 0
        %v844 = vsel %vm460, %v787, 0
        %v847 = vsel %vm460, %v788, 0
        %v850 = vsel %vm460, %v789, 0
        %v853 = vsel %vm460, %v790, 0
        %v856 = vsel %vm460, %v791, 0
        %v859 = vsel %vm460, %v792, 0
        %v862 = vsel %vm460, %v793, 0
        %v865 = vsel %vm460, %v794, 0
        %v868 = vand.u32 %v337, %v536
        %870 = vmatprep.subr.bf16.mxu0 0
        %871 = vmatpush1.bf16.msra.mxu0 0
        %872 = vmatprep.subr.bf16.mxu0 0
        %873 = vmatpush1.bf16.msra.mxu0 0
        %874 = vmatprep.subr.bf16.mxu0 0
        %875 = vmatpush1.bf16.msra.mxu0 0
        %876 = vmatprep.subr.bf16.mxu0 0
        %877 = vmatpush1.bf16.msra.mxu0 0
        %878 = vmatprep.subr.bf16.mxu0 0
        %879 = vmatpush1.bf16.msra.mxu0 0
        %880 = vmatprep.subr.bf16.mxu0 0
        %881 = vmatpush1.bf16.msra.mxu0 0
        %882 = vmatprep.subr.bf16.mxu0 0
        %883 = vmatpush1.bf16.msra.mxu0 0
        %884 = vmatprep.subr.bf16.mxu0 0
        %885 = vmatpush1.bf16.msra.mxu0 %v868
        %886 = vmatprep.subr.bf16.mxu0 0
        %887 = vmatpush2.bf16.msra.mxu0 0
        %888 = vmatprep.subr.bf16.mxu0 0
        %889 = vmatpush2.bf16.msra.mxu0 0
        %890 = vmatprep.subr.bf16.mxu0 0
        %891 = vmatpush2.bf16.msra.mxu0 0
        %892 = vmatprep.subr.bf16.mxu0 0
        %893 = vmatpush2.bf16.msra.mxu0 0
        %894 = vmatprep.subr.bf16.mxu0 0
        %895 = vmatpush2.bf16.msra.mxu0 0
        %896 = vmatprep.subr.bf16.mxu0 0
        %897 = vmatpush2.bf16.msra.mxu0 0
        %898 = vmatprep.subr.bf16.mxu0 0
        %899 = vmatpush2.bf16.msra.mxu0 0
        %900 = vmatprep.subr.bf16.mxu0 0
        %901 = vmatpush2.bf16.msra.mxu0 0
        %902 = vmatprep.mubr.bf16.mxu0 0
        %903 = vmatmul.mubr.bf16.gmra.mxu0 %v796
        %v904 = vpop.f32.mrf.mxu0
        %v905 = vadd.f32 %v575, %v904
        %v906 = vpop.f32.mrf.mxu0
        %v907 = vpop.f32.mrf.mxu0
        %v908 = vadd.f32 %v578, %v907
        %v909 = vpop.f32.mrf.mxu0
        %910 = vmatprep.mubr.bf16.mxu0 0
        %911 = vmatmul.mubr.bf16.gmra.mxu0 %v799
        %v912 = vpop.f32.mrf.mxu0
        %v913 = vadd.f32 %v583, %v912
        %v914 = vpop.f32.mrf.mxu0
        %v915 = vpop.f32.mrf.mxu0
        %v916 = vadd.f32 %v586, %v915
        %v917 = vpop.f32.mrf.mxu0
        %918 = vmatprep.mubr.bf16.mxu0 0
        %919 = vmatmul.mubr.bf16.gmra.mxu0 %v802
        %v920 = vpop.f32.mrf.mxu0
        %v921 = vadd.f32 %v591, %v920
        %v922 = vpop.f32.mrf.mxu0
        %v923 = vpop.f32.mrf.mxu0
        %v924 = vadd.f32 %v594, %v923
        %v925 = vpop.f32.mrf.mxu0
        %926 = vmatprep.mubr.bf16.mxu0 0
        %927 = vmatmul.mubr.bf16.gmra.mxu0 %v805
        %v928 = vpop.f32.mrf.mxu0
        %v929 = vadd.f32 %v599, %v928
        %v930 = vpop.f32.mrf.mxu0
        %v931 = vpop.f32.mrf.mxu0
        %v932 = vadd.f32 %v602, %v931
        %v933 = vpop.f32.mrf.mxu0
        %934 = vmatprep.mubr.bf16.mxu0 0
        %935 = vmatmul.mubr.bf16.gmra.mxu0 %v808
        %v936 = vpop.f32.mrf.mxu0
        %v937 = vadd.f32 %v607, %v936
        %v938 = vpop.f32.mrf.mxu0
        %v939 = vpop.f32.mrf.mxu0
        %v940 = vadd.f32 %v610, %v939
        %v941 = vpop.f32.mrf.mxu0
        %942 = vmatprep.mubr.bf16.mxu0 0
        %943 = vmatmul.mubr.bf16.gmra.mxu0 %v811
        %v944 = vpop.f32.mrf.mxu0
        %v945 = vadd.f32 %v615, %v944
        %v946 = vpop.f32.mrf.mxu0
        %v947 = vpop.f32.mrf.mxu0
        %v948 = vadd.f32 %v618, %v947
        %v949 = vpop.f32.mrf.mxu0
        %950 = vmatprep.mubr.bf16.mxu0 0
        %951 = vmatmul.mubr.bf16.gmra.mxu0 %v814
        %v952 = vpop.f32.mrf.mxu0
        %v953 = vadd.f32 %v623, %v952
        %v954 = vpop.f32.mrf.mxu0
        %v955 = vpop.f32.mrf.mxu0
        %v956 = vadd.f32 %v626, %v955
        %v957 = vpop.f32.mrf.mxu0
        %958 = vmatprep.mubr.bf16.mxu0 0
        %959 = vmatmul.mubr.bf16.gmra.mxu0 %v817
        %v960 = vpop.f32.mrf.mxu0
        %v961 = vadd.f32 %v631, %v960
        %v962 = vpop.f32.mrf.mxu0
        %v963 = vpop.f32.mrf.mxu0
        %v964 = vadd.f32 %v634, %v963
        %v965 = vpop.f32.mrf.mxu0
        %966 = vmatprep.mubr.bf16.mxu0 0
        %967 = vmatmul.mubr.bf16.gmra.mxu0 %v820
        %v968 = vpop.f32.mrf.mxu0
        %v969 = vadd.f32 %v639, %v968
        %v970 = vpop.f32.mrf.mxu0
        %v971 = vpop.f32.mrf.mxu0
        %v972 = vadd.f32 %v642, %v971
        %v973 = vpop.f32.mrf.mxu0
        %974 = vmatprep.mubr.bf16.mxu0 0
        %975 = vmatmul.mubr.bf16.gmra.mxu0 %v823
        %v976 = vpop.f32.mrf.mxu0
        %v977 = vadd.f32 %v647, %v976
        %v978 = vpop.f32.mrf.mxu0
        %v979 = vpop.f32.mrf.mxu0
        %v980 = vadd.f32 %v650, %v979
        %v981 = vpop.f32.mrf.mxu0
        %982 = vmatprep.mubr.bf16.mxu0 0
        %983 = vmatmul.mubr.bf16.gmra.mxu0 %v826
        %v984 = vpop.f32.mrf.mxu0
        %v985 = vadd.f32 %v655, %v984
        %v986 = vpop.f32.mrf.mxu0
        %v987 = vpop.f32.mrf.mxu0
        %v988 = vadd.f32 %v658, %v987
        %v989 = vpop.f32.mrf.mxu0
        %990 = vmatprep.mubr.bf16.mxu0 0
        %991 = vmatmul.mubr.bf16.gmra.mxu0 %v829
        %v992 = vpop.f32.mrf.mxu0
        %v993 = vadd.f32 %v663, %v992
        %v994 = vpop.f32.mrf.mxu0
        %v995 = vpop.f32.mrf.mxu0
        %v996 = vadd.f32 %v666, %v995
        %v997 = vpop.f32.mrf.mxu0
        %998 = vmatprep.mubr.bf16.mxu0 0
        %999 = vmatmul.mubr.bf16.gmra.mxu0 %v832
        %v1000 = vpop.f32.mrf.mxu0
        %v1001 = vadd.f32 %v671, %v1000
        %v1002 = vpop.f32.mrf.mxu0
        %v1003 = vpop.f32.mrf.mxu0
        %v1004 = vadd.f32 %v674, %v1003
        %v1005 = vpop.f32.mrf.mxu0
        %1006 = vmatprep.mubr.bf16.mxu0 0
        %1007 = vmatmul.mubr.bf16.gmra.mxu0 %v835
        %v1008 = vpop.f32.mrf.mxu0
        %v1009 = vadd.f32 %v679, %v1008
        %v1010 = vpop.f32.mrf.mxu0
        %v1011 = vpop.f32.mrf.mxu0
        %v1012 = vadd.f32 %v682, %v1011
        %v1013 = vpop.f32.mrf.mxu0
        %1014 = vmatprep.mubr.bf16.mxu0 0
        %1015 = vmatmul.mubr.bf16.gmra.mxu0 %v838
        %v1016 = vpop.f32.mrf.mxu0
        %v1017 = vadd.f32 %v687, %v1016
        %v1018 = vpop.f32.mrf.mxu0
        %v1019 = vpop.f32.mrf.mxu0
        %v1020 = vadd.f32 %v690, %v1019
        %v1021 = vpop.f32.mrf.mxu0
        %1022 = vmatprep.mubr.bf16.mxu0 0
        %1023 = vmatmul.mubr.bf16.gmra.mxu0 %v841
        %v1024 = vpop.f32.mrf.mxu0
        %v1025 = vadd.f32 %v695, %v1024
        %v1026 = vpop.f32.mrf.mxu0
        %v1027 = vpop.f32.mrf.mxu0
        %v1028 = vadd.f32 %v698, %v1027
        %v1029 = vpop.f32.mrf.mxu0
        %1030 = vmatprep.mubr.bf16.mxu0 0
        %1031 = vmatmul.mubr.bf16.gmra.mxu0 %v844
        %v1032 = vpop.f32.mrf.mxu0
        %v1033 = vadd.f32 %v703, %v1032
        %v1034 = vpop.f32.mrf.mxu0
        %v1035 = vpop.f32.mrf.mxu0
        %v1036 = vadd.f32 %v706, %v1035
        %v1037 = vpop.f32.mrf.mxu0
        %1038 = vmatprep.mubr.bf16.mxu0 0
        %1039 = vmatmul.mubr.bf16.gmra.mxu0 %v847
        %v1040 = vpop.f32.mrf.mxu0
        %v1041 = vadd.f32 %v711, %v1040
        %v1042 = vpop.f32.mrf.mxu0
        %v1043 = vpop.f32.mrf.mxu0
        %v1044 = vadd.f32 %v714, %v1043
        %v1045 = vpop.f32.mrf.mxu0
        %1046 = vmatprep.mubr.bf16.mxu0 0
        %1047 = vmatmul.mubr.bf16.gmra.mxu0 %v850
        %v1048 = vpop.f32.mrf.mxu0
        %v1049 = vadd.f32 %v719, %v1048
        %v1050 = vpop.f32.mrf.mxu0
        %v1051 = vpop.f32.mrf.mxu0
        %v1052 = vadd.f32 %v722, %v1051
        %v1053 = vpop.f32.mrf.mxu0
        %1054 = vmatprep.mubr.bf16.mxu0 0
        %1055 = vmatmul.mubr.bf16.gmra.mxu0 %v853
        %v1056 = vpop.f32.mrf.mxu0
        %v1057 = vadd.f32 %v727, %v1056
        %v1058 = vpop.f32.mrf.mxu0
        %v1059 = vpop.f32.mrf.mxu0
        %v1060 = vadd.f32 %v730, %v1059
        %v1061 = vpop.f32.mrf.mxu0
        %1062 = vmatprep.mubr.bf16.mxu0 0
        %1063 = vmatmul.mubr.bf16.gmra.mxu0 %v856
        %v1064 = vpop.f32.mrf.mxu0
        %v1065 = vadd.f32 %v735, %v1064
        %v1066 = vpop.f32.mrf.mxu0
        %v1067 = vpop.f32.mrf.mxu0
        %v1068 = vadd.f32 %v738, %v1067
        %v1069 = vpop.f32.mrf.mxu0
        %1070 = vmatprep.mubr.bf16.mxu0 0
        %1071 = vmatmul.mubr.bf16.gmra.mxu0 %v859
        %v1072 = vpop.f32.mrf.mxu0
        %v1073 = vadd.f32 %v743, %v1072
        %v1074 = vpop.f32.mrf.mxu0
        %v1075 = vpop.f32.mrf.mxu0
        %v1076 = vadd.f32 %v746, %v1075
        %v1077 = vpop.f32.mrf.mxu0
        %1078 = vmatprep.mubr.bf16.mxu0 0
        %1079 = vmatmul.mubr.bf16.gmra.mxu0 %v862
        %v1080 = vpop.f32.mrf.mxu0
        %v1081 = vadd.f32 %v751, %v1080
        %v1082 = vpop.f32.mrf.mxu0
        %v1083 = vpop.f32.mrf.mxu0
        %v1084 = vadd.f32 %v754, %v1083
        %v1085 = vpop.f32.mrf.mxu0
        %1086 = vmatprep.mubr.bf16.mxu0 0
        %1087 = vmatmul.mubr.bf16.gmra.mxu0 %v865
        %v1088 = vpop.f32.mrf.mxu0
        %v1089 = vadd.f32 %v759, %v1088
        %v1090 = vpop.f32.mrf.mxu0
        %v1091 = vpop.f32.mrf.mxu0
        %v1092 = vadd.f32 %v762, %v1091
        %v1093 = vpop.f32.mrf.mxu0
        %1094 = vdwg.mxu0
        %s1095 = scalar_lea.vmem %s275, 12
        %v1096 = vld [vmem:[%s1095] sm:$0x3]
        %v1100 = vunpack.c.l.b16 %v334
        %v1101 = vunpack.c.l.b16 %v335
        %v1102 = vunpack.c.l.b16 %v336
        %v1103 = vpack.c.b16 %v434, %v433
        %v1104 = vpack.c.b16 %v1100, %v435
        %v1105 = vpack.c.b16 %v1102, %v1101
        %v1107 = vsel %vm460, %v1103, 0
        %v1110 = vsel %vm460, %v1104, 0
        %v1113 = vsel %vm460, %v1105, 0
        %v1116 = vand.u32 %v1096, %v536
        %1118 = vmatprep.subr.bf16.mxu0 0
        %1119 = vmatpush1.bf16.msra.mxu0 0
        %1120 = vmatprep.subr.bf16.mxu0 0
        %1121 = vmatpush1.bf16.msra.mxu0 0
        %1122 = vmatprep.subr.bf16.mxu0 0
        %1123 = vmatpush1.bf16.msra.mxu0 0
        %1124 = vmatprep.subr.bf16.mxu0 0
        %1125 = vmatpush1.bf16.msra.mxu0 0
        %1126 = vmatprep.subr.bf16.mxu0 0
        %1127 = vmatpush1.bf16.msra.mxu0 0
        %1128 = vmatprep.subr.bf16.mxu0 0
        %1129 = vmatpush1.bf16.msra.mxu0 0
        %1130 = vmatprep.subr.bf16.mxu0 0
        %1131 = vmatpush1.bf16.msra.mxu0 0
        %1132 = vmatprep.subr.bf16.mxu0 0
        %1133 = vmatpush1.bf16.msra.mxu0 %v1116
        %1134 = vmatprep.subr.bf16.mxu0 0
        %1135 = vmatpush2.bf16.msra.mxu0 0
        %1136 = vmatprep.subr.bf16.mxu0 0
        %1137 = vmatpush2.bf16.msra.mxu0 0
        %1138 = vmatprep.subr.bf16.mxu0 0
        %1139 = vmatpush2.bf16.msra.mxu0 0
        %1140 = vmatprep.subr.bf16.mxu0 0
        %1141 = vmatpush2.bf16.msra.mxu0 0
        %1142 = vmatprep.subr.bf16.mxu0 0
        %1143 = vmatpush2.bf16.msra.mxu0 0
        %1144 = vmatprep.subr.bf16.mxu0 0
        %1145 = vmatpush2.bf16.msra.mxu0 0
        %1146 = vmatprep.subr.bf16.mxu0 0
        %1147 = vmatpush2.bf16.msra.mxu0 0
        %1148 = vmatprep.subr.bf16.mxu0 0
        %1149 = vmatpush2.bf16.msra.mxu0 0
        %1150 = vmatprep.mubr.bf16.mxu0 0
        %1151 = vmatmul.mubr.bf16.gmra.mxu0 %v805
        %v1152 = vpop.f32.mrf.mxu0
        %v1153 = vadd.f32 0.0, %v1152
        %v1154 = vpop.f32.mrf.mxu0
        %v1155 = vpop.f32.mrf.mxu0
        %v1156 = vadd.f32 0.0, %v1155
        %v1157 = vpop.f32.mrf.mxu0
        %1158 = vmatprep.mubr.bf16.mxu0 0
        %1159 = vmatmul.mubr.bf16.gmra.mxu0 %v808
        %v1160 = vpop.f32.mrf.mxu0
        %v1161 = vadd.f32 0.0, %v1160
        %v1162 = vpop.f32.mrf.mxu0
        %v1163 = vpop.f32.mrf.mxu0
        %v1164 = vadd.f32 0.0, %v1163
        %v1165 = vpop.f32.mrf.mxu0
        %1166 = vmatprep.mubr.bf16.mxu0 0
        %1167 = vmatmul.mubr.bf16.gmra.mxu0 %v811
        %v1168 = vpop.f32.mrf.mxu0
        %v1169 = vadd.f32 0.0, %v1168
        %v1170 = vpop.f32.mrf.mxu0
        %v1171 = vpop.f32.mrf.mxu0
        %v1172 = vadd.f32 0.0, %v1171
        %v1173 = vpop.f32.mrf.mxu0
        %1174 = vmatprep.mubr.bf16.mxu0 0
        %1175 = vmatmul.mubr.bf16.gmra.mxu0 %v814
        %v1176 = vpop.f32.mrf.mxu0
        %v1177 = vadd.f32 0.0, %v1176
        %v1178 = vpop.f32.mrf.mxu0
        %v1179 = vpop.f32.mrf.mxu0
        %v1180 = vadd.f32 0.0, %v1179
        %v1181 = vpop.f32.mrf.mxu0
        %1182 = vmatprep.mubr.bf16.mxu0 0
        %1183 = vmatmul.mubr.bf16.gmra.mxu0 %v817
        %v1184 = vpop.f32.mrf.mxu0
        %v1185 = vadd.f32 0.0, %v1184
        %v1186 = vpop.f32.mrf.mxu0
        %v1187 = vpop.f32.mrf.mxu0
        %v1188 = vadd.f32 0.0, %v1187
        %v1189 = vpop.f32.mrf.mxu0
        %1190 = vmatprep.mubr.bf16.mxu0 0
        %1191 = vmatmul.mubr.bf16.gmra.mxu0 %v820
        %v1192 = vpop.f32.mrf.mxu0
        %v1193 = vadd.f32 0.0, %v1192
        %v1194 = vpop.f32.mrf.mxu0
        %v1195 = vpop.f32.mrf.mxu0
        %v1196 = vadd.f32 0.0, %v1195
        %v1197 = vpop.f32.mrf.mxu0
        %1198 = vmatprep.mubr.bf16.mxu0 0
        %1199 = vmatmul.mubr.bf16.gmra.mxu0 %v823
        %v1200 = vpop.f32.mrf.mxu0
        %v1201 = vadd.f32 0.0, %v1200
        %v1202 = vpop.f32.mrf.mxu0
        %v1203 = vpop.f32.mrf.mxu0
        %v1204 = vadd.f32 0.0, %v1203
        %v1205 = vpop.f32.mrf.mxu0
        %1206 = vmatprep.mubr.bf16.mxu0 0
        %1207 = vmatmul.mubr.bf16.gmra.mxu0 %v826
        %v1208 = vpop.f32.mrf.mxu0
        %v1209 = vadd.f32 0.0, %v1208
        %v1210 = vpop.f32.mrf.mxu0
        %v1211 = vpop.f32.mrf.mxu0
        %v1212 = vadd.f32 0.0, %v1211
        %v1213 = vpop.f32.mrf.mxu0
        %1214 = vmatprep.mubr.bf16.mxu0 0
        %1215 = vmatmul.mubr.bf16.gmra.mxu0 %v829
        %v1216 = vpop.f32.mrf.mxu0
        %v1217 = vadd.f32 0.0, %v1216
        %v1218 = vpop.f32.mrf.mxu0
        %v1219 = vpop.f32.mrf.mxu0
        %v1220 = vadd.f32 0.0, %v1219
        %v1221 = vpop.f32.mrf.mxu0
        %1222 = vmatprep.mubr.bf16.mxu0 0
        %1223 = vmatmul.mubr.bf16.gmra.mxu0 %v832
        %v1224 = vpop.f32.mrf.mxu0
        %v1225 = vadd.f32 0.0, %v1224
        %v1226 = vpop.f32.mrf.mxu0
        %v1227 = vpop.f32.mrf.mxu0
        %v1228 = vadd.f32 0.0, %v1227
        %v1229 = vpop.f32.mrf.mxu0
        %1230 = vmatprep.mubr.bf16.mxu0 0
        %1231 = vmatmul.mubr.bf16.gmra.mxu0 %v835
        %v1232 = vpop.f32.mrf.mxu0
        %v1233 = vadd.f32 0.0, %v1232
        %v1234 = vpop.f32.mrf.mxu0
        %v1235 = vpop.f32.mrf.mxu0
        %v1236 = vadd.f32 0.0, %v1235
        %v1237 = vpop.f32.mrf.mxu0
        %1238 = vmatprep.mubr.bf16.mxu0 0
        %1239 = vmatmul.mubr.bf16.gmra.mxu0 %v838
        %v1240 = vpop.f32.mrf.mxu0
        %v1241 = vadd.f32 0.0, %v1240
        %v1242 = vpop.f32.mrf.mxu0
        %v1243 = vpop.f32.mrf.mxu0
        %v1244 = vadd.f32 0.0, %v1243
        %v1245 = vpop.f32.mrf.mxu0
        %1246 = vmatprep.mubr.bf16.mxu0 0
        %1247 = vmatmul.mubr.bf16.gmra.mxu0 %v841
        %v1248 = vpop.f32.mrf.mxu0
        %v1249 = vadd.f32 0.0, %v1248
        %v1250 = vpop.f32.mrf.mxu0
        %v1251 = vpop.f32.mrf.mxu0
        %v1252 = vadd.f32 0.0, %v1251
        %v1253 = vpop.f32.mrf.mxu0
        %1254 = vmatprep.mubr.bf16.mxu0 0
        %1255 = vmatmul.mubr.bf16.gmra.mxu0 %v844
        %v1256 = vpop.f32.mrf.mxu0
        %v1257 = vadd.f32 0.0, %v1256
        %v1258 = vpop.f32.mrf.mxu0
        %v1259 = vpop.f32.mrf.mxu0
        %v1260 = vadd.f32 0.0, %v1259
        %v1261 = vpop.f32.mrf.mxu0
        %1262 = vmatprep.mubr.bf16.mxu0 0
        %1263 = vmatmul.mubr.bf16.gmra.mxu0 %v847
        %v1264 = vpop.f32.mrf.mxu0
        %v1265 = vadd.f32 0.0, %v1264
        %v1266 = vpop.f32.mrf.mxu0
        %v1267 = vpop.f32.mrf.mxu0
        %v1268 = vadd.f32 0.0, %v1267
        %v1269 = vpop.f32.mrf.mxu0
        %1270 = vmatprep.mubr.bf16.mxu0 0
        %1271 = vmatmul.mubr.bf16.gmra.mxu0 %v850
        %v1272 = vpop.f32.mrf.mxu0
        %v1273 = vadd.f32 0.0, %v1272
        %v1274 = vpop.f32.mrf.mxu0
        %v1275 = vpop.f32.mrf.mxu0
        %v1276 = vadd.f32 0.0, %v1275
        %v1277 = vpop.f32.mrf.mxu0
        %1278 = vmatprep.mubr.bf16.mxu0 0
        %1279 = vmatmul.mubr.bf16.gmra.mxu0 %v853
        %v1280 = vpop.f32.mrf.mxu0
        %v1281 = vadd.f32 0.0, %v1280
        %v1282 = vpop.f32.mrf.mxu0
        %v1283 = vpop.f32.mrf.mxu0
        %v1284 = vadd.f32 0.0, %v1283
        %v1285 = vpop.f32.mrf.mxu0
        %1286 = vmatprep.mubr.bf16.mxu0 0
        %1287 = vmatmul.mubr.bf16.gmra.mxu0 %v856
        %v1288 = vpop.f32.mrf.mxu0
        %v1289 = vadd.f32 0.0, %v1288
        %v1290 = vpop.f32.mrf.mxu0
        %v1291 = vpop.f32.mrf.mxu0
        %v1292 = vadd.f32 0.0, %v1291
        %v1293 = vpop.f32.mrf.mxu0
        %1294 = vmatprep.mubr.bf16.mxu0 0
        %1295 = vmatmul.mubr.bf16.gmra.mxu0 %v859
        %v1296 = vpop.f32.mrf.mxu0
        %v1297 = vadd.f32 0.0, %v1296
        %v1298 = vpop.f32.mrf.mxu0
        %v1299 = vpop.f32.mrf.mxu0
        %v1300 = vadd.f32 0.0, %v1299
        %v1301 = vpop.f32.mrf.mxu0
        %1302 = vmatprep.mubr.bf16.mxu0 0
        %1303 = vmatmul.mubr.bf16.gmra.mxu0 %v862
        %v1304 = vpop.f32.mrf.mxu0
        %v1305 = vadd.f32 0.0, %v1304
        %v1306 = vpop.f32.mrf.mxu0
        %v1307 = vpop.f32.mrf.mxu0
        %v1308 = vadd.f32 0.0, %v1307
        %v1309 = vpop.f32.mrf.mxu0
        %1310 = vmatprep.mubr.bf16.mxu0 0
        %1311 = vmatmul.mubr.bf16.gmra.mxu0 %v865
        %v1312 = vpop.f32.mrf.mxu0
        %v1313 = vadd.f32 0.0, %v1312
        %v1314 = vpop.f32.mrf.mxu0
        %v1315 = vpop.f32.mrf.mxu0
        %v1316 = vadd.f32 0.0, %v1315
        %v1317 = vpop.f32.mrf.mxu0
        %1318 = vmatprep.mubr.bf16.mxu0 0
        %1319 = vmatmul.mubr.bf16.gmra.mxu0 %v1107
        %v1320 = vpop.f32.mrf.mxu0
        %v1321 = vadd.f32 0.0, %v1320
        %v1322 = vpop.f32.mrf.mxu0
        %v1323 = vpop.f32.mrf.mxu0
        %v1324 = vadd.f32 0.0, %v1323
        %v1325 = vpop.f32.mrf.mxu0
        %1326 = vmatprep.mubr.bf16.mxu0 0
        %1327 = vmatmul.mubr.bf16.gmra.mxu0 %v1110
        %v1328 = vpop.f32.mrf.mxu0
        %v1329 = vadd.f32 0.0, %v1328
        %v1330 = vpop.f32.mrf.mxu0
        %v1331 = vpop.f32.mrf.mxu0
        %v1332 = vadd.f32 0.0, %v1331
        %v1333 = vpop.f32.mrf.mxu0
        %1334 = vmatprep.mubr.bf16.mxu0 0
        %1335 = vmatmul.mubr.bf16.gmra.mxu0 %v1113
        %v1336 = vpop.f32.mrf.mxu0
        %v1337 = vadd.f32 0.0, %v1336
        %v1338 = vpop.f32.mrf.mxu0
        %v1339 = vpop.f32.mrf.mxu0
        %v1340 = vadd.f32 0.0, %v1339
        %v1341 = vpop.f32.mrf.mxu0
        %1342 = vdwg.mxu0
        %v1343 = vadd.f32 %v905, %v1153
        %v1344 = vadd.f32 %v908, %v1156
        %v1345 = vadd.f32 %v913, %v1161
        %v1346 = vadd.f32 %v916, %v1164
        %v1347 = vadd.f32 %v921, %v1169
        %v1348 = vadd.f32 %v924, %v1172
        %v1349 = vadd.f32 %v929, %v1177
        %v1350 = vadd.f32 %v932, %v1180
        %v1351 = vadd.f32 %v937, %v1185
        %v1352 = vadd.f32 %v940, %v1188
        %v1353 = vadd.f32 %v945, %v1193
        %v1354 = vadd.f32 %v948, %v1196
        %v1355 = vadd.f32 %v953, %v1201
        %v1356 = vadd.f32 %v956, %v1204
        %v1357 = vadd.f32 %v961, %v1209
        %v1358 = vadd.f32 %v964, %v1212
        %v1359 = vadd.f32 %v969, %v1217
        %v1360 = vadd.f32 %v972, %v1220
        %v1361 = vadd.f32 %v977, %v1225
        %v1362 = vadd.f32 %v980, %v1228
        %v1363 = vadd.f32 %v985, %v1233
        %v1364 = vadd.f32 %v988, %v1236
        %v1365 = vadd.f32 %v993, %v1241
        %v1366 = vadd.f32 %v996, %v1244
        %v1367 = vadd.f32 %v1001, %v1249
        %v1368 = vadd.f32 %v1004, %v1252
        %v1369 = vadd.f32 %v1009, %v1257
        %v1370 = vadd.f32 %v1012, %v1260
        %v1371 = vadd.f32 %v1017, %v1265
        %v1372 = vadd.f32 %v1020, %v1268
        %v1373 = vadd.f32 %v1025, %v1273
        %v1374 = vadd.f32 %v1028, %v1276
        %v1375 = vadd.f32 %v1033, %v1281
        %v1376 = vadd.f32 %v1036, %v1284
        %v1377 = vadd.f32 %v1041, %v1289
        %v1378 = vadd.f32 %v1044, %v1292
        %v1379 = vadd.f32 %v1049, %v1297
        %v1380 = vadd.f32 %v1052, %v1300
        %v1381 = vadd.f32 %v1057, %v1305
        %v1382 = vadd.f32 %v1060, %v1308
        %v1383 = vadd.f32 %v1065, %v1313
        %v1384 = vadd.f32 %v1068, %v1316
        %v1385 = vadd.f32 %v1073, %v1321
        %v1386 = vadd.f32 %v1076, %v1324
        %v1387 = vadd.f32 %v1081, %v1329
        %v1388 = vadd.f32 %v1084, %v1332
        %v1389 = vadd.f32 %v1089, %v1337
        %v1390 = vadd.f32 %v1092, %v1340
        %v1391 = vld [vmem:[%s271] sm:$0xf]
        %v1392 = vld [vmem:[%s271 + $0x4] sm:$0xf]
        %v1393 = vld [vmem:[%s271 + $0x8] sm:$0xf]
        %v1394 = vld [vmem:[%s271 + $0xc] sm:$0xf]
        %v1395 = vld [vmem:[%s271 + $0x10] sm:$0xf]
        %v1396 = vld [vmem:[%s271 + $0x14] sm:$0xf]
        %v1397 = vld [vmem:[%s271 + $0x18] sm:$0xf]
        %v1398 = vld [vmem:[%s271 + $0x1c] sm:$0xf]
        %v1399 = vld [vmem:[%s271 + $0x20] sm:$0xf]
        %v1400 = vld [vmem:[%s271 + $0x24] sm:$0xf]
        %v1401 = vld [vmem:[%s271 + $0x28] sm:$0xf]
        %v1402 = vld [vmem:[%s271 + $0x2c] sm:$0xf]
        %v1403 = vld [vmem:[%s271 + $0x30] sm:$0xf]
        %v1404 = vld [vmem:[%s271 + $0x34] sm:$0xf]
        %v1405 = vld [vmem:[%s271 + $0x38] sm:$0xf]
        %v1406 = vld [vmem:[%s271 + $0x3c] sm:$0xf]
        %v1407 = vld [vmem:[%s271 + $0x40] sm:$0xf]
        %v1408 = vld [vmem:[%s271 + $0x44] sm:$0xf]
        %v1409 = vld [vmem:[%s271 + $0x48] sm:$0xf]
        %v1410 = vld [vmem:[%s271 + $0x4c] sm:$0xf]
        %v1411 = vld [vmem:[%s271 + $0x50] sm:$0xf]
        %v1412 = vld [vmem:[%s271 + $0x54] sm:$0xf]
        %v1413 = vld [vmem:[%s271 + $0x58] sm:$0xf]
        %v1414 = vld [vmem:[%s271 + $0x5c] sm:$0xf]
        %v1415 = vld [vmem:[%s271 + $0x60] sm:$0xf]
        %v1416 = vld [vmem:[%s271 + $0x64] sm:$0xf]
        %v1417 = vld [vmem:[%s271 + $0x68] sm:$0xf]
        %v1418 = vld [vmem:[%s271 + $0x6c] sm:$0xf]
        %v1419 = vld [vmem:[%s271 + $0x70] sm:$0xf]
        %v1420 = vld [vmem:[%s271 + $0x74] sm:$0xf]
        %v1421 = vld [vmem:[%s271 + $0x78] sm:$0xf]
        %v1422 = vld [vmem:[%s271 + $0x7c] sm:$0xf]
        %v1423 = vld [vmem:[%s271 + $0x80] sm:$0xf]
        %v1424 = vld [vmem:[%s271 + $0x84] sm:$0xf]
        %v1425 = vld [vmem:[%s271 + $0x88] sm:$0xf]
        %v1426 = vld [vmem:[%s271 + $0x8c] sm:$0xf]
        %v1427 = vld [vmem:[%s271 + $0x90] sm:$0xf]
        %v1428 = vld [vmem:[%s271 + $0x94] sm:$0xf]
        %v1429 = vld [vmem:[%s271 + $0x98] sm:$0xf]
        %v1430 = vld [vmem:[%s271 + $0x9c] sm:$0xf]
        %v1431 = vld [vmem:[%s271 + $0xa0] sm:$0xf]
        %v1432 = vld [vmem:[%s271 + $0xa4] sm:$0xf]
        %v1433 = vld [vmem:[%s271 + $0xa8] sm:$0xf]
        %v1434 = vld [vmem:[%s271 + $0xac] sm:$0xf]
        %v1435 = vld [vmem:[%s271 + $0xb0] sm:$0xf]
        %v1436 = vld [vmem:[%s271 + $0xb4] sm:$0xf]
        %v1437 = vld [vmem:[%s271 + $0xb8] sm:$0xf]
        %v1438 = vld [vmem:[%s271 + $0xbc] sm:$0xf]
        %v1439 = vld [vmem:[%s271 + $0xc0] sm:$0xf]
        %v1440 = vld [vmem:[%s271 + $0xc4] sm:$0xf]
        %v1441 = vld [vmem:[%s271 + $0xc8] sm:$0xf]
        %v1442 = vld [vmem:[%s271 + $0xcc] sm:$0xf]
        %v1443 = vld [vmem:[%s271 + $0xd0] sm:$0xf]
        %v1444 = vld [vmem:[%s271 + $0xd4] sm:$0xf]
        %v1445 = vld [vmem:[%s271 + $0xd8] sm:$0x1]
        %s1446 = scalar_lea.vmem %s275, 2
        %v1447 = vld [vmem:[%s1446] sm:$0x3]
        %v1497 = vunpack.c.l.b16 %v1391
        %v1498 = vunpack.c.l.b16 %v1392
        %v1499 = vunpack.c.l.b16 %v1393
        %v1500 = vunpack.c.l.b16 %v1394
        %v1501 = vunpack.c.l.b16 %v1395
        %v1502 = vunpack.c.l.b16 %v1396
        %v1503 = vunpack.c.l.b16 %v1397
        %v1504 = vunpack.c.l.b16 %v1398
        %v1505 = vunpack.c.l.b16 %v1399
        %v1506 = vunpack.c.l.b16 %v1400
        %v1507 = vunpack.c.l.b16 %v1401
        %v1508 = vunpack.c.l.b16 %v1402
        %v1509 = vunpack.c.l.b16 %v1403
        %v1510 = vunpack.c.l.b16 %v1404
        %v1511 = vunpack.c.l.b16 %v1405
        %v1512 = vunpack.c.l.b16 %v1406
        %v1513 = vunpack.c.l.b16 %v1407
        %v1514 = vunpack.c.l.b16 %v1408
        %v1515 = vunpack.c.l.b16 %v1409
        %v1516 = vunpack.c.l.b16 %v1410
        %v1517 = vunpack.c.l.b16 %v1411
        %v1518 = vunpack.c.l.b16 %v1412
        %v1519 = vunpack.c.l.b16 %v1413
        %v1520 = vunpack.c.l.b16 %v1414
        %v1521 = vunpack.c.l.b16 %v1415
        %v1522 = vunpack.c.l.b16 %v1416
        %v1523 = vunpack.c.l.b16 %v1417
        %v1524 = vunpack.c.l.b16 %v1418
        %v1525 = vunpack.c.l.b16 %v1419
        %v1526 = vunpack.c.l.b16 %v1420
        %v1527 = vunpack.c.l.b16 %v1421
        %v1528 = vunpack.c.l.b16 %v1422
        %v1529 = vunpack.c.l.b16 %v1423
        %v1530 = vunpack.c.l.b16 %v1424
        %v1531 = vunpack.c.l.b16 %v1425
        %v1532 = vunpack.c.l.b16 %v1426
        %v1533 = vunpack.c.l.b16 %v1427
        %v1534 = vunpack.c.l.b16 %v1428
        %v1535 = vunpack.c.l.b16 %v1429
        %v1536 = vunpack.c.l.b16 %v1430
        %v1537 = vunpack.c.l.b16 %v1431
        %v1538 = vunpack.c.l.b16 %v1432
        %v1539 = vunpack.c.l.b16 %v1433
        %v1540 = vunpack.c.l.b16 %v1434
        %v1541 = vunpack.c.l.b16 %v1435
        %v1542 = vunpack.c.l.b16 %v1436
        %v1543 = vunpack.c.l.b16 %v1437
        %v1544 = vunpack.c.l.b16 %v1438
        %v1545 = vunpack.c.l.b16 %v1439
        %v1546 = vpack.c.b16 %v1498, %v1497
        %v1547 = vpack.c.b16 %v1500, %v1499
        %v1548 = vpack.c.b16 %v1502, %v1501
        %v1549 = vpack.c.b16 %v1504, %v1503
        %v1550 = vpack.c.b16 %v1506, %v1505
        %v1551 = vpack.c.b16 %v1508, %v1507
        %v1552 = vpack.c.b16 %v1510, %v1509
        %v1553 = vpack.c.b16 %v1512, %v1511
        %v1554 = vpack.c.b16 %v1514, %v1513
        %v1555 = vpack.c.b16 %v1516, %v1515
        %v1556 = vpack.c.b16 %v1518, %v1517
        %v1557 = vpack.c.b16 %v1520, %v1519
        %v1558 = vpack.c.b16 %v1522, %v1521
        %v1559 = vpack.c.b16 %v1524, %v1523
        %v1560 = vpack.c.b16 %v1526, %v1525
        %v1561 = vpack.c.b16 %v1528, %v1527
        %v1562 = vpack.c.b16 %v1530, %v1529
        %v1563 = vpack.c.b16 %v1532, %v1531
        %v1564 = vpack.c.b16 %v1534, %v1533
        %v1565 = vpack.c.b16 %v1536, %v1535
        %v1566 = vpack.c.b16 %v1538, %v1537
        %v1567 = vpack.c.b16 %v1540, %v1539
        %v1568 = vpack.c.b16 %v1542, %v1541
        %v1569 = vpack.c.b16 %v1544, %v1543
        %v1570 = vpack.c.b16 %v1545, %v1545
        %vm1571 = vsmask.f32 7424
        %v1573 = vshrl.u32 %v1546, 16
        %v1575 = vshll.u32 %v1546, 16
        %v1577 = vrot.slane %v1575, 1
        %v1578 = vor.u32 %v1573, %v1577
        %v1580 = vshll.u32 %v1547, 16
        %v1582 = vrot.slane %v1580, 1
        %v1583 = vsel %vm1571, %v1578, %v1582
        %v1584 = vshrl.u32 %v1547, 16
        %v1586 = vor.u32 %v1584, %v1582
        %v1588 = vshll.u32 %v1548, 16
        %v1590 = vrot.slane %v1588, 1
        %v1591 = vsel %vm1571, %v1586, %v1590
        %v1592 = vshrl.u32 %v1548, 16
        %v1594 = vor.u32 %v1592, %v1590
        %v1596 = vshll.u32 %v1549, 16
        %v1598 = vrot.slane %v1596, 1
        %v1599 = vsel %vm1571, %v1594, %v1598
        %v1600 = vshrl.u32 %v1549, 16
        %v1602 = vor.u32 %v1600, %v1598
        %v1604 = vshll.u32 %v1550, 16
        %v1606 = vrot.slane %v1604, 1
        %v1607 = vsel %vm1571, %v1602, %v1606
        %v1608 = vshrl.u32 %v1550, 16
        %v1610 = vor.u32 %v1608, %v1606
        %v1612 = vshll.u32 %v1551, 16
        %v1614 = vrot.slane %v1612, 1
        %v1615 = vsel %vm1571, %v1610, %v1614
        %v1616 = vshrl.u32 %v1551, 16
        %v1618 = vor.u32 %v1616, %v1614
        %v1620 = vshll.u32 %v1552, 16
        %v1622 = vrot.slane %v1620, 1
        %v1623 = vsel %vm1571, %v1618, %v1622
        %v1624 = vshrl.u32 %v1552, 16
        %v1626 = vor.u32 %v1624, %v1622
        %v1628 = vshll.u32 %v1553, 16
        %v1630 = vrot.slane %v1628, 1
        %v1631 = vsel %vm1571, %v1626, %v1630
        %v1632 = vshrl.u32 %v1553, 16
        %v1634 = vor.u32 %v1632, %v1630
        %v1636 = vshll.u32 %v1554, 16
        %v1638 = vrot.slane %v1636, 1
        %v1639 = vsel %vm1571, %v1634, %v1638
        %v1640 = vshrl.u32 %v1554, 16
        %v1642 = vor.u32 %v1640, %v1638
        %v1644 = vshll.u32 %v1555, 16
        %v1646 = vrot.slane %v1644, 1
        %v1647 = vsel %vm1571, %v1642, %v1646
        %v1648 = vshrl.u32 %v1555, 16
        %v1650 = vor.u32 %v1648, %v1646
        %v1652 = vshll.u32 %v1556, 16
        %v1654 = vrot.slane %v1652, 1
        %v1655 = vsel %vm1571, %v1650, %v1654
        %v1656 = vshrl.u32 %v1556, 16
        %v1658 = vor.u32 %v1656, %v1654
        %v1660 = vshll.u32 %v1557, 16
        %v1662 = vrot.slane %v1660, 1
        %v1663 = vsel %vm1571, %v1658, %v1662
        %v1664 = vshrl.u32 %v1557, 16
        %v1666 = vor.u32 %v1664, %v1662
        %v1668 = vshll.u32 %v1558, 16
        %v1670 = vrot.slane %v1668, 1
        %v1671 = vsel %vm1571, %v1666, %v1670
        %v1672 = vshrl.u32 %v1558, 16
        %v1674 = vor.u32 %v1672, %v1670
        %v1676 = vshll.u32 %v1559, 16
        %v1678 = vrot.slane %v1676, 1
        %v1679 = vsel %vm1571, %v1674, %v1678
        %v1680 = vshrl.u32 %v1559, 16
        %v1682 = vor.u32 %v1680, %v1678
        %v1684 = vshll.u32 %v1560, 16
        %v1686 = vrot.slane %v1684, 1
        %v1687 = vsel %vm1571, %v1682, %v1686
        %v1688 = vshrl.u32 %v1560, 16
        %v1690 = vor.u32 %v1688, %v1686
        %v1692 = vshll.u32 %v1561, 16
        %v1694 = vrot.slane %v1692, 1
        %v1695 = vsel %vm1571, %v1690, %v1694
        %v1696 = vshrl.u32 %v1561, 16
        %v1698 = vor.u32 %v1696, %v1694
        %v1700 = vshll.u32 %v1562, 16
        %v1702 = vrot.slane %v1700, 1
        %v1703 = vsel %vm1571, %v1698, %v1702
        %v1704 = vshrl.u32 %v1562, 16
        %v1706 = vor.u32 %v1704, %v1702
        %v1708 = vshll.u32 %v1563, 16
        %v1710 = vrot.slane %v1708, 1
        %v1711 = vsel %vm1571, %v1706, %v1710
        %v1712 = vshrl.u32 %v1563, 16
        %v1714 = vor.u32 %v1712, %v1710
        %v1716 = vshll.u32 %v1564, 16
        %v1718 = vrot.slane %v1716, 1
        %v1719 = vsel %vm1571, %v1714, %v1718
        %v1720 = vshrl.u32 %v1564, 16
        %v1722 = vor.u32 %v1720, %v1718
        %v1724 = vshll.u32 %v1565, 16
        %v1726 = vrot.slane %v1724, 1
        %v1727 = vsel %vm1571, %v1722, %v1726
        %v1728 = vshrl.u32 %v1565, 16
        %v1730 = vor.u32 %v1728, %v1726
        %v1732 = vshll.u32 %v1566, 16
        %v1734 = vrot.slane %v1732, 1
        %v1735 = vsel %vm1571, %v1730, %v1734
        %v1736 = vshrl.u32 %v1566, 16
        %v1738 = vor.u32 %v1736, %v1734
        %v1740 = vshll.u32 %v1567, 16
        %v1742 = vrot.slane %v1740, 1
        %v1743 = vsel %vm1571, %v1738, %v1742
        %v1744 = vshrl.u32 %v1567, 16
        %v1746 = vor.u32 %v1744, %v1742
        %v1748 = vshll.u32 %v1568, 16
        %v1750 = vrot.slane %v1748, 1
        %v1751 = vsel %vm1571, %v1746, %v1750
        %v1752 = vshrl.u32 %v1568, 16
        %v1754 = vor.u32 %v1752, %v1750
        %v1756 = vshll.u32 %v1569, 16
        %v1758 = vrot.slane %v1756, 1
        %v1759 = vsel %vm1571, %v1754, %v1758
        %v1760 = vshrl.u32 %v1569, 16
        %v1762 = vor.u32 %v1760, %v1758
        %v1764 = vshll.u32 %v1570, 16
        %v1766 = vrot.slane %v1764, 1
        %v1767 = vsel %vm1571, %v1762, %v1766
        %v1769 = vsel %vm460, %v1583, 0
        %v1772 = vsel %vm460, %v1591, 0
        %v1775 = vsel %vm460, %v1599, 0
        %v1778 = vsel %vm460, %v1607, 0
        %v1781 = vsel %vm460, %v1615, 0
        %v1784 = vsel %vm460, %v1623, 0
        %v1787 = vsel %vm460, %v1631, 0
        %v1790 = vsel %vm460, %v1639, 0
        %v1793 = vsel %vm460, %v1647, 0
        %v1796 = vsel %vm460, %v1655, 0
        %v1799 = vsel %vm460, %v1663, 0
        %v1802 = vsel %vm460, %v1671, 0
        %v1805 = vsel %vm460, %v1679, 0
        %v1808 = vsel %vm460, %v1687, 0
        %v1811 = vsel %vm460, %v1695, 0
        %v1814 = vsel %vm460, %v1703, 0
        %v1817 = vsel %vm460, %v1711, 0
        %v1820 = vsel %vm460, %v1719, 0
        %v1823 = vsel %vm460, %v1727, 0
        %v1826 = vsel %vm460, %v1735, 0
        %v1829 = vsel %vm460, %v1743, 0
        %v1832 = vsel %vm460, %v1751, 0
        %v1835 = vsel %vm460, %v1759, 0
        %v1838 = vsel %vm460, %v1767, 0
        %v1841 = vand.u32 %v1447, %v536
        %1843 = vmatprep.subr.bf16.mxu0 0
        %1844 = vmatpush1.bf16.msra.mxu0 0
        %1845 = vmatprep.subr.bf16.mxu0 0
        %1846 = vmatpush1.bf16.msra.mxu0 0
        %1847 = vmatprep.subr.bf16.mxu0 0
        %1848 = vmatpush1.bf16.msra.mxu0 0
        %1849 = vmatprep.subr.bf16.mxu0 0
        %1850 = vmatpush1.bf16.msra.mxu0 0
        %1851 = vmatprep.subr.bf16.mxu0 0
        %1852 = vmatpush1.bf16.msra.mxu0 0
        %1853 = vmatprep.subr.bf16.mxu0 0
        %1854 = vmatpush1.bf16.msra.mxu0 0
        %1855 = vmatprep.subr.bf16.mxu0 0
        %1856 = vmatpush1.bf16.msra.mxu0 0
        %1857 = vmatprep.subr.bf16.mxu0 0
        %1858 = vmatpush1.bf16.msra.mxu0 %v1841
        %1859 = vmatprep.subr.bf16.mxu0 0
        %1860 = vmatpush2.bf16.msra.mxu0 0
        %1861 = vmatprep.subr.bf16.mxu0 0
        %1862 = vmatpush2.bf16.msra.mxu0 0
        %1863 = vmatprep.subr.bf16.mxu0 0
        %1864 = vmatpush2.bf16.msra.mxu0 0
        %1865 = vmatprep.subr.bf16.mxu0 0
        %1866 = vmatpush2.bf16.msra.mxu0 0
        %1867 = vmatprep.subr.bf16.mxu0 0
        %1868 = vmatpush2.bf16.msra.mxu0 0
        %1869 = vmatprep.subr.bf16.mxu0 0
        %1870 = vmatpush2.bf16.msra.mxu0 0
        %1871 = vmatprep.subr.bf16.mxu0 0
        %1872 = vmatpush2.bf16.msra.mxu0 0
        %1873 = vmatprep.subr.bf16.mxu0 0
        %1874 = vmatpush2.bf16.msra.mxu0 0
        %1875 = vmatprep.mubr.bf16.mxu0 0
        %1876 = vmatmul.mubr.bf16.gmra.mxu0 %v1769
        %v1877 = vpop.f32.mrf.mxu0
        %v1878 = vadd.f32 0.0, %v1877
        %v1879 = vpop.f32.mrf.mxu0
        %v1880 = vpop.f32.mrf.mxu0
        %v1881 = vadd.f32 0.0, %v1880
        %v1882 = vpop.f32.mrf.mxu0
        %1883 = vmatprep.mubr.bf16.mxu0 0
        %1884 = vmatmul.mubr.bf16.gmra.mxu0 %v1772
        %v1885 = vpop.f32.mrf.mxu0
        %v1886 = vadd.f32 0.0, %v1885
        %v1887 = vpop.f32.mrf.mxu0
        %v1888 = vpop.f32.mrf.mxu0
        %v1889 = vadd.f32 0.0, %v1888
        %v1890 = vpop.f32.mrf.mxu0
        %1891 = vmatprep.mubr.bf16.mxu0 0
        %1892 = vmatmul.mubr.bf16.gmra.mxu0 %v1775
        %v1893 = vpop.f32.mrf.mxu0
        %v1894 = vadd.f32 0.0, %v1893
        %v1895 = vpop.f32.mrf.mxu0
        %v1896 = vpop.f32.mrf.mxu0
        %v1897 = vadd.f32 0.0, %v1896
        %v1898 = vpop.f32.mrf.mxu0
        %1899 = vmatprep.mubr.bf16.mxu0 0
        %1900 = vmatmul.mubr.bf16.gmra.mxu0 %v1778
        %v1901 = vpop.f32.mrf.mxu0
        %v1902 = vadd.f32 0.0, %v1901
        %v1903 = vpop.f32.mrf.mxu0
        %v1904 = vpop.f32.mrf.mxu0
        %v1905 = vadd.f32 0.0, %v1904
        %v1906 = vpop.f32.mrf.mxu0
        %1907 = vmatprep.mubr.bf16.mxu0 0
        %1908 = vmatmul.mubr.bf16.gmra.mxu0 %v1781
        %v1909 = vpop.f32.mrf.mxu0
        %v1910 = vadd.f32 0.0, %v1909
        %v1911 = vpop.f32.mrf.mxu0
        %v1912 = vpop.f32.mrf.mxu0
        %v1913 = vadd.f32 0.0, %v1912
        %v1914 = vpop.f32.mrf.mxu0
        %1915 = vmatprep.mubr.bf16.mxu0 0
        %1916 = vmatmul.mubr.bf16.gmra.mxu0 %v1784
        %v1917 = vpop.f32.mrf.mxu0
        %v1918 = vadd.f32 0.0, %v1917
        %v1919 = vpop.f32.mrf.mxu0
        %v1920 = vpop.f32.mrf.mxu0
        %v1921 = vadd.f32 0.0, %v1920
        %v1922 = vpop.f32.mrf.mxu0
        %1923 = vmatprep.mubr.bf16.mxu0 0
        %1924 = vmatmul.mubr.bf16.gmra.mxu0 %v1787
        %v1925 = vpop.f32.mrf.mxu0
        %v1926 = vadd.f32 0.0, %v1925
        %v1927 = vpop.f32.mrf.mxu0
        %v1928 = vpop.f32.mrf.mxu0
        %v1929 = vadd.f32 0.0, %v1928
        %v1930 = vpop.f32.mrf.mxu0
        %1931 = vmatprep.mubr.bf16.mxu0 0
        %1932 = vmatmul.mubr.bf16.gmra.mxu0 %v1790
        %v1933 = vpop.f32.mrf.mxu0
        %v1934 = vadd.f32 0.0, %v1933
        %v1935 = vpop.f32.mrf.mxu0
        %v1936 = vpop.f32.mrf.mxu0
        %v1937 = vadd.f32 0.0, %v1936
        %v1938 = vpop.f32.mrf.mxu0
        %1939 = vmatprep.mubr.bf16.mxu0 0
        %1940 = vmatmul.mubr.bf16.gmra.mxu0 %v1793
        %v1941 = vpop.f32.mrf.mxu0
        %v1942 = vadd.f32 0.0, %v1941
        %v1943 = vpop.f32.mrf.mxu0
        %v1944 = vpop.f32.mrf.mxu0
        %v1945 = vadd.f32 0.0, %v1944
        %v1946 = vpop.f32.mrf.mxu0
        %1947 = vmatprep.mubr.bf16.mxu0 0
        %1948 = vmatmul.mubr.bf16.gmra.mxu0 %v1796
        %v1949 = vpop.f32.mrf.mxu0
        %v1950 = vadd.f32 0.0, %v1949
        %v1951 = vpop.f32.mrf.mxu0
        %v1952 = vpop.f32.mrf.mxu0
        %v1953 = vadd.f32 0.0, %v1952
        %v1954 = vpop.f32.mrf.mxu0
        %1955 = vmatprep.mubr.bf16.mxu0 0
        %1956 = vmatmul.mubr.bf16.gmra.mxu0 %v1799
        %v1957 = vpop.f32.mrf.mxu0
        %v1958 = vadd.f32 0.0, %v1957
        %v1959 = vpop.f32.mrf.mxu0
        %v1960 = vpop.f32.mrf.mxu0
        %v1961 = vadd.f32 0.0, %v1960
        %v1962 = vpop.f32.mrf.mxu0
        %1963 = vmatprep.mubr.bf16.mxu0 0
        %1964 = vmatmul.mubr.bf16.gmra.mxu0 %v1802
        %v1965 = vpop.f32.mrf.mxu0
        %v1966 = vadd.f32 0.0, %v1965
        %v1967 = vpop.f32.mrf.mxu0
        %v1968 = vpop.f32.mrf.mxu0
        %v1969 = vadd.f32 0.0, %v1968
        %v1970 = vpop.f32.mrf.mxu0
        %1971 = vmatprep.mubr.bf16.mxu0 0
        %1972 = vmatmul.mubr.bf16.gmra.mxu0 %v1805
        %v1973 = vpop.f32.mrf.mxu0
        %v1974 = vadd.f32 0.0, %v1973
        %v1975 = vpop.f32.mrf.mxu0
        %v1976 = vpop.f32.mrf.mxu0
        %v1977 = vadd.f32 0.0, %v1976
        %v1978 = vpop.f32.mrf.mxu0
        %1979 = vmatprep.mubr.bf16.mxu0 0
        %1980 = vmatmul.mubr.bf16.gmra.mxu0 %v1808
        %v1981 = vpop.f32.mrf.mxu0
        %v1982 = vadd.f32 0.0, %v1981
        %v1983 = vpop.f32.mrf.mxu0
        %v1984 = vpop.f32.mrf.mxu0
        %v1985 = vadd.f32 0.0, %v1984
        %v1986 = vpop.f32.mrf.mxu0
        %1987 = vmatprep.mubr.bf16.mxu0 0
        %1988 = vmatmul.mubr.bf16.gmra.mxu0 %v1811
        %v1989 = vpop.f32.mrf.mxu0
        %v1990 = vadd.f32 0.0, %v1989
        %v1991 = vpop.f32.mrf.mxu0
        %v1992 = vpop.f32.mrf.mxu0
        %v1993 = vadd.f32 0.0, %v1992
        %v1994 = vpop.f32.mrf.mxu0
        %1995 = vmatprep.mubr.bf16.mxu0 0
        %1996 = vmatmul.mubr.bf16.gmra.mxu0 %v1814
        %v1997 = vpop.f32.mrf.mxu0
        %v1998 = vadd.f32 0.0, %v1997
        %v1999 = vpop.f32.mrf.mxu0
        %v2000 = vpop.f32.mrf.mxu0
        %v2001 = vadd.f32 0.0, %v2000
        %v2002 = vpop.f32.mrf.mxu0
        %2003 = vmatprep.mubr.bf16.mxu0 0
        %2004 = vmatmul.mubr.bf16.gmra.mxu0 %v1817
        %v2005 = vpop.f32.mrf.mxu0
        %v2006 = vadd.f32 0.0, %v2005
        %v2007 = vpop.f32.mrf.mxu0
        %v2008 = vpop.f32.mrf.mxu0
        %v2009 = vadd.f32 0.0, %v2008
        %v2010 = vpop.f32.mrf.mxu0
        %2011 = vmatprep.mubr.bf16.mxu0 0
        %2012 = vmatmul.mubr.bf16.gmra.mxu0 %v1820
        %v2013 = vpop.f32.mrf.mxu0
        %v2014 = vadd.f32 0.0, %v2013
        %v2015 = vpop.f32.mrf.mxu0
        %v2016 = vpop.f32.mrf.mxu0
        %v2017 = vadd.f32 0.0, %v2016
        %v2018 = vpop.f32.mrf.mxu0
        %2019 = vmatprep.mubr.bf16.mxu0 0
        %2020 = vmatmul.mubr.bf16.gmra.mxu0 %v1823
        %v2021 = vpop.f32.mrf.mxu0
        %v2022 = vadd.f32 0.0, %v2021
        %v2023 = vpop.f32.mrf.mxu0
        %v2024 = vpop.f32.mrf.mxu0
        %v2025 = vadd.f32 0.0, %v2024
        %v2026 = vpop.f32.mrf.mxu0
        %2027 = vmatprep.mubr.bf16.mxu0 0
        %2028 = vmatmul.mubr.bf16.gmra.mxu0 %v1826
        %v2029 = vpop.f32.mrf.mxu0
        %v2030 = vadd.f32 0.0, %v2029
        %v2031 = vpop.f32.mrf.mxu0
        %v2032 = vpop.f32.mrf.mxu0
        %v2033 = vadd.f32 0.0, %v2032
        %v2034 = vpop.f32.mrf.mxu0
        %2035 = vmatprep.mubr.bf16.mxu0 0
        %2036 = vmatmul.mubr.bf16.gmra.mxu0 %v1829
        %v2037 = vpop.f32.mrf.mxu0
        %v2038 = vadd.f32 0.0, %v2037
        %v2039 = vpop.f32.mrf.mxu0
        %v2040 = vpop.f32.mrf.mxu0
        %v2041 = vadd.f32 0.0, %v2040
        %v2042 = vpop.f32.mrf.mxu0
        %2043 = vmatprep.mubr.bf16.mxu0 0
        %2044 = vmatmul.mubr.bf16.gmra.mxu0 %v1832
        %v2045 = vpop.f32.mrf.mxu0
        %v2046 = vadd.f32 0.0, %v2045
        %v2047 = vpop.f32.mrf.mxu0
        %v2048 = vpop.f32.mrf.mxu0
        %v2049 = vadd.f32 0.0, %v2048
        %v2050 = vpop.f32.mrf.mxu0
        %2051 = vmatprep.mubr.bf16.mxu0 0
        %2052 = vmatmul.mubr.bf16.gmra.mxu0 %v1835
        %v2053 = vpop.f32.mrf.mxu0
        %v2054 = vadd.f32 0.0, %v2053
        %v2055 = vpop.f32.mrf.mxu0
        %v2056 = vpop.f32.mrf.mxu0
        %v2057 = vadd.f32 0.0, %v2056
        %v2058 = vpop.f32.mrf.mxu0
        %2059 = vmatprep.mubr.bf16.mxu0 0
        %2060 = vmatmul.mubr.bf16.gmra.mxu0 %v1838
        %v2061 = vpop.f32.mrf.mxu0
        %v2062 = vadd.f32 0.0, %v2061
        %v2063 = vpop.f32.mrf.mxu0
        %v2064 = vpop.f32.mrf.mxu0
        %v2065 = vadd.f32 0.0, %v2064
        %v2066 = vpop.f32.mrf.mxu0
        %2067 = vdwg.mxu0
        %v2068 = vadd.f32 %v1343, %v1878
        %v2069 = vadd.f32 %v1344, %v1881
        %v2070 = vadd.f32 %v1345, %v1886
        %v2071 = vadd.f32 %v1346, %v1889
        %v2072 = vadd.f32 %v1347, %v1894
        %v2073 = vadd.f32 %v1348, %v1897
        %v2074 = vadd.f32 %v1349, %v1902
        %v2075 = vadd.f32 %v1350, %v1905
        %v2076 = vadd.f32 %v1351, %v1910
        %v2077 = vadd.f32 %v1352, %v1913
        %v2078 = vadd.f32 %v1353, %v1918
        %v2079 = vadd.f32 %v1354, %v1921
        %v2080 = vadd.f32 %v1355, %v1926
        %v2081 = vadd.f32 %v1356, %v1929
        %v2082 = vadd.f32 %v1357, %v1934
        %v2083 = vadd.f32 %v1358, %v1937
        %v2084 = vadd.f32 %v1359, %v1942
        %v2085 = vadd.f32 %v1360, %v1945
        %v2086 = vadd.f32 %v1361, %v1950
        %v2087 = vadd.f32 %v1362, %v1953
        %v2088 = vadd.f32 %v1363, %v1958
        %v2089 = vadd.f32 %v1364, %v1961
        %v2090 = vadd.f32 %v1365, %v1966
        %v2091 = vadd.f32 %v1366, %v1969
        %v2092 = vadd.f32 %v1367, %v1974
        %v2093 = vadd.f32 %v1368, %v1977
        %v2094 = vadd.f32 %v1369, %v1982
        %v2095 = vadd.f32 %v1370, %v1985
        %v2096 = vadd.f32 %v1371, %v1990
        %v2097 = vadd.f32 %v1372, %v1993
        %v2098 = vadd.f32 %v1373, %v1998
        %v2099 = vadd.f32 %v1374, %v2001
        %v2100 = vadd.f32 %v1375, %v2006
        %v2101 = vadd.f32 %v1376, %v2009
        %v2102 = vadd.f32 %v1377, %v2014
        %v2103 = vadd.f32 %v1378, %v2017
        %v2104 = vadd.f32 %v1379, %v2022
        %v2105 = vadd.f32 %v1380, %v2025
        %v2106 = vadd.f32 %v1381, %v2030
        %v2107 = vadd.f32 %v1382, %v2033
        %v2108 = vadd.f32 %v1383, %v2038
        %v2109 = vadd.f32 %v1384, %v2041
        %v2110 = vadd.f32 %v1385, %v2046
        %v2111 = vadd.f32 %v1386, %v2049
        %v2112 = vadd.f32 %v1387, %v2054
        %v2113 = vadd.f32 %v1388, %v2057
        %v2114 = vadd.f32 %v1389, %v2062
        %v2115 = vadd.f32 %v1390, %v2065
        %s2116 = scalar_lea.vmem %s275, 8
        %v2117 = vld [vmem:[%s2116] sm:$0x3]
        %v2121 = vunpack.c.l.b16 %v1440
        %v2122 = vunpack.c.l.b16 %v1441
        %v2123 = vunpack.c.l.b16 %v1442
        %v2124 = vpack.c.b16 %v1501, %v1500
        %v2125 = vpack.c.b16 %v1503, %v1502
        %v2126 = vpack.c.b16 %v1505, %v1504
        %v2127 = vpack.c.b16 %v1507, %v1506
        %v2128 = vpack.c.b16 %v1509, %v1508
        %v2129 = vpack.c.b16 %v1511, %v1510
        %v2130 = vpack.c.b16 %v1513, %v1512
        %v2131 = vpack.c.b16 %v1515, %v1514
        %v2132 = vpack.c.b16 %v1517, %v1516
        %v2133 = vpack.c.b16 %v1519, %v1518
        %v2134 = vpack.c.b16 %v1521, %v1520
        %v2135 = vpack.c.b16 %v1523, %v1522
        %v2136 = vpack.c.b16 %v1525, %v1524
        %v2137 = vpack.c.b16 %v1527, %v1526
        %v2138 = vpack.c.b16 %v1529, %v1528
        %v2139 = vpack.c.b16 %v1531, %v1530
        %v2140 = vpack.c.b16 %v1533, %v1532
        %v2141 = vpack.c.b16 %v1535, %v1534
        %v2142 = vpack.c.b16 %v1537, %v1536
        %v2143 = vpack.c.b16 %v1539, %v1538
        %v2144 = vpack.c.b16 %v1541, %v1540
        %v2145 = vpack.c.b16 %v1543, %v1542
        %v2146 = vpack.c.b16 %v1545, %v1544
        %v2147 = vpack.c.b16 %v2122, %v2121
        %v2148 = vpack.c.b16 %v2123, %v2123
        %v2150 = vshrl.u32 %v2124, 16
        %v2152 = vshll.u32 %v2124, 16
        %v2154 = vrot.slane %v2152, 1
        %v2155 = vor.u32 %v2150, %v2154
        %v2157 = vshll.u32 %v2125, 16
        %v2159 = vrot.slane %v2157, 1
        %v2160 = vsel %vm1571, %v2155, %v2159
        %v2161 = vshrl.u32 %v2125, 16
        %v2163 = vor.u32 %v2161, %v2159
        %v2165 = vshll.u32 %v2126, 16
        %v2167 = vrot.slane %v2165, 1
        %v2168 = vsel %vm1571, %v2163, %v2167
        %v2169 = vshrl.u32 %v2126, 16
        %v2171 = vor.u32 %v2169, %v2167
        %v2173 = vshll.u32 %v2127, 16
        %v2175 = vrot.slane %v2173, 1
        %v2176 = vsel %vm1571, %v2171, %v2175
        %v2177 = vshrl.u32 %v2127, 16
        %v2179 = vor.u32 %v2177, %v2175
        %v2181 = vshll.u32 %v2128, 16
        %v2183 = vrot.slane %v2181, 1
        %v2184 = vsel %vm1571, %v2179, %v2183
        %v2185 = vshrl.u32 %v2128, 16
        %v2187 = vor.u32 %v2185, %v2183
        %v2189 = vshll.u32 %v2129, 16
        %v2191 = vrot.slane %v2189, 1
        %v2192 = vsel %vm1571, %v2187, %v2191
        %v2193 = vshrl.u32 %v2129, 16
        %v2195 = vor.u32 %v2193, %v2191
        %v2197 = vshll.u32 %v2130, 16
        %v2199 = vrot.slane %v2197, 1
        %v2200 = vsel %vm1571, %v2195, %v2199
        %v2201 = vshrl.u32 %v2130, 16
        %v2203 = vor.u32 %v2201, %v2199
        %v2205 = vshll.u32 %v2131, 16
        %v2207 = vrot.slane %v2205, 1
        %v2208 = vsel %vm1571, %v2203, %v2207
        %v2209 = vshrl.u32 %v2131, 16
        %v2211 = vor.u32 %v2209, %v2207
        %v2213 = vshll.u32 %v2132, 16
        %v2215 = vrot.slane %v2213, 1
        %v2216 = vsel %vm1571, %v2211, %v2215
        %v2217 = vshrl.u32 %v2132, 16
        %v2219 = vor.u32 %v2217, %v2215
        %v2221 = vshll.u32 %v2133, 16
        %v2223 = vrot.slane %v2221, 1
        %v2224 = vsel %vm1571, %v2219, %v2223
        %v2225 = vshrl.u32 %v2133, 16
        %v2227 = vor.u32 %v2225, %v2223
        %v2229 = vshll.u32 %v2134, 16
        %v2231 = vrot.slane %v2229, 1
        %v2232 = vsel %vm1571, %v2227, %v2231
        %v2233 = vshrl.u32 %v2134, 16
        %v2235 = vor.u32 %v2233, %v2231
        %v2237 = vshll.u32 %v2135, 16
        %v2239 = vrot.slane %v2237, 1
        %v2240 = vsel %vm1571, %v2235, %v2239
        %v2241 = vshrl.u32 %v2135, 16
        %v2243 = vor.u32 %v2241, %v2239
        %v2245 = vshll.u32 %v2136, 16
        %v2247 = vrot.slane %v2245, 1
        %v2248 = vsel %vm1571, %v2243, %v2247
        %v2249 = vshrl.u32 %v2136, 16
        %v2251 = vor.u32 %v2249, %v2247
        %v2253 = vshll.u32 %v2137, 16
        %v2255 = vrot.slane %v2253, 1
        %v2256 = vsel %vm1571, %v2251, %v2255
        %v2257 = vshrl.u32 %v2137, 16
        %v2259 = vor.u32 %v2257, %v2255
        %v2261 = vshll.u32 %v2138, 16
        %v2263 = vrot.slane %v2261, 1
        %v2264 = vsel %vm1571, %v2259, %v2263
        %v2265 = vshrl.u32 %v2138, 16
        %v2267 = vor.u32 %v2265, %v2263
        %v2269 = vshll.u32 %v2139, 16
        %v2271 = vrot.slane %v2269, 1
        %v2272 = vsel %vm1571, %v2267, %v2271
        %v2273 = vshrl.u32 %v2139, 16
        %v2275 = vor.u32 %v2273, %v2271
        %v2277 = vshll.u32 %v2140, 16
        %v2279 = vrot.slane %v2277, 1
        %v2280 = vsel %vm1571, %v2275, %v2279
        %v2281 = vshrl.u32 %v2140, 16
        %v2283 = vor.u32 %v2281, %v2279
        %v2285 = vshll.u32 %v2141, 16
        %v2287 = vrot.slane %v2285, 1
        %v2288 = vsel %vm1571, %v2283, %v2287
        %v2289 = vshrl.u32 %v2141, 16
        %v2291 = vor.u32 %v2289, %v2287
        %v2293 = vshll.u32 %v2142, 16
        %v2295 = vrot.slane %v2293, 1
        %v2296 = vsel %vm1571, %v2291, %v2295
        %v2297 = vshrl.u32 %v2142, 16
        %v2299 = vor.u32 %v2297, %v2295
        %v2301 = vshll.u32 %v2143, 16
        %v2303 = vrot.slane %v2301, 1
        %v2304 = vsel %vm1571, %v2299, %v2303
        %v2305 = vshrl.u32 %v2143, 16
        %v2307 = vor.u32 %v2305, %v2303
        %v2309 = vshll.u32 %v2144, 16
        %v2311 = vrot.slane %v2309, 1
        %v2312 = vsel %vm1571, %v2307, %v2311
        %v2313 = vshrl.u32 %v2144, 16
        %v2315 = vor.u32 %v2313, %v2311
        %v2317 = vshll.u32 %v2145, 16
        %v2319 = vrot.slane %v2317, 1
        %v2320 = vsel %vm1571, %v2315, %v2319
        %v2321 = vshrl.u32 %v2145, 16
        %v2323 = vor.u32 %v2321, %v2319
        %v2325 = vshll.u32 %v2146, 16
        %v2327 = vrot.slane %v2325, 1
        %v2328 = vsel %vm1571, %v2323, %v2327
        %v2329 = vshrl.u32 %v2146, 16
        %v2331 = vor.u32 %v2329, %v2327
        %v2333 = vshll.u32 %v2147, 16
        %v2335 = vrot.slane %v2333, 1
        %v2336 = vsel %vm1571, %v2331, %v2335
        %v2337 = vshrl.u32 %v2147, 16
        %v2339 = vor.u32 %v2337, %v2335
        %v2341 = vshll.u32 %v2148, 16
        %v2343 = vrot.slane %v2341, 1
        %v2344 = vsel %vm1571, %v2339, %v2343
        %v2346 = vsel %vm460, %v2160, 0
        %v2349 = vsel %vm460, %v2168, 0
        %v2352 = vsel %vm460, %v2176, 0
        %v2355 = vsel %vm460, %v2184, 0
        %v2358 = vsel %vm460, %v2192, 0
        %v2361 = vsel %vm460, %v2200, 0
        %v2364 = vsel %vm460, %v2208, 0
        %v2367 = vsel %vm460, %v2216, 0
        %v2370 = vsel %vm460, %v2224, 0
        %v2373 = vsel %vm460, %v2232, 0
        %v2376 = vsel %vm460, %v2240, 0
        %v2379 = vsel %vm460, %v2248, 0
        %v2382 = vsel %vm460, %v2256, 0
        %v2385 = vsel %vm460, %v2264, 0
        %v2388 = vsel %vm460, %v2272, 0
        %v2391 = vsel %vm460, %v2280, 0
        %v2394 = vsel %vm460, %v2288, 0
        %v2397 = vsel %vm460, %v2296, 0
        %v2400 = vsel %vm460, %v2304, 0
        %v2403 = vsel %vm460, %v2312, 0
        %v2406 = vsel %vm460, %v2320, 0
        %v2409 = vsel %vm460, %v2328, 0
        %v2412 = vsel %vm460, %v2336, 0
        %v2415 = vsel %vm460, %v2344, 0
        %v2418 = vand.u32 %v2117, %v536
        %2420 = vmatprep.subr.bf16.mxu0 0
        %2421 = vmatpush1.bf16.msra.mxu0 0
        %2422 = vmatprep.subr.bf16.mxu0 0
        %2423 = vmatpush1.bf16.msra.mxu0 0
        %2424 = vmatprep.subr.bf16.mxu0 0
        %2425 = vmatpush1.bf16.msra.mxu0 0
        %2426 = vmatprep.subr.bf16.mxu0 0
        %2427 = vmatpush1.bf16.msra.mxu0 0
        %2428 = vmatprep.subr.bf16.mxu0 0
        %2429 = vmatpush1.bf16.msra.mxu0 0
        %2430 = vmatprep.subr.bf16.mxu0 0
        %2431 = vmatpush1.bf16.msra.mxu0 0
        %2432 = vmatprep.subr.bf16.mxu0 0
        %2433 = vmatpush1.bf16.msra.mxu0 0
        %2434 = vmatprep.subr.bf16.mxu0 0
        %2435 = vmatpush1.bf16.msra.mxu0 %v2418
        %2436 = vmatprep.subr.bf16.mxu0 0
        %2437 = vmatpush2.bf16.msra.mxu0 0
        %2438 = vmatprep.subr.bf16.mxu0 0
        %2439 = vmatpush2.bf16.msra.mxu0 0
        %2440 = vmatprep.subr.bf16.mxu0 0
        %2441 = vmatpush2.bf16.msra.mxu0 0
        %2442 = vmatprep.subr.bf16.mxu0 0
        %2443 = vmatpush2.bf16.msra.mxu0 0
        %2444 = vmatprep.subr.bf16.mxu0 0
        %2445 = vmatpush2.bf16.msra.mxu0 0
        %2446 = vmatprep.subr.bf16.mxu0 0
        %2447 = vmatpush2.bf16.msra.mxu0 0
        %2448 = vmatprep.subr.bf16.mxu0 0
        %2449 = vmatpush2.bf16.msra.mxu0 0
        %2450 = vmatprep.subr.bf16.mxu0 0
        %2451 = vmatpush2.bf16.msra.mxu0 0
        %2452 = vmatprep.mubr.bf16.mxu0 0
        %2453 = vmatmul.mubr.bf16.gmra.mxu0 %v2346
        %v2454 = vpop.f32.mrf.mxu0
        %v2455 = vadd.f32 0.0, %v2454
        %v2456 = vpop.f32.mrf.mxu0
        %v2457 = vpop.f32.mrf.mxu0
        %v2458 = vadd.f32 0.0, %v2457
        %v2459 = vpop.f32.mrf.mxu0
        %2460 = vmatprep.mubr.bf16.mxu0 0
        %2461 = vmatmul.mubr.bf16.gmra.mxu0 %v2349
        %v2462 = vpop.f32.mrf.mxu0
        %v2463 = vadd.f32 0.0, %v2462
        %v2464 = vpop.f32.mrf.mxu0
        %v2465 = vpop.f32.mrf.mxu0
        %v2466 = vadd.f32 0.0, %v2465
        %v2467 = vpop.f32.mrf.mxu0
        %2468 = vmatprep.mubr.bf16.mxu0 0
        %2469 = vmatmul.mubr.bf16.gmra.mxu0 %v2352
        %v2470 = vpop.f32.mrf.mxu0
        %v2471 = vadd.f32 0.0, %v2470
        %v2472 = vpop.f32.mrf.mxu0
        %v2473 = vpop.f32.mrf.mxu0
        %v2474 = vadd.f32 0.0, %v2473
        %v2475 = vpop.f32.mrf.mxu0
        %2476 = vmatprep.mubr.bf16.mxu0 0
        %2477 = vmatmul.mubr.bf16.gmra.mxu0 %v2355
        %v2478 = vpop.f32.mrf.mxu0
        %v2479 = vadd.f32 0.0, %v2478
        %v2480 = vpop.f32.mrf.mxu0
        %v2481 = vpop.f32.mrf.mxu0
        %v2482 = vadd.f32 0.0, %v2481
        %v2483 = vpop.f32.mrf.mxu0
        %2484 = vmatprep.mubr.bf16.mxu0 0
        %2485 = vmatmul.mubr.bf16.gmra.mxu0 %v2358
        %v2486 = vpop.f32.mrf.mxu0
        %v2487 = vadd.f32 0.0, %v2486
        %v2488 = vpop.f32.mrf.mxu0
        %v2489 = vpop.f32.mrf.mxu0
        %v2490 = vadd.f32 0.0, %v2489
        %v2491 = vpop.f32.mrf.mxu0
        %2492 = vmatprep.mubr.bf16.mxu0 0
        %2493 = vmatmul.mubr.bf16.gmra.mxu0 %v2361
        %v2494 = vpop.f32.mrf.mxu0
        %v2495 = vadd.f32 0.0, %v2494
        %v2496 = vpop.f32.mrf.mxu0
        %v2497 = vpop.f32.mrf.mxu0
        %v2498 = vadd.f32 0.0, %v2497
        %v2499 = vpop.f32.mrf.mxu0
        %2500 = vmatprep.mubr.bf16.mxu0 0
        %2501 = vmatmul.mubr.bf16.gmra.mxu0 %v2364
        %v2502 = vpop.f32.mrf.mxu0
        %v2503 = vadd.f32 0.0, %v2502
        %v2504 = vpop.f32.mrf.mxu0
        %v2505 = vpop.f32.mrf.mxu0
        %v2506 = vadd.f32 0.0, %v2505
        %v2507 = vpop.f32.mrf.mxu0
        %2508 = vmatprep.mubr.bf16.mxu0 0
        %2509 = vmatmul.mubr.bf16.gmra.mxu0 %v2367
        %v2510 = vpop.f32.mrf.mxu0
        %v2511 = vadd.f32 0.0, %v2510
        %v2512 = vpop.f32.mrf.mxu0
        %v2513 = vpop.f32.mrf.mxu0
        %v2514 = vadd.f32 0.0, %v2513
        %v2515 = vpop.f32.mrf.mxu0
        %2516 = vmatprep.mubr.bf16.mxu0 0
        %2517 = vmatmul.mubr.bf16.gmra.mxu0 %v2370
        %v2518 = vpop.f32.mrf.mxu0
        %v2519 = vadd.f32 0.0, %v2518
        %v2520 = vpop.f32.mrf.mxu0
        %v2521 = vpop.f32.mrf.mxu0
        %v2522 = vadd.f32 0.0, %v2521
        %v2523 = vpop.f32.mrf.mxu0
        %2524 = vmatprep.mubr.bf16.mxu0 0
        %2525 = vmatmul.mubr.bf16.gmra.mxu0 %v2373
        %v2526 = vpop.f32.mrf.mxu0
        %v2527 = vadd.f32 0.0, %v2526
        %v2528 = vpop.f32.mrf.mxu0
        %v2529 = vpop.f32.mrf.mxu0
        %v2530 = vadd.f32 0.0, %v2529
        %v2531 = vpop.f32.mrf.mxu0
        %2532 = vmatprep.mubr.bf16.mxu0 0
        %2533 = vmatmul.mubr.bf16.gmra.mxu0 %v2376
        %v2534 = vpop.f32.mrf.mxu0
        %v2535 = vadd.f32 0.0, %v2534
        %v2536 = vpop.f32.mrf.mxu0
        %v2537 = vpop.f32.mrf.mxu0
        %v2538 = vadd.f32 0.0, %v2537
        %v2539 = vpop.f32.mrf.mxu0
        %2540 = vmatprep.mubr.bf16.mxu0 0
        %2541 = vmatmul.mubr.bf16.gmra.mxu0 %v2379
        %v2542 = vpop.f32.mrf.mxu0
        %v2543 = vadd.f32 0.0, %v2542
        %v2544 = vpop.f32.mrf.mxu0
        %v2545 = vpop.f32.mrf.mxu0
        %v2546 = vadd.f32 0.0, %v2545
        %v2547 = vpop.f32.mrf.mxu0
        %2548 = vmatprep.mubr.bf16.mxu0 0
        %2549 = vmatmul.mubr.bf16.gmra.mxu0 %v2382
        %v2550 = vpop.f32.mrf.mxu0
        %v2551 = vadd.f32 0.0, %v2550
        %v2552 = vpop.f32.mrf.mxu0
        %v2553 = vpop.f32.mrf.mxu0
        %v2554 = vadd.f32 0.0, %v2553
        %v2555 = vpop.f32.mrf.mxu0
        %2556 = vmatprep.mubr.bf16.mxu0 0
        %2557 = vmatmul.mubr.bf16.gmra.mxu0 %v2385
        %v2558 = vpop.f32.mrf.mxu0
        %v2559 = vadd.f32 0.0, %v2558
        %v2560 = vpop.f32.mrf.mxu0
        %v2561 = vpop.f32.mrf.mxu0
        %v2562 = vadd.f32 0.0, %v2561
        %v2563 = vpop.f32.mrf.mxu0
        %2564 = vmatprep.mubr.bf16.mxu0 0
        %2565 = vmatmul.mubr.bf16.gmra.mxu0 %v2388
        %v2566 = vpop.f32.mrf.mxu0
        %v2567 = vadd.f32 0.0, %v2566
        %v2568 = vpop.f32.mrf.mxu0
        %v2569 = vpop.f32.mrf.mxu0
        %v2570 = vadd.f32 0.0, %v2569
        %v2571 = vpop.f32.mrf.mxu0
        %2572 = vmatprep.mubr.bf16.mxu0 0
        %2573 = vmatmul.mubr.bf16.gmra.mxu0 %v2391
        %v2574 = vpop.f32.mrf.mxu0
        %v2575 = vadd.f32 0.0, %v2574
        %v2576 = vpop.f32.mrf.mxu0
        %v2577 = vpop.f32.mrf.mxu0
        %v2578 = vadd.f32 0.0, %v2577
        %v2579 = vpop.f32.mrf.mxu0
        %2580 = vmatprep.mubr.bf16.mxu0 0
        %2581 = vmatmul.mubr.bf16.gmra.mxu0 %v2394
        %v2582 = vpop.f32.mrf.mxu0
        %v2583 = vadd.f32 0.0, %v2582
        %v2584 = vpop.f32.mrf.mxu0
        %v2585 = vpop.f32.mrf.mxu0
        %v2586 = vadd.f32 0.0, %v2585
        %v2587 = vpop.f32.mrf.mxu0
        %2588 = vmatprep.mubr.bf16.mxu0 0
        %2589 = vmatmul.mubr.bf16.gmra.mxu0 %v2397
        %v2590 = vpop.f32.mrf.mxu0
        %v2591 = vadd.f32 0.0, %v2590
        %v2592 = vpop.f32.mrf.mxu0
        %v2593 = vpop.f32.mrf.mxu0
        %v2594 = vadd.f32 0.0, %v2593
        %v2595 = vpop.f32.mrf.mxu0
        %2596 = vmatprep.mubr.bf16.mxu0 0
        %2597 = vmatmul.mubr.bf16.gmra.mxu0 %v2400
        %v2598 = vpop.f32.mrf.mxu0
        %v2599 = vadd.f32 0.0, %v2598
        %v2600 = vpop.f32.mrf.mxu0
        %v2601 = vpop.f32.mrf.mxu0
        %v2602 = vadd.f32 0.0, %v2601
        %v2603 = vpop.f32.mrf.mxu0
        %2604 = vmatprep.mubr.bf16.mxu0 0
        %2605 = vmatmul.mubr.bf16.gmra.mxu0 %v2403
        %v2606 = vpop.f32.mrf.mxu0
        %v2607 = vadd.f32 0.0, %v2606
        %v2608 = vpop.f32.mrf.mxu0
        %v2609 = vpop.f32.mrf.mxu0
        %v2610 = vadd.f32 0.0, %v2609
        %v2611 = vpop.f32.mrf.mxu0
        %2612 = vmatprep.mubr.bf16.mxu0 0
        %2613 = vmatmul.mubr.bf16.gmra.mxu0 %v2406
        %v2614 = vpop.f32.mrf.mxu0
        %v2615 = vadd.f32 0.0, %v2614
        %v2616 = vpop.f32.mrf.mxu0
        %v2617 = vpop.f32.mrf.mxu0
        %v2618 = vadd.f32 0.0, %v2617
        %v2619 = vpop.f32.mrf.mxu0
        %2620 = vmatprep.mubr.bf16.mxu0 0
        %2621 = vmatmul.mubr.bf16.gmra.mxu0 %v2409
        %v2622 = vpop.f32.mrf.mxu0
        %v2623 = vadd.f32 0.0, %v2622
        %v2624 = vpop.f32.mrf.mxu0
        %v2625 = vpop.f32.mrf.mxu0
        %v2626 = vadd.f32 0.0, %v2625
        %v2627 = vpop.f32.mrf.mxu0
        %2628 = vmatprep.mubr.bf16.mxu0 0
        %2629 = vmatmul.mubr.bf16.gmra.mxu0 %v2412
        %v2630 = vpop.f32.mrf.mxu0
        %v2631 = vadd.f32 0.0, %v2630
        %v2632 = vpop.f32.mrf.mxu0
        %v2633 = vpop.f32.mrf.mxu0
        %v2634 = vadd.f32 0.0, %v2633
        %v2635 = vpop.f32.mrf.mxu0
        %2636 = vmatprep.mubr.bf16.mxu0 0
        %2637 = vmatmul.mubr.bf16.gmra.mxu0 %v2415
        %v2638 = vpop.f32.mrf.mxu0
        %v2639 = vadd.f32 0.0, %v2638
        %v2640 = vpop.f32.mrf.mxu0
        %v2641 = vpop.f32.mrf.mxu0
        %v2642 = vadd.f32 0.0, %v2641
        %v2643 = vpop.f32.mrf.mxu0
        %2644 = vdwg.mxu0
        %v2645 = vadd.f32 %v2068, %v2455
        %v2646 = vadd.f32 %v2069, %v2458
        %v2647 = vadd.f32 %v2070, %v2463
        %v2648 = vadd.f32 %v2071, %v2466
        %v2649 = vadd.f32 %v2072, %v2471
        %v2650 = vadd.f32 %v2073, %v2474
        %v2651 = vadd.f32 %v2074, %v2479
        %v2652 = vadd.f32 %v2075, %v2482
        %v2653 = vadd.f32 %v2076, %v2487
        %v2654 = vadd.f32 %v2077, %v2490
        %v2655 = vadd.f32 %v2078, %v2495
        %v2656 = vadd.f32 %v2079, %v2498
        %v2657 = vadd.f32 %v2080, %v2503
        %v2658 = vadd.f32 %v2081, %v2506
        %v2659 = vadd.f32 %v2082, %v2511
        %v2660 = vadd.f32 %v2083, %v2514
        %v2661 = vadd.f32 %v2084, %v2519
        %v2662 = vadd.f32 %v2085, %v2522
        %v2663 = vadd.f32 %v2086, %v2527
        %v2664 = vadd.f32 %v2087, %v2530
        %v2665 = vadd.f32 %v2088, %v2535
        %v2666 = vadd.f32 %v2089, %v2538
        %v2667 = vadd.f32 %v2090, %v2543
        %v2668 = vadd.f32 %v2091, %v2546
        %v2669 = vadd.f32 %v2092, %v2551
        %v2670 = vadd.f32 %v2093, %v2554
        %v2671 = vadd.f32 %v2094, %v2559
        %v2672 = vadd.f32 %v2095, %v2562
        %v2673 = vadd.f32 %v2096, %v2567
        %v2674 = vadd.f32 %v2097, %v2570
        %v2675 = vadd.f32 %v2098, %v2575
        %v2676 = vadd.f32 %v2099, %v2578
        %v2677 = vadd.f32 %v2100, %v2583
        %v2678 = vadd.f32 %v2101, %v2586
        %v2679 = vadd.f32 %v2102, %v2591
        %v2680 = vadd.f32 %v2103, %v2594
        %v2681 = vadd.f32 %v2104, %v2599
        %v2682 = vadd.f32 %v2105, %v2602
        %v2683 = vadd.f32 %v2106, %v2607
        %v2684 = vadd.f32 %v2107, %v2610
        %v2685 = vadd.f32 %v2108, %v2615
        %v2686 = vadd.f32 %v2109, %v2618
        %v2687 = vadd.f32 %v2110, %v2623
        %v2688 = vadd.f32 %v2111, %v2626
        %v2689 = vadd.f32 %v2112, %v2631
        %v2690 = vadd.f32 %v2113, %v2634
        %v2691 = vadd.f32 %v2114, %v2639
        %v2692 = vadd.f32 %v2115, %v2642
        %s2693 = scalar_lea.vmem %s275, 14
        %v2694 = vld [vmem:[%s2693] sm:$0x3]
        %v2698 = vunpack.c.l.b16 %v1443
        %v2699 = vunpack.c.l.b16 %v1444
        %v2700 = vunpack.c.l.b16 %v1445
        %v2701 = vpack.c.b16 %v2121, %v1545
        %v2702 = vpack.c.b16 %v2123, %v2122
        %v2703 = vpack.c.b16 %v2699, %v2698
        %v2704 = vpack.c.b16 %v2700, %v2700
        %v2706 = vshll.u32 %v2701, 16
        %v2708 = vrot.slane %v2706, 1
        %v2709 = vsel %vm1571, %v1762, %v2708
        %v2710 = vshrl.u32 %v2701, 16
        %v2712 = vor.u32 %v2710, %v2708
        %v2714 = vshll.u32 %v2702, 16
        %v2716 = vrot.slane %v2714, 1
        %v2717 = vsel %vm1571, %v2712, %v2716
        %v2718 = vshrl.u32 %v2702, 16
        %v2720 = vor.u32 %v2718, %v2716
        %v2722 = vshll.u32 %v2703, 16
        %v2724 = vrot.slane %v2722, 1
        %v2725 = vsel %vm1571, %v2720, %v2724
        %v2726 = vshrl.u32 %v2703, 16
        %v2728 = vor.u32 %v2726, %v2724
        %v2730 = vshll.u32 %v2704, 16
        %v2732 = vrot.slane %v2730, 1
        %v2733 = vsel %vm1571, %v2728, %v2732
        %v2735 = vsel %vm460, %v2709, 0
        %v2738 = vsel %vm460, %v2717, 0
        %v2741 = vsel %vm460, %v2725, 0
        %v2744 = vsel %vm460, %v2733, 0
        %v2747 = vand.u32 %v2694, %v536
        %2749 = vmatprep.subr.bf16.mxu0 0
        %2750 = vmatpush1.bf16.msra.mxu0 0
        %2751 = vmatprep.subr.bf16.mxu0 0
        %2752 = vmatpush1.bf16.msra.mxu0 0
        %2753 = vmatprep.subr.bf16.mxu0 0
        %2754 = vmatpush1.bf16.msra.mxu0 0
        %2755 = vmatprep.subr.bf16.mxu0 0
        %2756 = vmatpush1.bf16.msra.mxu0 0
        %2757 = vmatprep.subr.bf16.mxu0 0
        %2758 = vmatpush1.bf16.msra.mxu0 0
        %2759 = vmatprep.subr.bf16.mxu0 0
        %2760 = vmatpush1.bf16.msra.mxu0 0
        %2761 = vmatprep.subr.bf16.mxu0 0
        %2762 = vmatpush1.bf16.msra.mxu0 0
        %2763 = vmatprep.subr.bf16.mxu0 0
        %2764 = vmatpush1.bf16.msra.mxu0 %v2747
        %2765 = vmatprep.subr.bf16.mxu0 0
        %2766 = vmatpush2.bf16.msra.mxu0 0
        %2767 = vmatprep.subr.bf16.mxu0 0
        %2768 = vmatpush2.bf16.msra.mxu0 0
        %2769 = vmatprep.subr.bf16.mxu0 0
        %2770 = vmatpush2.bf16.msra.mxu0 0
        %2771 = vmatprep.subr.bf16.mxu0 0
        %2772 = vmatpush2.bf16.msra.mxu0 0
        %2773 = vmatprep.subr.bf16.mxu0 0
        %2774 = vmatpush2.bf16.msra.mxu0 0
        %2775 = vmatprep.subr.bf16.mxu0 0
        %2776 = vmatpush2.bf16.msra.mxu0 0
        %2777 = vmatprep.subr.bf16.mxu0 0
        %2778 = vmatpush2.bf16.msra.mxu0 0
        %2779 = vmatprep.subr.bf16.mxu0 0
        %2780 = vmatpush2.bf16.msra.mxu0 0
        %2781 = vmatprep.mubr.bf16.mxu0 0
        %2782 = vmatmul.mubr.bf16.gmra.mxu0 %v1778
        %v2783 = vpop.f32.mrf.mxu0
        %v2784 = vadd.f32 0.0, %v2783
        %v2785 = vpop.f32.mrf.mxu0
        %v2786 = vpop.f32.mrf.mxu0
        %v2787 = vadd.f32 0.0, %v2786
        %v2788 = vpop.f32.mrf.mxu0
        %2789 = vmatprep.mubr.bf16.mxu0 0
        %2790 = vmatmul.mubr.bf16.gmra.mxu0 %v1781
        %v2791 = vpop.f32.mrf.mxu0
        %v2792 = vadd.f32 0.0, %v2791
        %v2793 = vpop.f32.mrf.mxu0
        %v2794 = vpop.f32.mrf.mxu0
        %v2795 = vadd.f32 0.0, %v2794
        %v2796 = vpop.f32.mrf.mxu0
        %2797 = vmatprep.mubr.bf16.mxu0 0
        %2798 = vmatmul.mubr.bf16.gmra.mxu0 %v1784
        %v2799 = vpop.f32.mrf.mxu0
        %v2800 = vadd.f32 0.0, %v2799
        %v2801 = vpop.f32.mrf.mxu0
        %v2802 = vpop.f32.mrf.mxu0
        %v2803 = vadd.f32 0.0, %v2802
        %v2804 = vpop.f32.mrf.mxu0
        %2805 = vmatprep.mubr.bf16.mxu0 0
        %2806 = vmatmul.mubr.bf16.gmra.mxu0 %v1787
        %v2807 = vpop.f32.mrf.mxu0
        %v2808 = vadd.f32 0.0, %v2807
        %v2809 = vpop.f32.mrf.mxu0
        %v2810 = vpop.f32.mrf.mxu0
        %v2811 = vadd.f32 0.0, %v2810
        %v2812 = vpop.f32.mrf.mxu0
        %2813 = vmatprep.mubr.bf16.mxu0 0
        %2814 = vmatmul.mubr.bf16.gmra.mxu0 %v1790
        %v2815 = vpop.f32.mrf.mxu0
        %v2816 = vadd.f32 0.0, %v2815
        %v2817 = vpop.f32.mrf.mxu0
        %v2818 = vpop.f32.mrf.mxu0
        %v2819 = vadd.f32 0.0, %v2818
        %v2820 = vpop.f32.mrf.mxu0
        %2821 = vmatprep.mubr.bf16.mxu0 0
        %2822 = vmatmul.mubr.bf16.gmra.mxu0 %v1793
        %v2823 = vpop.f32.mrf.mxu0
        %v2824 = vadd.f32 0.0, %v2823
        %v2825 = vpop.f32.mrf.mxu0
        %v2826 = vpop.f32.mrf.mxu0
        %v2827 = vadd.f32 0.0, %v2826
        %v2828 = vpop.f32.mrf.mxu0
        %2829 = vmatprep.mubr.bf16.mxu0 0
        %2830 = vmatmul.mubr.bf16.gmra.mxu0 %v1796
        %v2831 = vpop.f32.mrf.mxu0
        %v2832 = vadd.f32 0.0, %v2831
        %v2833 = vpop.f32.mrf.mxu0
        %v2834 = vpop.f32.mrf.mxu0
        %v2835 = vadd.f32 0.0, %v2834
        %v2836 = vpop.f32.mrf.mxu0
        %2837 = vmatprep.mubr.bf16.mxu0 0
        %2838 = vmatmul.mubr.bf16.gmra.mxu0 %v1799
        %v2839 = vpop.f32.mrf.mxu0
        %v2840 = vadd.f32 0.0, %v2839
        %v2841 = vpop.f32.mrf.mxu0
        %v2842 = vpop.f32.mrf.mxu0
        %v2843 = vadd.f32 0.0, %v2842
        %v2844 = vpop.f32.mrf.mxu0
        %2845 = vmatprep.mubr.bf16.mxu0 0
        %2846 = vmatmul.mubr.bf16.gmra.mxu0 %v1802
        %v2847 = vpop.f32.mrf.mxu0
        %v2848 = vadd.f32 0.0, %v2847
        %v2849 = vpop.f32.mrf.mxu0
        %v2850 = vpop.f32.mrf.mxu0
        %v2851 = vadd.f32 0.0, %v2850
        %v2852 = vpop.f32.mrf.mxu0
        %2853 = vmatprep.mubr.bf16.mxu0 0
        %2854 = vmatmul.mubr.bf16.gmra.mxu0 %v1805
        %v2855 = vpop.f32.mrf.mxu0
        %v2856 = vadd.f32 0.0, %v2855
        %v2857 = vpop.f32.mrf.mxu0
        %v2858 = vpop.f32.mrf.mxu0
        %v2859 = vadd.f32 0.0, %v2858
        %v2860 = vpop.f32.mrf.mxu0
        %2861 = vmatprep.mubr.bf16.mxu0 0
        %2862 = vmatmul.mubr.bf16.gmra.mxu0 %v1808
        %v2863 = vpop.f32.mrf.mxu0
        %v2864 = vadd.f32 0.0, %v2863
        %v2865 = vpop.f32.mrf.mxu0
        %v2866 = vpop.f32.mrf.mxu0
        %v2867 = vadd.f32 0.0, %v2866
        %v2868 = vpop.f32.mrf.mxu0
        %2869 = vmatprep.mubr.bf16.mxu0 0
        %2870 = vmatmul.mubr.bf16.gmra.mxu0 %v1811
        %v2871 = vpop.f32.mrf.mxu0
        %v2872 = vadd.f32 0.0, %v2871
        %v2873 = vpop.f32.mrf.mxu0
        %v2874 = vpop.f32.mrf.mxu0
        %v2875 = vadd.f32 0.0, %v2874
        %v2876 = vpop.f32.mrf.mxu0
        %2877 = vmatprep.mubr.bf16.mxu0 0
        %2878 = vmatmul.mubr.bf16.gmra.mxu0 %v1814
        %v2879 = vpop.f32.mrf.mxu0
        %v2880 = vadd.f32 0.0, %v2879
        %v2881 = vpop.f32.mrf.mxu0
        %v2882 = vpop.f32.mrf.mxu0
        %v2883 = vadd.f32 0.0, %v2882
        %v2884 = vpop.f32.mrf.mxu0
        %2885 = vmatprep.mubr.bf16.mxu0 0
        %2886 = vmatmul.mubr.bf16.gmra.mxu0 %v1817
        %v2887 = vpop.f32.mrf.mxu0
        %v2888 = vadd.f32 0.0, %v2887
        %v2889 = vpop.f32.mrf.mxu0
        %v2890 = vpop.f32.mrf.mxu0
        %v2891 = vadd.f32 0.0, %v2890
        %v2892 = vpop.f32.mrf.mxu0
        %2893 = vmatprep.mubr.bf16.mxu0 0
        %2894 = vmatmul.mubr.bf16.gmra.mxu0 %v1820
        %v2895 = vpop.f32.mrf.mxu0
        %v2896 = vadd.f32 0.0, %v2895
        %v2897 = vpop.f32.mrf.mxu0
        %v2898 = vpop.f32.mrf.mxu0
        %v2899 = vadd.f32 0.0, %v2898
        %v2900 = vpop.f32.mrf.mxu0
        %2901 = vmatprep.mubr.bf16.mxu0 0
        %2902 = vmatmul.mubr.bf16.gmra.mxu0 %v1823
        %v2903 = vpop.f32.mrf.mxu0
        %v2904 = vadd.f32 0.0, %v2903
        %v2905 = vpop.f32.mrf.mxu0
        %v2906 = vpop.f32.mrf.mxu0
        %v2907 = vadd.f32 0.0, %v2906
        %v2908 = vpop.f32.mrf.mxu0
        %2909 = vmatprep.mubr.bf16.mxu0 0
        %2910 = vmatmul.mubr.bf16.gmra.mxu0 %v1826
        %v2911 = vpop.f32.mrf.mxu0
        %v2912 = vadd.f32 0.0, %v2911
        %v2913 = vpop.f32.mrf.mxu0
        %v2914 = vpop.f32.mrf.mxu0
        %v2915 = vadd.f32 0.0, %v2914
        %v2916 = vpop.f32.mrf.mxu0
        %2917 = vmatprep.mubr.bf16.mxu0 0
        %2918 = vmatmul.mubr.bf16.gmra.mxu0 %v1829
        %v2919 = vpop.f32.mrf.mxu0
        %v2920 = vadd.f32 0.0, %v2919
        %v2921 = vpop.f32.mrf.mxu0
        %v2922 = vpop.f32.mrf.mxu0
        %v2923 = vadd.f32 0.0, %v2922
        %v2924 = vpop.f32.mrf.mxu0
        %2925 = vmatprep.mubr.bf16.mxu0 0
        %2926 = vmatmul.mubr.bf16.gmra.mxu0 %v1832
        %v2927 = vpop.f32.mrf.mxu0
        %v2928 = vadd.f32 0.0, %v2927
        %v2929 = vpop.f32.mrf.mxu0
        %v2930 = vpop.f32.mrf.mxu0
        %v2931 = vadd.f32 0.0, %v2930
        %v2932 = vpop.f32.mrf.mxu0
        %2933 = vmatprep.mubr.bf16.mxu0 0
        %2934 = vmatmul.mubr.bf16.gmra.mxu0 %v1835
        %v2935 = vpop.f32.mrf.mxu0
        %v2936 = vadd.f32 0.0, %v2935
        %v2937 = vpop.f32.mrf.mxu0
        %v2938 = vpop.f32.mrf.mxu0
        %v2939 = vadd.f32 0.0, %v2938
        %v2940 = vpop.f32.mrf.mxu0
        %2941 = vmatprep.mubr.bf16.mxu0 0
        %2942 = vmatmul.mubr.bf16.gmra.mxu0 %v2735
        %v2943 = vpop.f32.mrf.mxu0
        %v2944 = vadd.f32 0.0, %v2943
        %v2945 = vpop.f32.mrf.mxu0
        %v2946 = vpop.f32.mrf.mxu0
        %v2947 = vadd.f32 0.0, %v2946
        %v2948 = vpop.f32.mrf.mxu0
        %2949 = vmatprep.mubr.bf16.mxu0 0
        %2950 = vmatmul.mubr.bf16.gmra.mxu0 %v2738
        %v2951 = vpop.f32.mrf.mxu0
        %v2952 = vadd.f32 0.0, %v2951
        %v2953 = vpop.f32.mrf.mxu0
        %v2954 = vpop.f32.mrf.mxu0
        %v2955 = vadd.f32 0.0, %v2954
        %v2956 = vpop.f32.mrf.mxu0
        %2957 = vmatprep.mubr.bf16.mxu0 0
        %2958 = vmatmul.mubr.bf16.gmra.mxu0 %v2741
        %v2959 = vpop.f32.mrf.mxu0
        %v2960 = vadd.f32 0.0, %v2959
        %v2961 = vpop.f32.mrf.mxu0
        %v2962 = vpop.f32.mrf.mxu0
        %v2963 = vadd.f32 0.0, %v2962
        %v2964 = vpop.f32.mrf.mxu0
        %2965 = vmatprep.mubr.bf16.mxu0 0
        %2966 = vmatmul.mubr.bf16.gmra.mxu0 %v2744
        %v2967 = vpop.f32.mrf.mxu0
        %v2968 = vadd.f32 0.0, %v2967
        %v2969 = vpop.f32.mrf.mxu0
        %v2970 = vpop.f32.mrf.mxu0
        %v2971 = vadd.f32 0.0, %v2970
        %v2972 = vpop.f32.mrf.mxu0
        %2973 = vdwg.mxu0
        %v2974 = vadd.f32 %v2645, %v2784
        %v2975 = vadd.f32 %v2646, %v2787
        %v2976 = vadd.f32 %v2647, %v2792
        %v2977 = vadd.f32 %v2648, %v2795
        %v2978 = vadd.f32 %v2649, %v2800
        %v2979 = vadd.f32 %v2650, %v2803
        %v2980 = vadd.f32 %v2651, %v2808
        %v2981 = vadd.f32 %v2652, %v2811
        %v2982 = vadd.f32 %v2653, %v2816
        %v2983 = vadd.f32 %v2654, %v2819
        %v2984 = vadd.f32 %v2655, %v2824
        %v2985 = vadd.f32 %v2656, %v2827
        %v2986 = vadd.f32 %v2657, %v2832
        %v2987 = vadd.f32 %v2658, %v2835
        %v2988 = vadd.f32 %v2659, %v2840
        %v2989 = vadd.f32 %v2660, %v2843
        %v2990 = vadd.f32 %v2661, %v2848
        %v2991 = vadd.f32 %v2662, %v2851
        %v2992 = vadd.f32 %v2663, %v2856
        %v2993 = vadd.f32 %v2664, %v2859
        %v2994 = vadd.f32 %v2665, %v2864
        %v2995 = vadd.f32 %v2666, %v2867
        %v2996 = vadd.f32 %v2667, %v2872
        %v2997 = vadd.f32 %v2668, %v2875
        %v2998 = vadd.f32 %v2669, %v2880
        %v2999 = vadd.f32 %v2670, %v2883
        %v3000 = vadd.f32 %v2671, %v2888
        %v3001 = vadd.f32 %v2672, %v2891
        %v3002 = vadd.f32 %v2673, %v2896
        %v3003 = vadd.f32 %v2674, %v2899
        %v3004 = vadd.f32 %v2675, %v2904
        %v3005 = vadd.f32 %v2676, %v2907
        %v3006 = vadd.f32 %v2677, %v2912
        %v3007 = vadd.f32 %v2678, %v2915
        %v3008 = vadd.f32 %v2679, %v2920
        %v3009 = vadd.f32 %v2680, %v2923
        %v3010 = vadd.f32 %v2681, %v2928
        %v3011 = vadd.f32 %v2682, %v2931
        %v3012 = vadd.f32 %v2683, %v2936
        %v3013 = vadd.f32 %v2684, %v2939
        %v3014 = vadd.f32 %v2685, %v2944
        %v3015 = vadd.f32 %v2686, %v2947
        %v3016 = vadd.f32 %v2687, %v2952
        %v3017 = vadd.f32 %v2688, %v2955
        %v3018 = vadd.f32 %v2689, %v2960
        %v3019 = vadd.f32 %v2690, %v2963
        %v3020 = vadd.f32 %v2691, %v2968
        %v3021 = vadd.f32 %v2692, %v2971
        %v3022 = vld [vmem:[%s271] sm:$0xe]
        %s3023 = scalar_lea.vmem %s275, 4
        %v3024 = vld [vmem:[%s3023] sm:$0x3]
        %v3026 = vunpack.c.l.b16 %v3022
        %v3027 = vpack.c.b16 %v1498, %v3026
        %vm3028 = vcmask 1046528
        %v3029 = vrot.slane %v3027, 1
        %v3030 = vrot.slane %v1547, 1
        %v3031 = vsel %vm3028, %v3029, %v3030
        %v3032 = vrot.slane %v1548, 1
        %v3033 = vsel %vm3028, %v3030, %v3032
        %v3034 = vrot.slane %v1549, 1
        %v3035 = vsel %vm3028, %v3032, %v3034
        %v3036 = vrot.slane %v1550, 1
        %v3037 = vsel %vm3028, %v3034, %v3036
        %v3038 = vrot.slane %v1551, 1
        %v3039 = vsel %vm3028, %v3036, %v3038
        %v3040 = vrot.slane %v1552, 1
        %v3041 = vsel %vm3028, %v3038, %v3040
        %v3042 = vrot.slane %v1553, 1
        %v3043 = vsel %vm3028, %v3040, %v3042
        %v3044 = vrot.slane %v1554, 1
        %v3045 = vsel %vm3028, %v3042, %v3044
        %v3046 = vrot.slane %v1555, 1
        %v3047 = vsel %vm3028, %v3044, %v3046
        %v3048 = vrot.slane %v1556, 1
        %v3049 = vsel %vm3028, %v3046, %v3048
        %v3050 = vrot.slane %v1557, 1
        %v3051 = vsel %vm3028, %v3048, %v3050
        %v3052 = vrot.slane %v1558, 1
        %v3053 = vsel %vm3028, %v3050, %v3052
        %v3054 = vrot.slane %v1559, 1
        %v3055 = vsel %vm3028, %v3052, %v3054
        %v3056 = vrot.slane %v1560, 1
        %v3057 = vsel %vm3028, %v3054, %v3056
        %v3058 = vrot.slane %v1561, 1
        %v3059 = vsel %vm3028, %v3056, %v3058
        %v3060 = vrot.slane %v1562, 1
        %v3061 = vsel %vm3028, %v3058, %v3060
        %v3062 = vrot.slane %v1563, 1
        %v3063 = vsel %vm3028, %v3060, %v3062
        %v3064 = vrot.slane %v1564, 1
        %v3065 = vsel %vm3028, %v3062, %v3064
        %v3066 = vrot.slane %v1565, 1
        %v3067 = vsel %vm3028, %v3064, %v3066
        %v3068 = vrot.slane %v1566, 1
        %v3069 = vsel %vm3028, %v3066, %v3068
        %v3070 = vrot.slane %v1567, 1
        %v3071 = vsel %vm3028, %v3068, %v3070
        %v3072 = vrot.slane %v1568, 1
        %v3073 = vsel %vm3028, %v3070, %v3072
        %v3074 = vrot.slane %v1569, 1
        %v3075 = vsel %vm3028, %v3072, %v3074
        %v3076 = vrot.slane %v1570, 1
        %v3077 = vsel %vm3028, %v3074, %v3076
        %v3079 = vsel %vm460, %v3031, 0
        %v3082 = vsel %vm460, %v3033, 0
        %v3085 = vsel %vm460, %v3035, 0
        %v3088 = vsel %vm460, %v3037, 0
        %v3091 = vsel %vm460, %v3039, 0
        %v3094 = vsel %vm460, %v3041, 0
        %v3097 = vsel %vm460, %v3043, 0
        %v3100 = vsel %vm460, %v3045, 0
        %v3103 = vsel %vm460, %v3047, 0
        %v3106 = vsel %vm460, %v3049, 0
        %v3109 = vsel %vm460, %v3051, 0
        %v3112 = vsel %vm460, %v3053, 0
        %v3115 = vsel %vm460, %v3055, 0
        %v3118 = vsel %vm460, %v3057, 0
        %v3121 = vsel %vm460, %v3059, 0
        %v3124 = vsel %vm460, %v3061, 0
        %v3127 = vsel %vm460, %v3063, 0
        %v3130 = vsel %vm460, %v3065, 0
        %v3133 = vsel %vm460, %v3067, 0
        %v3136 = vsel %vm460, %v3069, 0
        %v3139 = vsel %vm460, %v3071, 0
        %v3142 = vsel %vm460, %v3073, 0
        %v3145 = vsel %vm460, %v3075, 0
        %v3148 = vsel %vm460, %v3077, 0
        %v3151 = vand.u32 %v3024, %v536
        %3153 = vmatprep.subr.bf16.mxu0 0
        %3154 = vmatpush1.bf16.msra.mxu0 0
        %3155 = vmatprep.subr.bf16.mxu0 0
        %3156 = vmatpush1.bf16.msra.mxu0 0
        %3157 = vmatprep.subr.bf16.mxu0 0
        %3158 = vmatpush1.bf16.msra.mxu0 0
        %3159 = vmatprep.subr.bf16.mxu0 0
        %3160 = vmatpush1.bf16.msra.mxu0 0
        %3161 = vmatprep.subr.bf16.mxu0 0
        %3162 = vmatpush1.bf16.msra.mxu0 0
        %3163 = vmatprep.subr.bf16.mxu0 0
        %3164 = vmatpush1.bf16.msra.mxu0 0
        %3165 = vmatprep.subr.bf16.mxu0 0
        %3166 = vmatpush1.bf16.msra.mxu0 0
        %3167 = vmatprep.subr.bf16.mxu0 0
        %3168 = vmatpush1.bf16.msra.mxu0 %v3151
        %3169 = vmatprep.subr.bf16.mxu0 0
        %3170 = vmatpush2.bf16.msra.mxu0 0
        %3171 = vmatprep.subr.bf16.mxu0 0
        %3172 = vmatpush2.bf16.msra.mxu0 0
        %3173 = vmatprep.subr.bf16.mxu0 0
        %3174 = vmatpush2.bf16.msra.mxu0 0
        %3175 = vmatprep.subr.bf16.mxu0 0
        %3176 = vmatpush2.bf16.msra.mxu0 0
        %3177 = vmatprep.subr.bf16.mxu0 0
        %3178 = vmatpush2.bf16.msra.mxu0 0
        %3179 = vmatprep.subr.bf16.mxu0 0
        %3180 = vmatpush2.bf16.msra.mxu0 0
        %3181 = vmatprep.subr.bf16.mxu0 0
        %3182 = vmatpush2.bf16.msra.mxu0 0
        %3183 = vmatprep.subr.bf16.mxu0 0
        %3184 = vmatpush2.bf16.msra.mxu0 0
        %3185 = vmatprep.mubr.bf16.mxu0 0
        %3186 = vmatmul.mubr.bf16.gmra.mxu0 %v3079
        %v3187 = vpop.f32.mrf.mxu0
        %v3188 = vadd.f32 0.0, %v3187
        %v3189 = vpop.f32.mrf.mxu0
        %v3190 = vpop.f32.mrf.mxu0
        %v3191 = vadd.f32 0.0, %v3190
        %v3192 = vpop.f32.mrf.mxu0
        %3193 = vmatprep.mubr.bf16.mxu0 0
        %3194 = vmatmul.mubr.bf16.gmra.mxu0 %v3082
        %v3195 = vpop.f32.mrf.mxu0
        %v3196 = vadd.f32 0.0, %v3195
        %v3197 = vpop.f32.mrf.mxu0
        %v3198 = vpop.f32.mrf.mxu0
        %v3199 = vadd.f32 0.0, %v3198
        %v3200 = vpop.f32.mrf.mxu0
        %3201 = vmatprep.mubr.bf16.mxu0 0
        %3202 = vmatmul.mubr.bf16.gmra.mxu0 %v3085
        %v3203 = vpop.f32.mrf.mxu0
        %v3204 = vadd.f32 0.0, %v3203
        %v3205 = vpop.f32.mrf.mxu0
        %v3206 = vpop.f32.mrf.mxu0
        %v3207 = vadd.f32 0.0, %v3206
        %v3208 = vpop.f32.mrf.mxu0
        %3209 = vmatprep.mubr.bf16.mxu0 0
        %3210 = vmatmul.mubr.bf16.gmra.mxu0 %v3088
        %v3211 = vpop.f32.mrf.mxu0
        %v3212 = vadd.f32 0.0, %v3211
        %v3213 = vpop.f32.mrf.mxu0
        %v3214 = vpop.f32.mrf.mxu0
        %v3215 = vadd.f32 0.0, %v3214
        %v3216 = vpop.f32.mrf.mxu0
        %3217 = vmatprep.mubr.bf16.mxu0 0
        %3218 = vmatmul.mubr.bf16.gmra.mxu0 %v3091
        %v3219 = vpop.f32.mrf.mxu0
        %v3220 = vadd.f32 0.0, %v3219
        %v3221 = vpop.f32.mrf.mxu0
        %v3222 = vpop.f32.mrf.mxu0
        %v3223 = vadd.f32 0.0, %v3222
        %v3224 = vpop.f32.mrf.mxu0
        %3225 = vmatprep.mubr.bf16.mxu0 0
        %3226 = vmatmul.mubr.bf16.gmra.mxu0 %v3094
        %v3227 = vpop.f32.mrf.mxu0
        %v3228 = vadd.f32 0.0, %v3227
        %v3229 = vpop.f32.mrf.mxu0
        %v3230 = vpop.f32.mrf.mxu0
        %v3231 = vadd.f32 0.0, %v3230
        %v3232 = vpop.f32.mrf.mxu0
        %3233 = vmatprep.mubr.bf16.mxu0 0
        %3234 = vmatmul.mubr.bf16.gmra.mxu0 %v3097
        %v3235 = vpop.f32.mrf.mxu0
        %v3236 = vadd.f32 0.0, %v3235
        %v3237 = vpop.f32.mrf.mxu0
        %v3238 = vpop.f32.mrf.mxu0
        %v3239 = vadd.f32 0.0, %v3238
        %v3240 = vpop.f32.mrf.mxu0
        %3241 = vmatprep.mubr.bf16.mxu0 0
        %3242 = vmatmul.mubr.bf16.gmra.mxu0 %v3100
        %v3243 = vpop.f32.mrf.mxu0
        %v3244 = vadd.f32 0.0, %v3243
        %v3245 = vpop.f32.mrf.mxu0
        %v3246 = vpop.f32.mrf.mxu0
        %v3247 = vadd.f32 0.0, %v3246
        %v3248 = vpop.f32.mrf.mxu0
        %3249 = vmatprep.mubr.bf16.mxu0 0
        %3250 = vmatmul.mubr.bf16.gmra.mxu0 %v3103
        %v3251 = vpop.f32.mrf.mxu0
        %v3252 = vadd.f32 0.0, %v3251
        %v3253 = vpop.f32.mrf.mxu0
        %v3254 = vpop.f32.mrf.mxu0
        %v3255 = vadd.f32 0.0, %v3254
        %v3256 = vpop.f32.mrf.mxu0
        %3257 = vmatprep.mubr.bf16.mxu0 0
        %3258 = vmatmul.mubr.bf16.gmra.mxu0 %v3106
        %v3259 = vpop.f32.mrf.mxu0
        %v3260 = vadd.f32 0.0, %v3259
        %v3261 = vpop.f32.mrf.mxu0
        %v3262 = vpop.f32.mrf.mxu0
        %v3263 = vadd.f32 0.0, %v3262
        %v3264 = vpop.f32.mrf.mxu0
        %3265 = vmatprep.mubr.bf16.mxu0 0
        %3266 = vmatmul.mubr.bf16.gmra.mxu0 %v3109
        %v3267 = vpop.f32.mrf.mxu0
        %v3268 = vadd.f32 0.0, %v3267
        %v3269 = vpop.f32.mrf.mxu0
        %v3270 = vpop.f32.mrf.mxu0
        %v3271 = vadd.f32 0.0, %v3270
        %v3272 = vpop.f32.mrf.mxu0
        %3273 = vmatprep.mubr.bf16.mxu0 0
        %3274 = vmatmul.mubr.bf16.gmra.mxu0 %v3112
        %v3275 = vpop.f32.mrf.mxu0
        %v3276 = vadd.f32 0.0, %v3275
        %v3277 = vpop.f32.mrf.mxu0
        %v3278 = vpop.f32.mrf.mxu0
        %v3279 = vadd.f32 0.0, %v3278
        %v3280 = vpop.f32.mrf.mxu0
        %3281 = vmatprep.mubr.bf16.mxu0 0
        %3282 = vmatmul.mubr.bf16.gmra.mxu0 %v3115
        %v3283 = vpop.f32.mrf.mxu0
        %v3284 = vadd.f32 0.0, %v3283
        %v3285 = vpop.f32.mrf.mxu0
        %v3286 = vpop.f32.mrf.mxu0
        %v3287 = vadd.f32 0.0, %v3286
        %v3288 = vpop.f32.mrf.mxu0
        %3289 = vmatprep.mubr.bf16.mxu0 0
        %3290 = vmatmul.mubr.bf16.gmra.mxu0 %v3118
        %v3291 = vpop.f32.mrf.mxu0
        %v3292 = vadd.f32 0.0, %v3291
        %v3293 = vpop.f32.mrf.mxu0
        %v3294 = vpop.f32.mrf.mxu0
        %v3295 = vadd.f32 0.0, %v3294
        %v3296 = vpop.f32.mrf.mxu0
        %3297 = vmatprep.mubr.bf16.mxu0 0
        %3298 = vmatmul.mubr.bf16.gmra.mxu0 %v3121
        %v3299 = vpop.f32.mrf.mxu0
        %v3300 = vadd.f32 0.0, %v3299
        %v3301 = vpop.f32.mrf.mxu0
        %v3302 = vpop.f32.mrf.mxu0
        %v3303 = vadd.f32 0.0, %v3302
        %v3304 = vpop.f32.mrf.mxu0
        %3305 = vmatprep.mubr.bf16.mxu0 0
        %3306 = vmatmul.mubr.bf16.gmra.mxu0 %v3124
        %v3307 = vpop.f32.mrf.mxu0
        %v3308 = vadd.f32 0.0, %v3307
        %v3309 = vpop.f32.mrf.mxu0
        %v3310 = vpop.f32.mrf.mxu0
        %v3311 = vadd.f32 0.0, %v3310
        %v3312 = vpop.f32.mrf.mxu0
        %3313 = vmatprep.mubr.bf16.mxu0 0
        %3314 = vmatmul.mubr.bf16.gmra.mxu0 %v3127
        %v3315 = vpop.f32.mrf.mxu0
        %v3316 = vadd.f32 0.0, %v3315
        %v3317 = vpop.f32.mrf.mxu0
        %v3318 = vpop.f32.mrf.mxu0
        %v3319 = vadd.f32 0.0, %v3318
        %v3320 = vpop.f32.mrf.mxu0
        %3321 = vmatprep.mubr.bf16.mxu0 0
        %3322 = vmatmul.mubr.bf16.gmra.mxu0 %v3130
        %v3323 = vpop.f32.mrf.mxu0
        %v3324 = vadd.f32 0.0, %v3323
        %v3325 = vpop.f32.mrf.mxu0
        %v3326 = vpop.f32.mrf.mxu0
        %v3327 = vadd.f32 0.0, %v3326
        %v3328 = vpop.f32.mrf.mxu0
        %3329 = vmatprep.mubr.bf16.mxu0 0
        %3330 = vmatmul.mubr.bf16.gmra.mxu0 %v3133
        %v3331 = vpop.f32.mrf.mxu0
        %v3332 = vadd.f32 0.0, %v3331
        %v3333 = vpop.f32.mrf.mxu0
        %v3334 = vpop.f32.mrf.mxu0
        %v3335 = vadd.f32 0.0, %v3334
        %v3336 = vpop.f32.mrf.mxu0
        %3337 = vmatprep.mubr.bf16.mxu0 0
        %3338 = vmatmul.mubr.bf16.gmra.mxu0 %v3136
        %v3339 = vpop.f32.mrf.mxu0
        %v3340 = vadd.f32 0.0, %v3339
        %v3341 = vpop.f32.mrf.mxu0
        %v3342 = vpop.f32.mrf.mxu0
        %v3343 = vadd.f32 0.0, %v3342
        %v3344 = vpop.f32.mrf.mxu0
        %3345 = vmatprep.mubr.bf16.mxu0 0
        %3346 = vmatmul.mubr.bf16.gmra.mxu0 %v3139
        %v3347 = vpop.f32.mrf.mxu0
        %v3348 = vadd.f32 0.0, %v3347
        %v3349 = vpop.f32.mrf.mxu0
        %v3350 = vpop.f32.mrf.mxu0
        %v3351 = vadd.f32 0.0, %v3350
        %v3352 = vpop.f32.mrf.mxu0
        %3353 = vmatprep.mubr.bf16.mxu0 0
        %3354 = vmatmul.mubr.bf16.gmra.mxu0 %v3142
        %v3355 = vpop.f32.mrf.mxu0
        %v3356 = vadd.f32 0.0, %v3355
        %v3357 = vpop.f32.mrf.mxu0
        %v3358 = vpop.f32.mrf.mxu0
        %v3359 = vadd.f32 0.0, %v3358
        %v3360 = vpop.f32.mrf.mxu0
        %3361 = vmatprep.mubr.bf16.mxu0 0
        %3362 = vmatmul.mubr.bf16.gmra.mxu0 %v3145
        %v3363 = vpop.f32.mrf.mxu0
        %v3364 = vadd.f32 0.0, %v3363
        %v3365 = vpop.f32.mrf.mxu0
        %v3366 = vpop.f32.mrf.mxu0
        %v3367 = vadd.f32 0.0, %v3366
        %v3368 = vpop.f32.mrf.mxu0
        %3369 = vmatprep.mubr.bf16.mxu0 0
        %3370 = vmatmul.mubr.bf16.gmra.mxu0 %v3148
        %v3371 = vpop.f32.mrf.mxu0
        %v3372 = vadd.f32 0.0, %v3371
        %v3373 = vpop.f32.mrf.mxu0
        %v3374 = vpop.f32.mrf.mxu0
        %v3375 = vadd.f32 0.0, %v3374
        %v3376 = vpop.f32.mrf.mxu0
        %3377 = vdwg.mxu0
        %v3378 = vadd.f32 %v2974, %v3188
        %v3379 = vadd.f32 %v2975, %v3191
        %v3380 = vadd.f32 %v2976, %v3196
        %v3381 = vadd.f32 %v2977, %v3199
        %v3382 = vadd.f32 %v2978, %v3204
        %v3383 = vadd.f32 %v2979, %v3207
        %v3384 = vadd.f32 %v2980, %v3212
        %v3385 = vadd.f32 %v2981, %v3215
        %v3386 = vadd.f32 %v2982, %v3220
        %v3387 = vadd.f32 %v2983, %v3223
        %v3388 = vadd.f32 %v2984, %v3228
        %v3389 = vadd.f32 %v2985, %v3231
        %v3390 = vadd.f32 %v2986, %v3236
        %v3391 = vadd.f32 %v2987, %v3239
        %v3392 = vadd.f32 %v2988, %v3244
        %v3393 = vadd.f32 %v2989, %v3247
        %v3394 = vadd.f32 %v2990, %v3252
        %v3395 = vadd.f32 %v2991, %v3255
        %v3396 = vadd.f32 %v2992, %v3260
        %v3397 = vadd.f32 %v2993, %v3263
        %v3398 = vadd.f32 %v2994, %v3268
        %v3399 = vadd.f32 %v2995, %v3271
        %v3400 = vadd.f32 %v2996, %v3276
        %v3401 = vadd.f32 %v2997, %v3279
        %v3402 = vadd.f32 %v2998, %v3284
        %v3403 = vadd.f32 %v2999, %v3287
        %v3404 = vadd.f32 %v3000, %v3292
        %v3405 = vadd.f32 %v3001, %v3295
        %v3406 = vadd.f32 %v3002, %v3300
        %v3407 = vadd.f32 %v3003, %v3303
        %v3408 = vadd.f32 %v3004, %v3308
        %v3409 = vadd.f32 %v3005, %v3311
        %v3410 = vadd.f32 %v3006, %v3316
        %v3411 = vadd.f32 %v3007, %v3319
        %v3412 = vadd.f32 %v3008, %v3324
        %v3413 = vadd.f32 %v3009, %v3327
        %v3414 = vadd.f32 %v3010, %v3332
        %v3415 = vadd.f32 %v3011, %v3335
        %v3416 = vadd.f32 %v3012, %v3340
        %v3417 = vadd.f32 %v3013, %v3343
        %v3418 = vadd.f32 %v3014, %v3348
        %v3419 = vadd.f32 %v3015, %v3351
        %v3420 = vadd.f32 %v3016, %v3356
        %v3421 = vadd.f32 %v3017, %v3359
        %v3422 = vadd.f32 %v3018, %v3364
        %v3423 = vadd.f32 %v3019, %v3367
        %v3424 = vadd.f32 %v3020, %v3372
        %v3425 = vadd.f32 %v3021, %v3375
        %s3426 = scalar_lea.vmem %s275, 10
        %v3427 = vld [vmem:[%s3426] sm:$0x3]
        %v3428 = vrot.slane %v2124, 1
        %v3429 = vrot.slane %v2125, 1
        %v3430 = vsel %vm3028, %v3428, %v3429
        %v3431 = vrot.slane %v2126, 1
        %v3432 = vsel %vm3028, %v3429, %v3431
        %v3433 = vrot.slane %v2127, 1
        %v3434 = vsel %vm3028, %v3431, %v3433
        %v3435 = vrot.slane %v2128, 1
        %v3436 = vsel %vm3028, %v3433, %v3435
        %v3437 = vrot.slane %v2129, 1
        %v3438 = vsel %vm3028, %v3435, %v3437
        %v3439 = vrot.slane %v2130, 1
        %v3440 = vsel %vm3028, %v3437, %v3439
        %v3441 = vrot.slane %v2131, 1
        %v3442 = vsel %vm3028, %v3439, %v3441
        %v3443 = vrot.slane %v2132, 1
        %v3444 = vsel %vm3028, %v3441, %v3443
        %v3445 = vrot.slane %v2133, 1
        %v3446 = vsel %vm3028, %v3443, %v3445
        %v3447 = vrot.slane %v2134, 1
        %v3448 = vsel %vm3028, %v3445, %v3447
        %v3449 = vrot.slane %v2135, 1
        %v3450 = vsel %vm3028, %v3447, %v3449
        %v3451 = vrot.slane %v2136, 1
        %v3452 = vsel %vm3028, %v3449, %v3451
        %v3453 = vrot.slane %v2137, 1
        %v3454 = vsel %vm3028, %v3451, %v3453
        %v3455 = vrot.slane %v2138, 1
        %v3456 = vsel %vm3028, %v3453, %v3455
        %v3457 = vrot.slane %v2139, 1
        %v3458 = vsel %vm3028, %v3455, %v3457
        %v3459 = vrot.slane %v2140, 1
        %v3460 = vsel %vm3028, %v3457, %v3459
        %v3461 = vrot.slane %v2141, 1
        %v3462 = vsel %vm3028, %v3459, %v3461
        %v3463 = vrot.slane %v2142, 1
        %v3464 = vsel %vm3028, %v3461, %v3463
        %v3465 = vrot.slane %v2143, 1
        %v3466 = vsel %vm3028, %v3463, %v3465
        %v3467 = vrot.slane %v2144, 1
        %v3468 = vsel %vm3028, %v3465, %v3467
        %v3469 = vrot.slane %v2145, 1
        %v3470 = vsel %vm3028, %v3467, %v3469
        %v3471 = vrot.slane %v2146, 1
        %v3472 = vsel %vm3028, %v3469, %v3471
        %v3473 = vrot.slane %v2147, 1
        %v3474 = vsel %vm3028, %v3471, %v3473
        %v3475 = vrot.slane %v2148, 1
        %v3476 = vsel %vm3028, %v3473, %v3475
        %v3478 = vsel %vm460, %v3430, 0
        %v3481 = vsel %vm460, %v3432, 0
        %v3484 = vsel %vm460, %v3434, 0
        %v3487 = vsel %vm460, %v3436, 0
        %v3490 = vsel %vm460, %v3438, 0
        %v3493 = vsel %vm460, %v3440, 0
        %v3496 = vsel %vm460, %v3442, 0
        %v3499 = vsel %vm460, %v3444, 0
        %v3502 = vsel %vm460, %v3446, 0
        %v3505 = vsel %vm460, %v3448, 0
        %v3508 = vsel %vm460, %v3450, 0
        %v3511 = vsel %vm460, %v3452, 0
        %v3514 = vsel %vm460, %v3454, 0
        %v3517 = vsel %vm460, %v3456, 0
        %v3520 = vsel %vm460, %v3458, 0
        %v3523 = vsel %vm460, %v3460, 0
        %v3526 = vsel %vm460, %v3462, 0
        %v3529 = vsel %vm460, %v3464, 0
        %v3532 = vsel %vm460, %v3466, 0
        %v3535 = vsel %vm460, %v3468, 0
        %v3538 = vsel %vm460, %v3470, 0
        %v3541 = vsel %vm460, %v3472, 0
        %v3544 = vsel %vm460, %v3474, 0
        %v3547 = vsel %vm460, %v3476, 0
        %v3550 = vand.u32 %v3427, %v536
        %3552 = vmatprep.subr.bf16.mxu0 0
        %3553 = vmatpush1.bf16.msra.mxu0 0
        %3554 = vmatprep.subr.bf16.mxu0 0
        %3555 = vmatpush1.bf16.msra.mxu0 0
        %3556 = vmatprep.subr.bf16.mxu0 0
        %3557 = vmatpush1.bf16.msra.mxu0 0
        %3558 = vmatprep.subr.bf16.mxu0 0
        %3559 = vmatpush1.bf16.msra.mxu0 0
        %3560 = vmatprep.subr.bf16.mxu0 0
        %3561 = vmatpush1.bf16.msra.mxu0 0
        %3562 = vmatprep.subr.bf16.mxu0 0
        %3563 = vmatpush1.bf16.msra.mxu0 0
        %3564 = vmatprep.subr.bf16.mxu0 0
        %3565 = vmatpush1.bf16.msra.mxu0 0
        %3566 = vmatprep.subr.bf16.mxu0 0
        %3567 = vmatpush1.bf16.msra.mxu0 %v3550
        %3568 = vmatprep.subr.bf16.mxu0 0
        %3569 = vmatpush2.bf16.msra.mxu0 0
        %3570 = vmatprep.subr.bf16.mxu0 0
        %3571 = vmatpush2.bf16.msra.mxu0 0
        %3572 = vmatprep.subr.bf16.mxu0 0
        %3573 = vmatpush2.bf16.msra.mxu0 0
        %3574 = vmatprep.subr.bf16.mxu0 0
        %3575 = vmatpush2.bf16.msra.mxu0 0
        %3576 = vmatprep.subr.bf16.mxu0 0
        %3577 = vmatpush2.bf16.msra.mxu0 0
        %3578 = vmatprep.subr.bf16.mxu0 0
        %3579 = vmatpush2.bf16.msra.mxu0 0
        %3580 = vmatprep.subr.bf16.mxu0 0
        %3581 = vmatpush2.bf16.msra.mxu0 0
        %3582 = vmatprep.subr.bf16.mxu0 0
        %3583 = vmatpush2.bf16.msra.mxu0 0
        %3584 = vmatprep.mubr.bf16.mxu0 0
        %3585 = vmatmul.mubr.bf16.gmra.mxu0 %v3478
        %v3586 = vpop.f32.mrf.mxu0
        %v3587 = vadd.f32 0.0, %v3586
        %v3588 = vpop.f32.mrf.mxu0
        %v3589 = vpop.f32.mrf.mxu0
        %v3590 = vadd.f32 0.0, %v3589
        %v3591 = vpop.f32.mrf.mxu0
        %3592 = vmatprep.mubr.bf16.mxu0 0
        %3593 = vmatmul.mubr.bf16.gmra.mxu0 %v3481
        %v3594 = vpop.f32.mrf.mxu0
        %v3595 = vadd.f32 0.0, %v3594
        %v3596 = vpop.f32.mrf.mxu0
        %v3597 = vpop.f32.mrf.mxu0
        %v3598 = vadd.f32 0.0, %v3597
        %v3599 = vpop.f32.mrf.mxu0
        %3600 = vmatprep.mubr.bf16.mxu0 0
        %3601 = vmatmul.mubr.bf16.gmra.mxu0 %v3484
        %v3602 = vpop.f32.mrf.mxu0
        %v3603 = vadd.f32 0.0, %v3602
        %v3604 = vpop.f32.mrf.mxu0
        %v3605 = vpop.f32.mrf.mxu0
        %v3606 = vadd.f32 0.0, %v3605
        %v3607 = vpop.f32.mrf.mxu0
        %3608 = vmatprep.mubr.bf16.mxu0 0
        %3609 = vmatmul.mubr.bf16.gmra.mxu0 %v3487
        %v3610 = vpop.f32.mrf.mxu0
        %v3611 = vadd.f32 0.0, %v3610
        %v3612 = vpop.f32.mrf.mxu0
        %v3613 = vpop.f32.mrf.mxu0
        %v3614 = vadd.f32 0.0, %v3613
        %v3615 = vpop.f32.mrf.mxu0
        %3616 = vmatprep.mubr.bf16.mxu0 0
        %3617 = vmatmul.mubr.bf16.gmra.mxu0 %v3490
        %v3618 = vpop.f32.mrf.mxu0
        %v3619 = vadd.f32 0.0, %v3618
        %v3620 = vpop.f32.mrf.mxu0
        %v3621 = vpop.f32.mrf.mxu0
        %v3622 = vadd.f32 0.0, %v3621
        %v3623 = vpop.f32.mrf.mxu0
        %3624 = vmatprep.mubr.bf16.mxu0 0
        %3625 = vmatmul.mubr.bf16.gmra.mxu0 %v3493
        %v3626 = vpop.f32.mrf.mxu0
        %v3627 = vadd.f32 0.0, %v3626
        %v3628 = vpop.f32.mrf.mxu0
        %v3629 = vpop.f32.mrf.mxu0
        %v3630 = vadd.f32 0.0, %v3629
        %v3631 = vpop.f32.mrf.mxu0
        %3632 = vmatprep.mubr.bf16.mxu0 0
        %3633 = vmatmul.mubr.bf16.gmra.mxu0 %v3496
        %v3634 = vpop.f32.mrf.mxu0
        %v3635 = vadd.f32 0.0, %v3634
        %v3636 = vpop.f32.mrf.mxu0
        %v3637 = vpop.f32.mrf.mxu0
        %v3638 = vadd.f32 0.0, %v3637
        %v3639 = vpop.f32.mrf.mxu0
        %3640 = vmatprep.mubr.bf16.mxu0 0
        %3641 = vmatmul.mubr.bf16.gmra.mxu0 %v3499
        %v3642 = vpop.f32.mrf.mxu0
        %v3643 = vadd.f32 0.0, %v3642
        %v3644 = vpop.f32.mrf.mxu0
        %v3645 = vpop.f32.mrf.mxu0
        %v3646 = vadd.f32 0.0, %v3645
        %v3647 = vpop.f32.mrf.mxu0
        %3648 = vmatprep.mubr.bf16.mxu0 0
        %3649 = vmatmul.mubr.bf16.gmra.mxu0 %v3502
        %v3650 = vpop.f32.mrf.mxu0
        %v3651 = vadd.f32 0.0, %v3650
        %v3652 = vpop.f32.mrf.mxu0
        %v3653 = vpop.f32.mrf.mxu0
        %v3654 = vadd.f32 0.0, %v3653
        %v3655 = vpop.f32.mrf.mxu0
        %3656 = vmatprep.mubr.bf16.mxu0 0
        %3657 = vmatmul.mubr.bf16.gmra.mxu0 %v3505
        %v3658 = vpop.f32.mrf.mxu0
        %v3659 = vadd.f32 0.0, %v3658
        %v3660 = vpop.f32.mrf.mxu0
        %v3661 = vpop.f32.mrf.mxu0
        %v3662 = vadd.f32 0.0, %v3661
        %v3663 = vpop.f32.mrf.mxu0
        %3664 = vmatprep.mubr.bf16.mxu0 0
        %3665 = vmatmul.mubr.bf16.gmra.mxu0 %v3508
        %v3666 = vpop.f32.mrf.mxu0
        %v3667 = vadd.f32 0.0, %v3666
        %v3668 = vpop.f32.mrf.mxu0
        %v3669 = vpop.f32.mrf.mxu0
        %v3670 = vadd.f32 0.0, %v3669
        %v3671 = vpop.f32.mrf.mxu0
        %3672 = vmatprep.mubr.bf16.mxu0 0
        %3673 = vmatmul.mubr.bf16.gmra.mxu0 %v3511
        %v3674 = vpop.f32.mrf.mxu0
        %v3675 = vadd.f32 0.0, %v3674
        %v3676 = vpop.f32.mrf.mxu0
        %v3677 = vpop.f32.mrf.mxu0
        %v3678 = vadd.f32 0.0, %v3677
        %v3679 = vpop.f32.mrf.mxu0
        %3680 = vmatprep.mubr.bf16.mxu0 0
        %3681 = vmatmul.mubr.bf16.gmra.mxu0 %v3514
        %v3682 = vpop.f32.mrf.mxu0
        %v3683 = vadd.f32 0.0, %v3682
        %v3684 = vpop.f32.mrf.mxu0
        %v3685 = vpop.f32.mrf.mxu0
        %v3686 = vadd.f32 0.0, %v3685
        %v3687 = vpop.f32.mrf.mxu0
        %3688 = vmatprep.mubr.bf16.mxu0 0
        %3689 = vmatmul.mubr.bf16.gmra.mxu0 %v3517
        %v3690 = vpop.f32.mrf.mxu0
        %v3691 = vadd.f32 0.0, %v3690
        %v3692 = vpop.f32.mrf.mxu0
        %v3693 = vpop.f32.mrf.mxu0
        %v3694 = vadd.f32 0.0, %v3693
        %v3695 = vpop.f32.mrf.mxu0
        %3696 = vmatprep.mubr.bf16.mxu0 0
        %3697 = vmatmul.mubr.bf16.gmra.mxu0 %v3520
        %v3698 = vpop.f32.mrf.mxu0
        %v3699 = vadd.f32 0.0, %v3698
        %v3700 = vpop.f32.mrf.mxu0
        %v3701 = vpop.f32.mrf.mxu0
        %v3702 = vadd.f32 0.0, %v3701
        %v3703 = vpop.f32.mrf.mxu0
        %3704 = vmatprep.mubr.bf16.mxu0 0
        %3705 = vmatmul.mubr.bf16.gmra.mxu0 %v3523
        %v3706 = vpop.f32.mrf.mxu0
        %v3707 = vadd.f32 0.0, %v3706
        %v3708 = vpop.f32.mrf.mxu0
        %v3709 = vpop.f32.mrf.mxu0
        %v3710 = vadd.f32 0.0, %v3709
        %v3711 = vpop.f32.mrf.mxu0
        %3712 = vmatprep.mubr.bf16.mxu0 0
        %3713 = vmatmul.mubr.bf16.gmra.mxu0 %v3526
        %v3714 = vpop.f32.mrf.mxu0
        %v3715 = vadd.f32 0.0, %v3714
        %v3716 = vpop.f32.mrf.mxu0
        %v3717 = vpop.f32.mrf.mxu0
        %v3718 = vadd.f32 0.0, %v3717
        %v3719 = vpop.f32.mrf.mxu0
        %3720 = vmatprep.mubr.bf16.mxu0 0
        %3721 = vmatmul.mubr.bf16.gmra.mxu0 %v3529
        %v3722 = vpop.f32.mrf.mxu0
        %v3723 = vadd.f32 0.0, %v3722
        %v3724 = vpop.f32.mrf.mxu0
        %v3725 = vpop.f32.mrf.mxu0
        %v3726 = vadd.f32 0.0, %v3725
        %v3727 = vpop.f32.mrf.mxu0
        %3728 = vmatprep.mubr.bf16.mxu0 0
        %3729 = vmatmul.mubr.bf16.gmra.mxu0 %v3532
        %v3730 = vpop.f32.mrf.mxu0
        %v3731 = vadd.f32 0.0, %v3730
        %v3732 = vpop.f32.mrf.mxu0
        %v3733 = vpop.f32.mrf.mxu0
        %v3734 = vadd.f32 0.0, %v3733
        %v3735 = vpop.f32.mrf.mxu0
        %3736 = vmatprep.mubr.bf16.mxu0 0
        %3737 = vmatmul.mubr.bf16.gmra.mxu0 %v3535
        %v3738 = vpop.f32.mrf.mxu0
        %v3739 = vadd.f32 0.0, %v3738
        %v3740 = vpop.f32.mrf.mxu0
        %v3741 = vpop.f32.mrf.mxu0
        %v3742 = vadd.f32 0.0, %v3741
        %v3743 = vpop.f32.mrf.mxu0
        %3744 = vmatprep.mubr.bf16.mxu0 0
        %3745 = vmatmul.mubr.bf16.gmra.mxu0 %v3538
        %v3746 = vpop.f32.mrf.mxu0
        %v3747 = vadd.f32 0.0, %v3746
        %v3748 = vpop.f32.mrf.mxu0
        %v3749 = vpop.f32.mrf.mxu0
        %v3750 = vadd.f32 0.0, %v3749
        %v3751 = vpop.f32.mrf.mxu0
        %3752 = vmatprep.mubr.bf16.mxu0 0
        %3753 = vmatmul.mubr.bf16.gmra.mxu0 %v3541
        %v3754 = vpop.f32.mrf.mxu0
        %v3755 = vadd.f32 0.0, %v3754
        %v3756 = vpop.f32.mrf.mxu0
        %v3757 = vpop.f32.mrf.mxu0
        %v3758 = vadd.f32 0.0, %v3757
        %v3759 = vpop.f32.mrf.mxu0
        %3760 = vmatprep.mubr.bf16.mxu0 0
        %3761 = vmatmul.mubr.bf16.gmra.mxu0 %v3544
        %v3762 = vpop.f32.mrf.mxu0
        %v3763 = vadd.f32 0.0, %v3762
        %v3764 = vpop.f32.mrf.mxu0
        %v3765 = vpop.f32.mrf.mxu0
        %v3766 = vadd.f32 0.0, %v3765
        %v3767 = vpop.f32.mrf.mxu0
        %3768 = vmatprep.mubr.bf16.mxu0 0
        %3769 = vmatmul.mubr.bf16.gmra.mxu0 %v3547
        %v3770 = vpop.f32.mrf.mxu0
        %v3771 = vadd.f32 0.0, %v3770
        %v3772 = vpop.f32.mrf.mxu0
        %v3773 = vpop.f32.mrf.mxu0
        %v3774 = vadd.f32 0.0, %v3773
        %v3775 = vpop.f32.mrf.mxu0
        %3776 = vdwg.mxu0
        %v3777 = vadd.f32 %v3378, %v3587
        %v3778 = vadd.f32 %v3379, %v3590
        %v3779 = vadd.f32 %v3380, %v3595
        %v3780 = vadd.f32 %v3381, %v3598
        %v3781 = vadd.f32 %v3382, %v3603
        %v3782 = vadd.f32 %v3383, %v3606
        %v3783 = vadd.f32 %v3384, %v3611
        %v3784 = vadd.f32 %v3385, %v3614
        %v3785 = vadd.f32 %v3386, %v3619
        %v3786 = vadd.f32 %v3387, %v3622
        %v3787 = vadd.f32 %v3388, %v3627
        %v3788 = vadd.f32 %v3389, %v3630
        %v3789 = vadd.f32 %v3390, %v3635
        %v3790 = vadd.f32 %v3391, %v3638
        %v3791 = vadd.f32 %v3392, %v3643
        %v3792 = vadd.f32 %v3393, %v3646
        %v3793 = vadd.f32 %v3394, %v3651
        %v3794 = vadd.f32 %v3395, %v3654
        %v3795 = vadd.f32 %v3396, %v3659
        %v3796 = vadd.f32 %v3397, %v3662
        %v3797 = vadd.f32 %v3398, %v3667
        %v3798 = vadd.f32 %v3399, %v3670
        %v3799 = vadd.f32 %v3400, %v3675
        %v3800 = vadd.f32 %v3401, %v3678
        %v3801 = vadd.f32 %v3402, %v3683
        %v3802 = vadd.f32 %v3403, %v3686
        %v3803 = vadd.f32 %v3404, %v3691
        %v3804 = vadd.f32 %v3405, %v3694
        %v3805 = vadd.f32 %v3406, %v3699
        %v3806 = vadd.f32 %v3407, %v3702
        %v3807 = vadd.f32 %v3408, %v3707
        %v3808 = vadd.f32 %v3409, %v3710
        %v3809 = vadd.f32 %v3410, %v3715
        %v3810 = vadd.f32 %v3411, %v3718
        %v3811 = vadd.f32 %v3412, %v3723
        %v3812 = vadd.f32 %v3413, %v3726
        %v3813 = vadd.f32 %v3414, %v3731
        %v3814 = vadd.f32 %v3415, %v3734
        %v3815 = vadd.f32 %v3416, %v3739
        %v3816 = vadd.f32 %v3417, %v3742
        %v3817 = vadd.f32 %v3418, %v3747
        %v3818 = vadd.f32 %v3419, %v3750
        %v3819 = vadd.f32 %v3420, %v3755
        %v3820 = vadd.f32 %v3421, %v3758
        %v3821 = vadd.f32 %v3422, %v3763
        %v3822 = vadd.f32 %v3423, %v3766
        %v3823 = vadd.f32 %v3424, %v3771
        %v3824 = vadd.f32 %v3425, %v3774
        %s3825 = scalar_lea.vmem %s275, 16
        %v3826 = vld [vmem:[%s3825] sm:$0x3]
        %v3827 = vrot.slane %v2701, 1
        %v3828 = vsel %vm3028, %v3074, %v3827
        %v3829 = vrot.slane %v2702, 1
        %v3830 = vsel %vm3028, %v3827, %v3829
        %v3831 = vrot.slane %v2703, 1
        %v3832 = vsel %vm3028, %v3829, %v3831
        %v3833 = vrot.slane %v2704, 1
        %v3834 = vsel %vm3028, %v3831, %v3833
        %v3836 = vsel %vm460, %v3828, 0
        %v3839 = vsel %vm460, %v3830, 0
        %v3842 = vsel %vm460, %v3832, 0
        %v3845 = vsel %vm460, %v3834, 0
        %v3848 = vand.u32 %v3826, %v536
        %3850 = vmatprep.subr.bf16.mxu0 0
        %3851 = vmatpush1.bf16.msra.mxu0 0
        %3852 = vmatprep.subr.bf16.mxu0 0
        %3853 = vmatpush1.bf16.msra.mxu0 0
        %3854 = vmatprep.subr.bf16.mxu0 0
        %3855 = vmatpush1.bf16.msra.mxu0 0
        %3856 = vmatprep.subr.bf16.mxu0 0
        %3857 = vmatpush1.bf16.msra.mxu0 0
        %3858 = vmatprep.subr.bf16.mxu0 0
        %3859 = vmatpush1.bf16.msra.mxu0 0
        %3860 = vmatprep.subr.bf16.mxu0 0
        %3861 = vmatpush1.bf16.msra.mxu0 0
        %3862 = vmatprep.subr.bf16.mxu0 0
        %3863 = vmatpush1.bf16.msra.mxu0 0
        %3864 = vmatprep.subr.bf16.mxu0 0
        %3865 = vmatpush1.bf16.msra.mxu0 %v3848
        %3866 = vmatprep.subr.bf16.mxu0 0
        %3867 = vmatpush2.bf16.msra.mxu0 0
        %3868 = vmatprep.subr.bf16.mxu0 0
        %3869 = vmatpush2.bf16.msra.mxu0 0
        %3870 = vmatprep.subr.bf16.mxu0 0
        %3871 = vmatpush2.bf16.msra.mxu0 0
        %3872 = vmatprep.subr.bf16.mxu0 0
        %3873 = vmatpush2.bf16.msra.mxu0 0
        %3874 = vmatprep.subr.bf16.mxu0 0
        %3875 = vmatpush2.bf16.msra.mxu0 0
        %3876 = vmatprep.subr.bf16.mxu0 0
        %3877 = vmatpush2.bf16.msra.mxu0 0
        %3878 = vmatprep.subr.bf16.mxu0 0
        %3879 = vmatpush2.bf16.msra.mxu0 0
        %3880 = vmatprep.subr.bf16.mxu0 0
        %3881 = vmatpush2.bf16.msra.mxu0 0
        %3882 = vmatprep.mubr.bf16.mxu0 0
        %3883 = vmatmul.mubr.bf16.gmra.mxu0 %v3088
        %v3884 = vpop.f32.mrf.mxu0
        %v3885 = vadd.f32 0.0, %v3884
        %v3886 = vpop.f32.mrf.mxu0
        %v3887 = vpop.f32.mrf.mxu0
        %v3888 = vadd.f32 0.0, %v3887
        %v3889 = vpop.f32.mrf.mxu0
        %3890 = vmatprep.mubr.bf16.mxu0 0
        %3891 = vmatmul.mubr.bf16.gmra.mxu0 %v3091
        %v3892 = vpop.f32.mrf.mxu0
        %v3893 = vadd.f32 0.0, %v3892
        %v3894 = vpop.f32.mrf.mxu0
        %v3895 = vpop.f32.mrf.mxu0
        %v3896 = vadd.f32 0.0, %v3895
        %v3897 = vpop.f32.mrf.mxu0
        %3898 = vmatprep.mubr.bf16.mxu0 0
        %3899 = vmatmul.mubr.bf16.gmra.mxu0 %v3094
        %v3900 = vpop.f32.mrf.mxu0
        %v3901 = vadd.f32 0.0, %v3900
        %v3902 = vpop.f32.mrf.mxu0
        %v3903 = vpop.f32.mrf.mxu0
        %v3904 = vadd.f32 0.0, %v3903
        %v3905 = vpop.f32.mrf.mxu0
        %3906 = vmatprep.mubr.bf16.mxu0 0
        %3907 = vmatmul.mubr.bf16.gmra.mxu0 %v3097
        %v3908 = vpop.f32.mrf.mxu0
        %v3909 = vadd.f32 0.0, %v3908
        %v3910 = vpop.f32.mrf.mxu0
        %v3911 = vpop.f32.mrf.mxu0
        %v3912 = vadd.f32 0.0, %v3911
        %v3913 = vpop.f32.mrf.mxu0
        %3914 = vmatprep.mubr.bf16.mxu0 0
        %3915 = vmatmul.mubr.bf16.gmra.mxu0 %v3100
        %v3916 = vpop.f32.mrf.mxu0
        %v3917 = vadd.f32 0.0, %v3916
        %v3918 = vpop.f32.mrf.mxu0
        %v3919 = vpop.f32.mrf.mxu0
        %v3920 = vadd.f32 0.0, %v3919
        %v3921 = vpop.f32.mrf.mxu0
        %3922 = vmatprep.mubr.bf16.mxu0 0
        %3923 = vmatmul.mubr.bf16.gmra.mxu0 %v3103
        %v3924 = vpop.f32.mrf.mxu0
        %v3925 = vadd.f32 0.0, %v3924
        %v3926 = vpop.f32.mrf.mxu0
        %v3927 = vpop.f32.mrf.mxu0
        %v3928 = vadd.f32 0.0, %v3927
        %v3929 = vpop.f32.mrf.mxu0
        %3930 = vmatprep.mubr.bf16.mxu0 0
        %3931 = vmatmul.mubr.bf16.gmra.mxu0 %v3106
        %v3932 = vpop.f32.mrf.mxu0
        %v3933 = vadd.f32 0.0, %v3932
        %v3934 = vpop.f32.mrf.mxu0
        %v3935 = vpop.f32.mrf.mxu0
        %v3936 = vadd.f32 0.0, %v3935
        %v3937 = vpop.f32.mrf.mxu0
        %3938 = vmatprep.mubr.bf16.mxu0 0
        %3939 = vmatmul.mubr.bf16.gmra.mxu0 %v3109
        %v3940 = vpop.f32.mrf.mxu0
        %v3941 = vadd.f32 0.0, %v3940
        %v3942 = vpop.f32.mrf.mxu0
        %v3943 = vpop.f32.mrf.mxu0
        %v3944 = vadd.f32 0.0, %v3943
        %v3945 = vpop.f32.mrf.mxu0
        %3946 = vmatprep.mubr.bf16.mxu0 0
        %3947 = vmatmul.mubr.bf16.gmra.mxu0 %v3112
        %v3948 = vpop.f32.mrf.mxu0
        %v3949 = vadd.f32 0.0, %v3948
        %v3950 = vpop.f32.mrf.mxu0
        %v3951 = vpop.f32.mrf.mxu0
        %v3952 = vadd.f32 0.0, %v3951
        %v3953 = vpop.f32.mrf.mxu0
        %3954 = vmatprep.mubr.bf16.mxu0 0
        %3955 = vmatmul.mubr.bf16.gmra.mxu0 %v3115
        %v3956 = vpop.f32.mrf.mxu0
        %v3957 = vadd.f32 0.0, %v3956
        %v3958 = vpop.f32.mrf.mxu0
        %v3959 = vpop.f32.mrf.mxu0
        %v3960 = vadd.f32 0.0, %v3959
        %v3961 = vpop.f32.mrf.mxu0
        %3962 = vmatprep.mubr.bf16.mxu0 0
        %3963 = vmatmul.mubr.bf16.gmra.mxu0 %v3118
        %v3964 = vpop.f32.mrf.mxu0
        %v3965 = vadd.f32 0.0, %v3964
        %v3966 = vpop.f32.mrf.mxu0
        %v3967 = vpop.f32.mrf.mxu0
        %v3968 = vadd.f32 0.0, %v3967
        %v3969 = vpop.f32.mrf.mxu0
        %3970 = vmatprep.mubr.bf16.mxu0 0
        %3971 = vmatmul.mubr.bf16.gmra.mxu0 %v3121
        %v3972 = vpop.f32.mrf.mxu0
        %v3973 = vadd.f32 0.0, %v3972
        %v3974 = vpop.f32.mrf.mxu0
        %v3975 = vpop.f32.mrf.mxu0
        %v3976 = vadd.f32 0.0, %v3975
        %v3977 = vpop.f32.mrf.mxu0
        %3978 = vmatprep.mubr.bf16.mxu0 0
        %3979 = vmatmul.mubr.bf16.gmra.mxu0 %v3124
        %v3980 = vpop.f32.mrf.mxu0
        %v3981 = vadd.f32 0.0, %v3980
        %v3982 = vpop.f32.mrf.mxu0
        %v3983 = vpop.f32.mrf.mxu0
        %v3984 = vadd.f32 0.0, %v3983
        %v3985 = vpop.f32.mrf.mxu0
        %3986 = vmatprep.mubr.bf16.mxu0 0
        %3987 = vmatmul.mubr.bf16.gmra.mxu0 %v3127
        %v3988 = vpop.f32.mrf.mxu0
        %v3989 = vadd.f32 0.0, %v3988
        %v3990 = vpop.f32.mrf.mxu0
        %v3991 = vpop.f32.mrf.mxu0
        %v3992 = vadd.f32 0.0, %v3991
        %v3993 = vpop.f32.mrf.mxu0
        %3994 = vmatprep.mubr.bf16.mxu0 0
        %3995 = vmatmul.mubr.bf16.gmra.mxu0 %v3130
        %v3996 = vpop.f32.mrf.mxu0
        %v3997 = vadd.f32 0.0, %v3996
        %v3998 = vpop.f32.mrf.mxu0
        %v3999 = vpop.f32.mrf.mxu0
        %v4000 = vadd.f32 0.0, %v3999
        %v4001 = vpop.f32.mrf.mxu0
        %4002 = vmatprep.mubr.bf16.mxu0 0
        %4003 = vmatmul.mubr.bf16.gmra.mxu0 %v3133
        %v4004 = vpop.f32.mrf.mxu0
        %v4005 = vadd.f32 0.0, %v4004
        %v4006 = vpop.f32.mrf.mxu0
        %v4007 = vpop.f32.mrf.mxu0
        %v4008 = vadd.f32 0.0, %v4007
        %v4009 = vpop.f32.mrf.mxu0
        %4010 = vmatprep.mubr.bf16.mxu0 0
        %4011 = vmatmul.mubr.bf16.gmra.mxu0 %v3136
        %v4012 = vpop.f32.mrf.mxu0
        %v4013 = vadd.f32 0.0, %v4012
        %v4014 = vpop.f32.mrf.mxu0
        %v4015 = vpop.f32.mrf.mxu0
        %v4016 = vadd.f32 0.0, %v4015
        %v4017 = vpop.f32.mrf.mxu0
        %4018 = vmatprep.mubr.bf16.mxu0 0
        %4019 = vmatmul.mubr.bf16.gmra.mxu0 %v3139
        %v4020 = vpop.f32.mrf.mxu0
        %v4021 = vadd.f32 0.0, %v4020
        %v4022 = vpop.f32.mrf.mxu0
        %v4023 = vpop.f32.mrf.mxu0
        %v4024 = vadd.f32 0.0, %v4023
        %v4025 = vpop.f32.mrf.mxu0
        %4026 = vmatprep.mubr.bf16.mxu0 0
        %4027 = vmatmul.mubr.bf16.gmra.mxu0 %v3142
        %v4028 = vpop.f32.mrf.mxu0
        %v4029 = vadd.f32 0.0, %v4028
        %v4030 = vpop.f32.mrf.mxu0
        %v4031 = vpop.f32.mrf.mxu0
        %v4032 = vadd.f32 0.0, %v4031
        %v4033 = vpop.f32.mrf.mxu0
        %4034 = vmatprep.mubr.bf16.mxu0 0
        %4035 = vmatmul.mubr.bf16.gmra.mxu0 %v3145
        %v4036 = vpop.f32.mrf.mxu0
        %v4037 = vadd.f32 0.0, %v4036
        %v4038 = vpop.f32.mrf.mxu0
        %v4039 = vpop.f32.mrf.mxu0
        %v4040 = vadd.f32 0.0, %v4039
        %v4041 = vpop.f32.mrf.mxu0
        %4042 = vmatprep.mubr.bf16.mxu0 0
        %4043 = vmatmul.mubr.bf16.gmra.mxu0 %v3836
        %v4044 = vpop.f32.mrf.mxu0
        %v4045 = vadd.f32 0.0, %v4044
        %v4046 = vpop.f32.mrf.mxu0
        %v4047 = vpop.f32.mrf.mxu0
        %v4048 = vadd.f32 0.0, %v4047
        %v4049 = vpop.f32.mrf.mxu0
        %4050 = vmatprep.mubr.bf16.mxu0 0
        %4051 = vmatmul.mubr.bf16.gmra.mxu0 %v3839
        %v4052 = vpop.f32.mrf.mxu0
        %v4053 = vadd.f32 0.0, %v4052
        %v4054 = vpop.f32.mrf.mxu0
        %v4055 = vpop.f32.mrf.mxu0
        %v4056 = vadd.f32 0.0, %v4055
        %v4057 = vpop.f32.mrf.mxu0
        %4058 = vmatprep.mubr.bf16.mxu0 0
        %4059 = vmatmul.mubr.bf16.gmra.mxu0 %v3842
        %v4060 = vpop.f32.mrf.mxu0
        %v4061 = vadd.f32 0.0, %v4060
        %v4062 = vpop.f32.mrf.mxu0
        %v4063 = vpop.f32.mrf.mxu0
        %v4064 = vadd.f32 0.0, %v4063
        %v4065 = vpop.f32.mrf.mxu0
        %4066 = vmatprep.mubr.bf16.mxu0 0
        %4067 = vmatmul.mubr.bf16.gmra.mxu0 %v3845
        %v4068 = vpop.f32.mrf.mxu0
        %v4069 = vadd.f32 0.0, %v4068
        %v4070 = vpop.f32.mrf.mxu0
        %v4071 = vpop.f32.mrf.mxu0
        %v4072 = vadd.f32 0.0, %v4071
        %v4073 = vpop.f32.mrf.mxu0
        %4074 = vdwg.mxu0
        %v4075 = vadd.f32 %v3777, %v3885
        %v4076 = vadd.f32 %v3778, %v3888
        %v4077 = vadd.f32 %v3779, %v3893
        %v4078 = vadd.f32 %v3780, %v3896
        %v4079 = vadd.f32 %v3781, %v3901
        %v4080 = vadd.f32 %v3782, %v3904
        %v4081 = vadd.f32 %v3783, %v3909
        %v4082 = vadd.f32 %v3784, %v3912
        %v4083 = vadd.f32 %v3785, %v3917
        %v4084 = vadd.f32 %v3786, %v3920
        %v4085 = vadd.f32 %v3787, %v3925
        %v4086 = vadd.f32 %v3788, %v3928
        %v4087 = vadd.f32 %v3789, %v3933
        %v4088 = vadd.f32 %v3790, %v3936
        %v4089 = vadd.f32 %v3791, %v3941
        %v4090 = vadd.f32 %v3792, %v3944
        %v4091 = vadd.f32 %v3793, %v3949
        %v4092 = vadd.f32 %v3794, %v3952
        %v4093 = vadd.f32 %v3795, %v3957
        %v4094 = vadd.f32 %v3796, %v3960
        %v4095 = vadd.f32 %v3797, %v3965
        %v4096 = vadd.f32 %v3798, %v3968
        %v4097 = vadd.f32 %v3799, %v3973
        %v4098 = vadd.f32 %v3800, %v3976
        %v4099 = vadd.f32 %v3801, %v3981
        %v4100 = vadd.f32 %v3802, %v3984
        %v4101 = vadd.f32 %v3803, %v3989
        %v4102 = vadd.f32 %v3804, %v3992
        %v4103 = vadd.f32 %v3805, %v3997
        %v4104 = vadd.f32 %v3806, %v4000
        %v4105 = vadd.f32 %v3807, %v4005
        %v4106 = vadd.f32 %v3808, %v4008
        %v4107 = vadd.f32 %v3809, %v4013
        %v4108 = vadd.f32 %v3810, %v4016
        %v4109 = vadd.f32 %v3811, %v4021
        %v4110 = vadd.f32 %v3812, %v4024
        %v4111 = vadd.f32 %v3813, %v4029
        %v4112 = vadd.f32 %v3814, %v4032
        %v4113 = vadd.f32 %v3815, %v4037
        %v4114 = vadd.f32 %v3816, %v4040
        %v4115 = vadd.f32 %v3817, %v4045
        %v4116 = vadd.f32 %v3818, %v4048
        %v4117 = vadd.f32 %v3819, %v4053
        %v4118 = vadd.f32 %v3820, %v4056
        %v4119 = vadd.f32 %v3821, %v4061
        %v4120 = vadd.f32 %v3822, %v4064
        %v4121 = vadd.f32 %v3823, %v4069
        %v4122 = vadd.f32 %v3824, %v4072
        %v4123 = vld [vmem:[%s278] sm:$0x1]
        %v4125 = vlaneseq
        %v4126 = vshrl.u32 %v4125, 7
        %v4127 = vsub.s32 0, %v4126
        %v4128 = vrot.slane %v4123, %v4127
        %v4130 = vmul.f32 %v4075, %v4128
        %v4131 = vmul.f32 %v4076, %v4128
        %v4132 = vmul.f32 %v4077, %v4128
        %v4133 = vmul.f32 %v4078, %v4128
        %v4134 = vmul.f32 %v4079, %v4128
        %v4135 = vmul.f32 %v4080, %v4128
        %v4136 = vmul.f32 %v4081, %v4128
        %v4137 = vmul.f32 %v4082, %v4128
        %v4138 = vmul.f32 %v4083, %v4128
        %v4139 = vmul.f32 %v4084, %v4128
        %v4140 = vmul.f32 %v4085, %v4128
        %v4141 = vmul.f32 %v4086, %v4128
        %v4142 = vmul.f32 %v4087, %v4128
        %v4143 = vmul.f32 %v4088, %v4128
        %v4144 = vmul.f32 %v4089, %v4128
        %v4145 = vmul.f32 %v4090, %v4128
        %v4146 = vmul.f32 %v4091, %v4128
        %v4147 = vmul.f32 %v4092, %v4128
        %v4148 = vmul.f32 %v4093, %v4128
        %v4149 = vmul.f32 %v4094, %v4128
        %v4150 = vmul.f32 %v4095, %v4128
        %v4151 = vmul.f32 %v4096, %v4128
        %v4152 = vmul.f32 %v4097, %v4128
        %v4153 = vmul.f32 %v4098, %v4128
        %v4154 = vmul.f32 %v4099, %v4128
        %v4155 = vmul.f32 %v4100, %v4128
        %v4156 = vmul.f32 %v4101, %v4128
        %v4157 = vmul.f32 %v4102, %v4128
        %v4158 = vmul.f32 %v4103, %v4128
        %v4159 = vmul.f32 %v4104, %v4128
        %v4160 = vmul.f32 %v4105, %v4128
        %v4161 = vmul.f32 %v4106, %v4128
        %v4162 = vmul.f32 %v4107, %v4128
        %v4163 = vmul.f32 %v4108, %v4128
        %v4164 = vmul.f32 %v4109, %v4128
        %v4165 = vmul.f32 %v4110, %v4128
        %v4166 = vmul.f32 %v4111, %v4128
        %v4167 = vmul.f32 %v4112, %v4128
        %v4168 = vmul.f32 %v4113, %v4128
        %v4169 = vmul.f32 %v4114, %v4128
        %v4170 = vmul.f32 %v4115, %v4128
        %v4171 = vmul.f32 %v4116, %v4128
        %v4172 = vmul.f32 %v4117, %v4128
        %v4173 = vmul.f32 %v4118, %v4128
        %v4174 = vmul.f32 %v4119, %v4128
        %v4175 = vmul.f32 %v4120, %v4128
        %v4176 = vmul.f32 %v4121, %v4128
        %v4177 = vmul.f32 %v4122, %v4128
        %v4178 = vld [vmem:[%s281] sm:$0x1]
        %v4180 = vlaneseq
        %v4181 = vshrl.u32 %v4180, 7
        %v4182 = vsub.s32 0, %v4181
        %v4183 = vrot.slane %v4178, %v4182
        %v4185 = vadd.f32 %v4130, %v4183
        %v4186 = vadd.f32 %v4131, %v4183
        %v4187 = vadd.f32 %v4132, %v4183
        %v4188 = vadd.f32 %v4133, %v4183
        %v4189 = vadd.f32 %v4134, %v4183
        %v4190 = vadd.f32 %v4135, %v4183
        %v4191 = vadd.f32 %v4136, %v4183
        %v4192 = vadd.f32 %v4137, %v4183
        %v4193 = vadd.f32 %v4138, %v4183
        %v4194 = vadd.f32 %v4139, %v4183
        %v4195 = vadd.f32 %v4140, %v4183
        %v4196 = vadd.f32 %v4141, %v4183
        %v4197 = vadd.f32 %v4142, %v4183
        %v4198 = vadd.f32 %v4143, %v4183
        %v4199 = vadd.f32 %v4144, %v4183
        %v4200 = vadd.f32 %v4145, %v4183
        %v4201 = vadd.f32 %v4146, %v4183
        %v4202 = vadd.f32 %v4147, %v4183
        %v4203 = vadd.f32 %v4148, %v4183
        %v4204 = vadd.f32 %v4149, %v4183
        %v4205 = vadd.f32 %v4150, %v4183
        %v4206 = vadd.f32 %v4151, %v4183
        %v4207 = vadd.f32 %v4152, %v4183
        %v4208 = vadd.f32 %v4153, %v4183
        %v4209 = vadd.f32 %v4154, %v4183
        %v4210 = vadd.f32 %v4155, %v4183
        %v4211 = vadd.f32 %v4156, %v4183
        %v4212 = vadd.f32 %v4157, %v4183
        %v4213 = vadd.f32 %v4158, %v4183
        %v4214 = vadd.f32 %v4159, %v4183
        %v4215 = vadd.f32 %v4160, %v4183
        %v4216 = vadd.f32 %v4161, %v4183
        %v4217 = vadd.f32 %v4162, %v4183
        %v4218 = vadd.f32 %v4163, %v4183
        %v4219 = vadd.f32 %v4164, %v4183
        %v4220 = vadd.f32 %v4165, %v4183
        %v4221 = vadd.f32 %v4166, %v4183
        %v4222 = vadd.f32 %v4167, %v4183
        %v4223 = vadd.f32 %v4168, %v4183
        %v4224 = vadd.f32 %v4169, %v4183
        %v4225 = vadd.f32 %v4170, %v4183
        %v4226 = vadd.f32 %v4171, %v4183
        %v4227 = vadd.f32 %v4172, %v4183
        %v4228 = vadd.f32 %v4173, %v4183
        %v4229 = vadd.f32 %v4174, %v4183
        %v4230 = vadd.f32 %v4175, %v4183
        %v4231 = vadd.f32 %v4176, %v4183
        %v4232 = vadd.f32 %v4177, %v4183
        %v4233 = vmax.f32 %v4185, 0.0
        %v4234 = vmax.f32 %v4186, 0.0
        %v4235 = vmax.f32 %v4187, 0.0
        %v4236 = vmax.f32 %v4188, 0.0
        %v4237 = vmax.f32 %v4189, 0.0
        %v4238 = vmax.f32 %v4190, 0.0
        %v4239 = vmax.f32 %v4191, 0.0
        %v4240 = vmax.f32 %v4192, 0.0
        %v4241 = vmax.f32 %v4193, 0.0
        %v4242 = vmax.f32 %v4194, 0.0
        %v4243 = vmax.f32 %v4195, 0.0
        %v4244 = vmax.f32 %v4196, 0.0
        %v4245 = vmax.f32 %v4197, 0.0
        %v4246 = vmax.f32 %v4198, 0.0
        %v4247 = vmax.f32 %v4199, 0.0
        %v4248 = vmax.f32 %v4200, 0.0
        %v4249 = vmax.f32 %v4201, 0.0
        %v4250 = vmax.f32 %v4202, 0.0
        %v4251 = vmax.f32 %v4203, 0.0
        %v4252 = vmax.f32 %v4204, 0.0
        %v4253 = vmax.f32 %v4205, 0.0
        %v4254 = vmax.f32 %v4206, 0.0
        %v4255 = vmax.f32 %v4207, 0.0
        %v4256 = vmax.f32 %v4208, 0.0
        %v4257 = vmax.f32 %v4209, 0.0
        %v4258 = vmax.f32 %v4210, 0.0
        %v4259 = vmax.f32 %v4211, 0.0
        %v4260 = vmax.f32 %v4212, 0.0
        %v4261 = vmax.f32 %v4213, 0.0
        %v4262 = vmax.f32 %v4214, 0.0
        %v4263 = vmax.f32 %v4215, 0.0
        %v4264 = vmax.f32 %v4216, 0.0
        %v4265 = vmax.f32 %v4217, 0.0
        %v4266 = vmax.f32 %v4218, 0.0
        %v4267 = vmax.f32 %v4219, 0.0
        %v4268 = vmax.f32 %v4220, 0.0
        %v4269 = vmax.f32 %v4221, 0.0
        %v4270 = vmax.f32 %v4222, 0.0
        %v4271 = vmax.f32 %v4223, 0.0
        %v4272 = vmax.f32 %v4224, 0.0
        %v4273 = vmax.f32 %v4225, 0.0
        %v4274 = vmax.f32 %v4226, 0.0
        %v4275 = vmax.f32 %v4227, 0.0
        %v4276 = vmax.f32 %v4228, 0.0
        %v4277 = vmax.f32 %v4229, 0.0
        %v4278 = vmax.f32 %v4230, 0.0
        %v4279 = vmax.f32 %v4231, 0.0
        %v4280 = vmax.f32 %v4232, 0.0
        %vm4281 = vcmask 519168
        %4282 = vst.msk [vmem:[%s266] sm:$0xf] %vm4281, 0
        %4283 = vst.msk [vmem:[%s266 + $0x4] sm:$0xf] %vm4281, 0
        %4284 = vst.msk [vmem:[%s266 + $0x8] sm:$0xf] %vm4281, 0
        %4285 = vst.msk [vmem:[%s266 + $0xc] sm:$0xf] %vm4281, 0
        %4286 = vst.msk [vmem:[%s266 + $0x10] sm:$0xf] %vm4281, 0
        %4287 = vst.msk [vmem:[%s266 + $0x14] sm:$0xf] %vm4281, 0
        %4288 = vst.msk [vmem:[%s266 + $0x18] sm:$0xf] %vm4281, 0
        %4289 = vst.msk [vmem:[%s266 + $0x1c] sm:$0xf] %vm4281, 0
        %4290 = vst.msk [vmem:[%s266 + $0x20] sm:$0xf] %vm4281, 0
        %4291 = vst.msk [vmem:[%s266 + $0x24] sm:$0xf] %vm4281, 0
        %4292 = vst.msk [vmem:[%s266 + $0x28] sm:$0xf] %vm4281, 0
        %4293 = vst.msk [vmem:[%s266 + $0x2c] sm:$0xf] %vm4281, 0
        %4294 = vst.msk [vmem:[%s266 + $0x30] sm:$0xf] %vm4281, 0
        %4295 = vst.msk [vmem:[%s266 + $0x34] sm:$0xf] %vm4281, 0
        %4296 = vst.msk [vmem:[%s266 + $0x38] sm:$0xf] %vm4281, 0
        %4297 = vst.msk [vmem:[%s266 + $0x3c] sm:$0xf] %vm4281, 0
        %4298 = vst.msk [vmem:[%s266 + $0x40] sm:$0xf] %vm4281, 0
        %4299 = vst.msk [vmem:[%s266 + $0x44] sm:$0xf] %vm4281, 0
        %4300 = vst.msk [vmem:[%s266 + $0x48] sm:$0xf] %vm4281, 0
        %4301 = vst.msk [vmem:[%s266 + $0x4c] sm:$0xf] %vm4281, 0
        %4302 = vst.msk [vmem:[%s266 + $0x50] sm:$0xf] %vm4281, 0
        %4303 = vst.msk [vmem:[%s266 + $0x54] sm:$0xf] %vm4281, 0
        %v4304 = vld [vmem:[%s4] sm:$0xff]
        %v4305 = vadd.f32 %v4233, %v4236
        %v4306 = vadd.f32 %v4234, %v4237
        %v4307 = vadd.f32 %v4235, %v4238
        %vm4308 = vcmask 195584
        %v4310 = vsel %vm4308, %v4304, 0
        %4312 = vmatprep.subr.mxu0 0.0
        %4313 = vmatpush1.msra.mxu0 0.0
        %4314 = vmatprep.subr.mxu0 0.0
        %4315 = vmatpush1.msra.mxu0 0.0
        %4316 = vmatprep.subr.mxu0 0.0
        %4317 = vmatpush1.msra.mxu0 0.0
        %4318 = vmatprep.subr.mxu0 0.0
        %4319 = vmatpush1.msra.mxu0 0.0
        %4320 = vmatprep.subr.mxu0 0.0
        %4321 = vmatpush1.msra.mxu0 0.0
        %4322 = vmatprep.subr.mxu0 0.0
        %4323 = vmatpush1.msra.mxu0 0.0
        %4324 = vmatprep.subr.mxu0 0.0
        %4325 = vmatpush1.msra.mxu0 0.0
        %4326 = vmatprep.subr.mxu0 0.0
        %4327 = vmatpush1.msra.mxu0 0.0
        %4328 = vmatprep.subr.mxu0 0.0
        %4329 = vmatpush1.msra.mxu0 0.0
        %4330 = vmatprep.subr.mxu0 0.0
        %4331 = vmatpush1.msra.mxu0 0.0
        %4332 = vmatprep.subr.mxu0 0.0
        %4333 = vmatpush1.msra.mxu0 0.0
        %4334 = vmatprep.subr.mxu0 0.0
        %4335 = vmatpush1.msra.mxu0 0.0
        %4336 = vmatprep.subr.mxu0 0.0
        %4337 = vmatpush1.msra.mxu0 0.0
        %4338 = vmatprep.subr.mxu0 0.0
        %4339 = vmatpush1.msra.mxu0 %v4307
        %4340 = vmatprep.subr.mxu0 0.0
        %4341 = vmatpush1.msra.mxu0 %v4306
        %4342 = vmatprep.subr.mxu0 0.0
        %4343 = vmatpush1.msra.mxu0 %v4305
        %4344 = vmatprep.subr.mxu0 0.0
        %4345 = vmatpush2.msra.mxu0 0.0
        %4346 = vmatprep.subr.mxu0 0.0
        %4347 = vmatpush2.msra.mxu0 0.0
        %4348 = vmatprep.subr.mxu0 0.0
        %4349 = vmatpush2.msra.mxu0 0.0
        %4350 = vmatprep.subr.mxu0 0.0
        %4351 = vmatpush2.msra.mxu0 0.0
        %4352 = vmatprep.subr.mxu0 0.0
        %4353 = vmatpush2.msra.mxu0 0.0
        %4354 = vmatprep.subr.mxu0 0.0
        %4355 = vmatpush2.msra.mxu0 0.0
        %4356 = vmatprep.subr.mxu0 0.0
        %4357 = vmatpush2.msra.mxu0 0.0
        %4358 = vmatprep.subr.mxu0 0.0
        %4359 = vmatpush2.msra.mxu0 0.0
        %4360 = vmatprep.subr.mxu0 0.0
        %4361 = vmatpush2.msra.mxu0 0.0
        %4362 = vmatprep.subr.mxu0 0.0
        %4363 = vmatpush2.msra.mxu0 0.0
        %4364 = vmatprep.subr.mxu0 0.0
        %4365 = vmatpush2.msra.mxu0 0.0
        %4366 = vmatprep.subr.mxu0 0.0
        %4367 = vmatpush2.msra.mxu0 0.0
        %4368 = vmatprep.subr.mxu0 0.0
        %4369 = vmatpush2.msra.mxu0 0.0
        %4370 = vmatprep.subr.mxu0 0.0
        %4371 = vmatpush2.msra.mxu0 0.0
        %4372 = vmatprep.subr.mxu0 0.0
        %4373 = vmatpush2.msra.mxu0 0.0
        %4374 = vmatprep.subr.mxu0 0.0
        %4375 = vmatpush2.msra.mxu0 0.0
        %4376 = vmatprep.mubr.f32.mxu0 0.0
        %4377 = vmatmul.mubr.f32.gmra.mxu0 %v4310
        %v4378 = vpop.f32.mrf.mxu0
        %v4379 = vadd.f32 0.0, %v4378
        %v4380 = vpop.f32.mrf.mxu0
        %4381 = vdwg.mxu0
        %v4382 = vpack.c.bf16 %v4379, %v4379
        %v4384 = vunpack.c.l.b16 %v4382
        %v4385 = vpack.c.b16 %v4384, %v4384
        %v4387 = vshrl.u32 %v4385, 16
        %v4389 = vrot.slane %v4387, 7
        %v4390 = vshll.u32 %v4385, 16
        %v4392 = vor.u32 %v4389, %v4390
        %v4393 = vrot.slane %v4389, 4
        %s4396 = scalar_lea.vmem %s266, 8 [#allocation2]
        %vm4397 = vcmask 519168
        %vm4398 = vsmask.f32 7938
        %vm4399 = vmand %vm4397, %vm4398
        %v4400 = vld [vmem:[%s4396] sm:$0xf]
        %v4401 = vsel %vm4399, %v4392, %v4400
        %4402 = vst [vmem:[%s4396] sm:$0xf] %v4401
        %vm4403 = vcmask 516096
        %vm4404 = vsmask.f32 256
        %vm4405 = vmand %vm4403, %vm4404
        %v4406 = vld [vmem:[%s4396 + $0x4] sm:$0x1]
        %v4407 = vsel %vm4405, %v4393, %v4406
        %4408 = vst [vmem:[%s4396 + $0x4] sm:$0x1] %v4407
        %v4409 = vadd.f32 %v4239, %v4242
        %v4410 = vadd.f32 %v4240, %v4243
        %v4411 = vadd.f32 %v4241, %v4244
        %4412 = vmatprep.subr.mxu0 0.0
        %4413 = vmatpush1.msra.mxu0 0.0
        %4414 = vmatprep.subr.mxu0 0.0
        %4415 = vmatpush1.msra.mxu0 0.0
        %4416 = vmatprep.subr.mxu0 0.0
        %4417 = vmatpush1.msra.mxu0 0.0
        %4418 = vmatprep.subr.mxu0 0.0
        %4419 = vmatpush1.msra.mxu0 0.0
        %4420 = vmatprep.subr.mxu0 0.0
        %4421 = vmatpush1.msra.mxu0 0.0
        %4422 = vmatprep.subr.mxu0 0.0
        %4423 = vmatpush1.msra.mxu0 0.0
        %4424 = vmatprep.subr.mxu0 0.0
        %4425 = vmatpush1.msra.mxu0 0.0
        %4426 = vmatprep.subr.mxu0 0.0
        %4427 = vmatpush1.msra.mxu0 0.0
        %4428 = vmatprep.subr.mxu0 0.0
        %4429 = vmatpush1.msra.mxu0 0.0
        %4430 = vmatprep.subr.mxu0 0.0
        %4431 = vmatpush1.msra.mxu0 0.0
        %4432 = vmatprep.subr.mxu0 0.0
        %4433 = vmatpush1.msra.mxu0 0.0
        %4434 = vmatprep.subr.mxu0 0.0
        %4435 = vmatpush1.msra.mxu0 0.0
        %4436 = vmatprep.subr.mxu0 0.0
        %4437 = vmatpush1.msra.mxu0 0.0
        %4438 = vmatprep.subr.mxu0 0.0
        %4439 = vmatpush1.msra.mxu0 %v4411
        %4440 = vmatprep.subr.mxu0 0.0
        %4441 = vmatpush1.msra.mxu0 %v4410
        %4442 = vmatprep.subr.mxu0 0.0
        %4443 = vmatpush1.msra.mxu0 %v4409
        %4444 = vmatprep.subr.mxu0 0.0
        %4445 = vmatpush2.msra.mxu0 0.0
        %4446 = vmatprep.subr.mxu0 0.0
        %4447 = vmatpush2.msra.mxu0 0.0
        %4448 = vmatprep.subr.mxu0 0.0
        %4449 = vmatpush2.msra.mxu0 0.0
        %4450 = vmatprep.subr.mxu0 0.0
        %4451 = vmatpush2.msra.mxu0 0.0
        %4452 = vmatprep.subr.mxu0 0.0
        %4453 = vmatpush2.msra.mxu0 0.0
        %4454 = vmatprep.subr.mxu0 0.0
        %4455 = vmatpush2.msra.mxu0 0.0
        %4456 = vmatprep.subr.mxu0 0.0
        %4457 = vmatpush2.msra.mxu0 0.0
        %4458 = vmatprep.subr.mxu0 0.0
        %4459 = vmatpush2.msra.mxu0 0.0
        %4460 = vmatprep.subr.mxu0 0.0
        %4461 = vmatpush2.msra.mxu0 0.0
        %4462 = vmatprep.subr.mxu0 0.0
        %4463 = vmatpush2.msra.mxu0 0.0
        %4464 = vmatprep.subr.mxu0 0.0
        %4465 = vmatpush2.msra.mxu0 0.0
        %4466 = vmatprep.subr.mxu0 0.0
        %4467 = vmatpush2.msra.mxu0 0.0
        %4468 = vmatprep.subr.mxu0 0.0
        %4469 = vmatpush2.msra.mxu0 0.0
        %4470 = vmatprep.subr.mxu0 0.0
        %4471 = vmatpush2.msra.mxu0 0.0
        %4472 = vmatprep.subr.mxu0 0.0
        %4473 = vmatpush2.msra.mxu0 0.0
        %4474 = vmatprep.subr.mxu0 0.0
        %4475 = vmatpush2.msra.mxu0 0.0
        %4476 = vmatprep.mubr.f32.mxu0 0.0
        %4477 = vmatmul.mubr.f32.gmra.mxu0 %v4310
        %v4478 = vpop.f32.mrf.mxu0
        %v4479 = vadd.f32 0.0, %v4478
        %v4480 = vpop.f32.mrf.mxu0
        %4481 = vdwg.mxu0
        %v4482 = vpack.c.bf16 %v4479, %v4479
        %v4484 = vunpack.c.l.b16 %v4482
        %v4485 = vpack.c.b16 %v4484, %v4484
        %v4487 = vshrl.u32 %v4485, 16
        %v4489 = vrot.slane %v4487, 7
        %v4490 = vshll.u32 %v4485, 16
        %v4492 = vor.u32 %v4489, %v4490
        %v4493 = vrot.slane %v4489, 4
        %s4496 = scalar_lea.vmem %s266, 16 [#allocation2]
        %v4497 = vld [vmem:[%s4496] sm:$0xf]
        %v4498 = vsel %vm4399, %v4492, %v4497
        %4499 = vst [vmem:[%s4496] sm:$0xf] %v4498
        %v4500 = vld [vmem:[%s4496 + $0x4] sm:$0x1]
        %v4501 = vsel %vm4405, %v4493, %v4500
        %4502 = vst [vmem:[%s4496 + $0x4] sm:$0x1] %v4501
        %v4503 = vadd.f32 %v4245, %v4248
        %v4504 = vadd.f32 %v4246, %v4249
        %v4505 = vadd.f32 %v4247, %v4250
        %4506 = vmatprep.subr.mxu0 0.0
        %4507 = vmatpush1.msra.mxu0 0.0
        %4508 = vmatprep.subr.mxu0 0.0
        %4509 = vmatpush1.msra.mxu0 0.0
        %4510 = vmatprep.subr.mxu0 0.0
        %4511 = vmatpush1.msra.mxu0 0.0
        %4512 = vmatprep.subr.mxu0 0.0
        %4513 = vmatpush1.msra.mxu0 0.0
        %4514 = vmatprep.subr.mxu0 0.0
        %4515 = vmatpush1.msra.mxu0 0.0
        %4516 = vmatprep.subr.mxu0 0.0
        %4517 = vmatpush1.msra.mxu0 0.0
        %4518 = vmatprep.subr.mxu0 0.0
        %4519 = vmatpush1.msra.mxu0 0.0
        %4520 = vmatprep.subr.mxu0 0.0
        %4521 = vmatpush1.msra.mxu0 0.0
        %4522 = vmatprep.subr.mxu0 0.0
        %4523 = vmatpush1.msra.mxu0 0.0
        %4524 = vmatprep.subr.mxu0 0.0
        %4525 = vmatpush1.msra.mxu0 0.0
        %4526 = vmatprep.subr.mxu0 0.0
        %4527 = vmatpush1.msra.mxu0 0.0
        %4528 = vmatprep.subr.mxu0 0.0
        %4529 = vmatpush1.msra.mxu0 0.0
        %4530 = vmatprep.subr.mxu0 0.0
        %4531 = vmatpush1.msra.mxu0 0.0
        %4532 = vmatprep.subr.mxu0 0.0
        %4533 = vmatpush1.msra.mxu0 %v4505
        %4534 = vmatprep.subr.mxu0 0.0
        %4535 = vmatpush1.msra.mxu0 %v4504
        %4536 = vmatprep.subr.mxu0 0.0
        %4537 = vmatpush1.msra.mxu0 %v4503
        %4538 = vmatprep.subr.mxu0 0.0
        %4539 = vmatpush2.msra.mxu0 0.0
        %4540 = vmatprep.subr.mxu0 0.0
        %4541 = vmatpush2.msra.mxu0 0.0
        %4542 = vmatprep.subr.mxu0 0.0
        %4543 = vmatpush2.msra.mxu0 0.0
        %4544 = vmatprep.subr.mxu0 0.0
        %4545 = vmatpush2.msra.mxu0 0.0
        %4546 = vmatprep.subr.mxu0 0.0
        %4547 = vmatpush2.msra.mxu0 0.0
        %4548 = vmatprep.subr.mxu0 0.0
        %4549 = vmatpush2.msra.mxu0 0.0
        %4550 = vmatprep.subr.mxu0 0.0
        %4551 = vmatpush2.msra.mxu0 0.0
        %4552 = vmatprep.subr.mxu0 0.0
        %4553 = vmatpush2.msra.mxu0 0.0
        %4554 = vmatprep.subr.mxu0 0.0
        %4555 = vmatpush2.msra.mxu0 0.0
        %4556 = vmatprep.subr.mxu0 0.0
        %4557 = vmatpush2.msra.mxu0 0.0
        %4558 = vmatprep.subr.mxu0 0.0
        %4559 = vmatpush2.msra.mxu0 0.0
        %4560 = vmatprep.subr.mxu0 0.0
        %4561 = vmatpush2.msra.mxu0 0.0
        %4562 = vmatprep.subr.mxu0 0.0
        %4563 = vmatpush2.msra.mxu0 0.0
        %4564 = vmatprep.subr.mxu0 0.0
        %4565 = vmatpush2.msra.mxu0 0.0
        %4566 = vmatprep.subr.mxu0 0.0
        %4567 = vmatpush2.msra.mxu0 0.0
        %4568 = vmatprep.subr.mxu0 0.0
        %4569 = vmatpush2.msra.mxu0 0.0
        %4570 = vmatprep.mubr.f32.mxu0 0.0
        %4571 = vmatmul.mubr.f32.gmra.mxu0 %v4310
        %v4572 = vpop.f32.mrf.mxu0
        %v4573 = vadd.f32 0.0, %v4572
        %v4574 = vpop.f32.mrf.mxu0
        %4575 = vdwg.mxu0
        %v4576 = vpack.c.bf16 %v4573, %v4573
        %v4578 = vunpack.c.l.b16 %v4576
        %v4579 = vpack.c.b16 %v4578, %v4578
        %v4581 = vshrl.u32 %v4579, 16
        %v4583 = vrot.slane %v4581, 7
        %v4584 = vshll.u32 %v4579, 16
        %v4586 = vor.u32 %v4583, %v4584
        %v4587 = vrot.slane %v4583, 4
        %s4590 = scalar_lea.vmem %s266, 24 [#allocation2]
        %v4591 = vld [vmem:[%s4590] sm:$0xf]
        %v4592 = vsel %vm4399, %v4586, %v4591
        %4593 = vst [vmem:[%s4590] sm:$0xf] %v4592
        %v4594 = vld [vmem:[%s4590 + $0x4] sm:$0x1]
        %v4595 = vsel %vm4405, %v4587, %v4594
        %4596 = vst [vmem:[%s4590 + $0x4] sm:$0x1] %v4595
        %v4597 = vadd.f32 %v4251, %v4254
        %v4598 = vadd.f32 %v4252, %v4255
        %v4599 = vadd.f32 %v4253, %v4256
        %4600 = vmatprep.subr.mxu0 0.0
        %4601 = vmatpush1.msra.mxu0 0.0
        %4602 = vmatprep.subr.mxu0 0.0
        %4603 = vmatpush1.msra.mxu0 0.0
        %4604 = vmatprep.subr.mxu0 0.0
        %4605 = vmatpush1.msra.mxu0 0.0
        %4606 = vmatprep.subr.mxu0 0.0
        %4607 = vmatpush1.msra.mxu0 0.0
        %4608 = vmatprep.subr.mxu0 0.0
        %4609 = vmatpush1.msra.mxu0 0.0
        %4610 = vmatprep.subr.mxu0 0.0
        %4611 = vmatpush1.msra.mxu0 0.0
        %4612 = vmatprep.subr.mxu0 0.0
        %4613 = vmatpush1.msra.mxu0 0.0
        %4614 = vmatprep.subr.mxu0 0.0
        %4615 = vmatpush1.msra.mxu0 0.0
        %4616 = vmatprep.subr.mxu0 0.0
        %4617 = vmatpush1.msra.mxu0 0.0
        %4618 = vmatprep.subr.mxu0 0.0
        %4619 = vmatpush1.msra.mxu0 0.0
        %4620 = vmatprep.subr.mxu0 0.0
        %4621 = vmatpush1.msra.mxu0 0.0
        %4622 = vmatprep.subr.mxu0 0.0
        %4623 = vmatpush1.msra.mxu0 0.0
        %4624 = vmatprep.subr.mxu0 0.0
        %4625 = vmatpush1.msra.mxu0 0.0
        %4626 = vmatprep.subr.mxu0 0.0
        %4627 = vmatpush1.msra.mxu0 %v4599
        %4628 = vmatprep.subr.mxu0 0.0
        %4629 = vmatpush1.msra.mxu0 %v4598
        %4630 = vmatprep.subr.mxu0 0.0
        %4631 = vmatpush1.msra.mxu0 %v4597
        %4632 = vmatprep.subr.mxu0 0.0
        %4633 = vmatpush2.msra.mxu0 0.0
        %4634 = vmatprep.subr.mxu0 0.0
        %4635 = vmatpush2.msra.mxu0 0.0
        %4636 = vmatprep.subr.mxu0 0.0
        %4637 = vmatpush2.msra.mxu0 0.0
        %4638 = vmatprep.subr.mxu0 0.0
        %4639 = vmatpush2.msra.mxu0 0.0
        %4640 = vmatprep.subr.mxu0 0.0
        %4641 = vmatpush2.msra.mxu0 0.0
        %4642 = vmatprep.subr.mxu0 0.0
        %4643 = vmatpush2.msra.mxu0 0.0
        %4644 = vmatprep.subr.mxu0 0.0
        %4645 = vmatpush2.msra.mxu0 0.0
        %4646 = vmatprep.subr.mxu0 0.0
        %4647 = vmatpush2.msra.mxu0 0.0
        %4648 = vmatprep.subr.mxu0 0.0
        %4649 = vmatpush2.msra.mxu0 0.0
        %4650 = vmatprep.subr.mxu0 0.0
        %4651 = vmatpush2.msra.mxu0 0.0
        %4652 = vmatprep.subr.mxu0 0.0
        %4653 = vmatpush2.msra.mxu0 0.0
        %4654 = vmatprep.subr.mxu0 0.0
        %4655 = vmatpush2.msra.mxu0 0.0
        %4656 = vmatprep.subr.mxu0 0.0
        %4657 = vmatpush2.msra.mxu0 0.0
        %4658 = vmatprep.subr.mxu0 0.0
        %4659 = vmatpush2.msra.mxu0 0.0
        %4660 = vmatprep.subr.mxu0 0.0
        %4661 = vmatpush2.msra.mxu0 0.0
        %4662 = vmatprep.subr.mxu0 0.0
        %4663 = vmatpush2.msra.mxu0 0.0
        %4664 = vmatprep.mubr.f32.mxu0 0.0
        %4665 = vmatmul.mubr.f32.gmra.mxu0 %v4310
        %v4666 = vpop.f32.mrf.mxu0
        %v4667 = vadd.f32 0.0, %v4666
        %v4668 = vpop.f32.mrf.mxu0
        %4669 = vdwg.mxu0
        %v4670 = vpack.c.bf16 %v4667, %v4667
        %v4672 = vunpack.c.l.b16 %v4670
        %v4673 = vpack.c.b16 %v4672, %v4672
        %v4675 = vshrl.u32 %v4673, 16
        %v4677 = vrot.slane %v4675, 7
        %v4678 = vshll.u32 %v4673, 16
        %v4680 = vor.u32 %v4677, %v4678
        %v4681 = vrot.slane %v4677, 4
        %s4684 = scalar_lea.vmem %s266, 32 [#allocation2]
        %v4685 = vld [vmem:[%s4684] sm:$0xf]
        %v4686 = vsel %vm4399, %v4680, %v4685
        %4687 = vst [vmem:[%s4684] sm:$0xf] %v4686
        %v4688 = vld [vmem:[%s4684 + $0x4] sm:$0x1]
        %v4689 = vsel %vm4405, %v4681, %v4688
        %4690 = vst [vmem:[%s4684 + $0x4] sm:$0x1] %v4689
        %v4691 = vadd.f32 %v4257, %v4260
        %v4692 = vadd.f32 %v4258, %v4261
        %v4693 = vadd.f32 %v4259, %v4262
        %4694 = vmatprep.subr.mxu0 0.0
        %4695 = vmatpush1.msra.mxu0 0.0
        %4696 = vmatprep.subr.mxu0 0.0
        %4697 = vmatpush1.msra.mxu0 0.0
        %4698 = vmatprep.subr.mxu0 0.0
        %4699 = vmatpush1.msra.mxu0 0.0
        %4700 = vmatprep.subr.mxu0 0.0
        %4701 = vmatpush1.msra.mxu0 0.0
        %4702 = vmatprep.subr.mxu0 0.0
        %4703 = vmatpush1.msra.mxu0 0.0
        %4704 = vmatprep.subr.mxu0 0.0
        %4705 = vmatpush1.msra.mxu0 0.0
        %4706 = vmatprep.subr.mxu0 0.0
        %4707 = vmatpush1.msra.mxu0 0.0
        %4708 = vmatprep.subr.mxu0 0.0
        %4709 = vmatpush1.msra.mxu0 0.0
        %4710 = vmatprep.subr.mxu0 0.0
        %4711 = vmatpush1.msra.mxu0 0.0
        %4712 = vmatprep.subr.mxu0 0.0
        %4713 = vmatpush1.msra.mxu0 0.0
        %4714 = vmatprep.subr.mxu0 0.0
        %4715 = vmatpush1.msra.mxu0 0.0
        %4716 = vmatprep.subr.mxu0 0.0
        %4717 = vmatpush1.msra.mxu0 0.0
        %4718 = vmatprep.subr.mxu0 0.0
        %4719 = vmatpush1.msra.mxu0 0.0
        %4720 = vmatprep.subr.mxu0 0.0
        %4721 = vmatpush1.msra.mxu0 %v4693
        %4722 = vmatprep.subr.mxu0 0.0
        %4723 = vmatpush1.msra.mxu0 %v4692
        %4724 = vmatprep.subr.mxu0 0.0
        %4725 = vmatpush1.msra.mxu0 %v4691
        %4726 = vmatprep.subr.mxu0 0.0
        %4727 = vmatpush2.msra.mxu0 0.0
        %4728 = vmatprep.subr.mxu0 0.0
        %4729 = vmatpush2.msra.mxu0 0.0
        %4730 = vmatprep.subr.mxu0 0.0
        %4731 = vmatpush2.msra.mxu0 0.0
        %4732 = vmatprep.subr.mxu0 0.0
        %4733 = vmatpush2.msra.mxu0 0.0
        %4734 = vmatprep.subr.mxu0 0.0
        %4735 = vmatpush2.msra.mxu0 0.0
        %4736 = vmatprep.subr.mxu0 0.0
        %4737 = vmatpush2.msra.mxu0 0.0
        %4738 = vmatprep.subr.mxu0 0.0
        %4739 = vmatpush2.msra.mxu0 0.0
        %4740 = vmatprep.subr.mxu0 0.0
        %4741 = vmatpush2.msra.mxu0 0.0
        %4742 = vmatprep.subr.mxu0 0.0
        %4743 = vmatpush2.msra.mxu0 0.0
        %4744 = vmatprep.subr.mxu0 0.0
        %4745 = vmatpush2.msra.mxu0 0.0
        %4746 = vmatprep.subr.mxu0 0.0
        %4747 = vmatpush2.msra.mxu0 0.0
        %4748 = vmatprep.subr.mxu0 0.0
        %4749 = vmatpush2.msra.mxu0 0.0
        %4750 = vmatprep.subr.mxu0 0.0
        %4751 = vmatpush2.msra.mxu0 0.0
        %4752 = vmatprep.subr.mxu0 0.0
        %4753 = vmatpush2.msra.mxu0 0.0
        %4754 = vmatprep.subr.mxu0 0.0
        %4755 = vmatpush2.msra.mxu0 0.0
        %4756 = vmatprep.subr.mxu0 0.0
        %4757 = vmatpush2.msra.mxu0 0.0
        %4758 = vmatprep.mubr.f32.mxu0 0.0
        %4759 = vmatmul.mubr.f32.gmra.mxu0 %v4310
        %v4760 = vpop.f32.mrf.mxu0
        %v4761 = vadd.f32 0.0, %v4760
        %v4762 = vpop.f32.mrf.mxu0
        %4763 = vdwg.mxu0
        %v4764 = vpack.c.bf16 %v4761, %v4761
        %v4766 = vunpack.c.l.b16 %v4764
        %v4767 = vpack.c.b16 %v4766, %v4766
        %v4769 = vshrl.u32 %v4767, 16
        %v4771 = vrot.slane %v4769, 7
        %v4772 = vshll.u32 %v4767, 16
        %v4774 = vor.u32 %v4771, %v4772
        %v4775 = vrot.slane %v4771, 4
        %s4778 = scalar_lea.vmem %s266, 40 [#allocation2]
        %v4779 = vld [vmem:[%s4778] sm:$0xf]
        %v4780 = vsel %vm4399, %v4774, %v4779
        %4781 = vst [vmem:[%s4778] sm:$0xf] %v4780
        %v4782 = vld [vmem:[%s4778 + $0x4] sm:$0x1]
        %v4783 = vsel %vm4405, %v4775, %v4782
        %4784 = vst [vmem:[%s4778 + $0x4] sm:$0x1] %v4783
        %v4785 = vadd.f32 %v4263, %v4266
        %v4786 = vadd.f32 %v4264, %v4267
        %v4787 = vadd.f32 %v4265, %v4268
        %4788 = vmatprep.subr.mxu0 0.0
        %4789 = vmatpush1.msra.mxu0 0.0
        %4790 = vmatprep.subr.mxu0 0.0
        %4791 = vmatpush1.msra.mxu0 0.0
        %4792 = vmatprep.subr.mxu0 0.0
        %4793 = vmatpush1.msra.mxu0 0.0
        %4794 = vmatprep.subr.mxu0 0.0
        %4795 = vmatpush1.msra.mxu0 0.0
        %4796 = vmatprep.subr.mxu0 0.0
        %4797 = vmatpush1.msra.mxu0 0.0
        %4798 = vmatprep.subr.mxu0 0.0
        %4799 = vmatpush1.msra.mxu0 0.0
        %4800 = vmatprep.subr.mxu0 0.0
        %4801 = vmatpush1.msra.mxu0 0.0
        %4802 = vmatprep.subr.mxu0 0.0
        %4803 = vmatpush1.msra.mxu0 0.0
        %4804 = vmatprep.subr.mxu0 0.0
        %4805 = vmatpush1.msra.mxu0 0.0
        %4806 = vmatprep.subr.mxu0 0.0
        %4807 = vmatpush1.msra.mxu0 0.0
        %4808 = vmatprep.subr.mxu0 0.0
        %4809 = vmatpush1.msra.mxu0 0.0
        %4810 = vmatprep.subr.mxu0 0.0
        %4811 = vmatpush1.msra.mxu0 0.0
        %4812 = vmatprep.subr.mxu0 0.0
        %4813 = vmatpush1.msra.mxu0 0.0
        %4814 = vmatprep.subr.mxu0 0.0
        %4815 = vmatpush1.msra.mxu0 %v4787
        %4816 = vmatprep.subr.mxu0 0.0
        %4817 = vmatpush1.msra.mxu0 %v4786
        %4818 = vmatprep.subr.mxu0 0.0
        %4819 = vmatpush1.msra.mxu0 %v4785
        %4820 = vmatprep.subr.mxu0 0.0
        %4821 = vmatpush2.msra.mxu0 0.0
        %4822 = vmatprep.subr.mxu0 0.0
        %4823 = vmatpush2.msra.mxu0 0.0
        %4824 = vmatprep.subr.mxu0 0.0
        %4825 = vmatpush2.msra.mxu0 0.0
        %4826 = vmatprep.subr.mxu0 0.0
        %4827 = vmatpush2.msra.mxu0 0.0
        %4828 = vmatprep.subr.mxu0 0.0
        %4829 = vmatpush2.msra.mxu0 0.0
        %4830 = vmatprep.subr.mxu0 0.0
        %4831 = vmatpush2.msra.mxu0 0.0
        %4832 = vmatprep.subr.mxu0 0.0
        %4833 = vmatpush2.msra.mxu0 0.0
        %4834 = vmatprep.subr.mxu0 0.0
        %4835 = vmatpush2.msra.mxu0 0.0
        %4836 = vmatprep.subr.mxu0 0.0
        %4837 = vmatpush2.msra.mxu0 0.0
        %4838 = vmatprep.subr.mxu0 0.0
        %4839 = vmatpush2.msra.mxu0 0.0
        %4840 = vmatprep.subr.mxu0 0.0
        %4841 = vmatpush2.msra.mxu0 0.0
        %4842 = vmatprep.subr.mxu0 0.0
        %4843 = vmatpush2.msra.mxu0 0.0
        %4844 = vmatprep.subr.mxu0 0.0
        %4845 = vmatpush2.msra.mxu0 0.0
        %4846 = vmatprep.subr.mxu0 0.0
        %4847 = vmatpush2.msra.mxu0 0.0
        %4848 = vmatprep.subr.mxu0 0.0
        %4849 = vmatpush2.msra.mxu0 0.0
        %4850 = vmatprep.subr.mxu0 0.0
        %4851 = vmatpush2.msra.mxu0 0.0
        %4852 = vmatprep.mubr.f32.mxu0 0.0
        %4853 = vmatmul.mubr.f32.gmra.mxu0 %v4310
        %v4854 = vpop.f32.mrf.mxu0
        %v4855 = vadd.f32 0.0, %v4854
        %v4856 = vpop.f32.mrf.mxu0
        %4857 = vdwg.mxu0
        %v4858 = vpack.c.bf16 %v4855, %v4855
        %v4860 = vunpack.c.l.b16 %v4858
        %v4861 = vpack.c.b16 %v4860, %v4860
        %v4863 = vshrl.u32 %v4861, 16
        %v4865 = vrot.slane %v4863, 7
        %v4866 = vshll.u32 %v4861, 16
        %v4868 = vor.u32 %v4865, %v4866
        %v4869 = vrot.slane %v4865, 4
        %s4872 = scalar_lea.vmem %s266, 48 [#allocation2]
        %v4873 = vld [vmem:[%s4872] sm:$0xf]
        %v4874 = vsel %vm4399, %v4868, %v4873
        %4875 = vst [vmem:[%s4872] sm:$0xf] %v4874
        %v4876 = vld [vmem:[%s4872 + $0x4] sm:$0x1]
        %v4877 = vsel %vm4405, %v4869, %v4876
        %4878 = vst [vmem:[%s4872 + $0x4] sm:$0x1] %v4877
        %v4879 = vadd.f32 %v4269, %v4272
        %v4880 = vadd.f32 %v4270, %v4273
        %v4881 = vadd.f32 %v4271, %v4274
        %4882 = vmatprep.subr.mxu0 0.0
        %4883 = vmatpush1.msra.mxu0 0.0
        %4884 = vmatprep.subr.mxu0 0.0
        %4885 = vmatpush1.msra.mxu0 0.0
        %4886 = vmatprep.subr.mxu0 0.0
        %4887 = vmatpush1.msra.mxu0 0.0
        %4888 = vmatprep.subr.mxu0 0.0
        %4889 = vmatpush1.msra.mxu0 0.0
        %4890 = vmatprep.subr.mxu0 0.0
        %4891 = vmatpush1.msra.mxu0 0.0
        %4892 = vmatprep.subr.mxu0 0.0
        %4893 = vmatpush1.msra.mxu0 0.0
        %4894 = vmatprep.subr.mxu0 0.0
        %4895 = vmatpush1.msra.mxu0 0.0
        %4896 = vmatprep.subr.mxu0 0.0
        %4897 = vmatpush1.msra.mxu0 0.0
        %4898 = vmatprep.subr.mxu0 0.0
        %4899 = vmatpush1.msra.mxu0 0.0
        %4900 = vmatprep.subr.mxu0 0.0
        %4901 = vmatpush1.msra.mxu0 0.0
        %4902 = vmatprep.subr.mxu0 0.0
        %4903 = vmatpush1.msra.mxu0 0.0
        %4904 = vmatprep.subr.mxu0 0.0
        %4905 = vmatpush1.msra.mxu0 0.0
        %4906 = vmatprep.subr.mxu0 0.0
        %4907 = vmatpush1.msra.mxu0 0.0
        %4908 = vmatprep.subr.mxu0 0.0
        %4909 = vmatpush1.msra.mxu0 %v4881
        %4910 = vmatprep.subr.mxu0 0.0
        %4911 = vmatpush1.msra.mxu0 %v4880
        %4912 = vmatprep.subr.mxu0 0.0
        %4913 = vmatpush1.msra.mxu0 %v4879
        %4914 = vmatprep.subr.mxu0 0.0
        %4915 = vmatpush2.msra.mxu0 0.0
        %4916 = vmatprep.subr.mxu0 0.0
        %4917 = vmatpush2.msra.mxu0 0.0
        %4918 = vmatprep.subr.mxu0 0.0
        %4919 = vmatpush2.msra.mxu0 0.0
        %4920 = vmatprep.subr.mxu0 0.0
        %4921 = vmatpush2.msra.mxu0 0.0
        %4922 = vmatprep.subr.mxu0 0.0
        %4923 = vmatpush2.msra.mxu0 0.0
        %4924 = vmatprep.subr.mxu0 0.0
        %4925 = vmatpush2.msra.mxu0 0.0
        %4926 = vmatprep.subr.mxu0 0.0
        %4927 = vmatpush2.msra.mxu0 0.0
        %4928 = vmatprep.subr.mxu0 0.0
        %4929 = vmatpush2.msra.mxu0 0.0
        %4930 = vmatprep.subr.mxu0 0.0
        %4931 = vmatpush2.msra.mxu0 0.0
        %4932 = vmatprep.subr.mxu0 0.0
        %4933 = vmatpush2.msra.mxu0 0.0
        %4934 = vmatprep.subr.mxu0 0.0
        %4935 = vmatpush2.msra.mxu0 0.0
        %4936 = vmatprep.subr.mxu0 0.0
        %4937 = vmatpush2.msra.mxu0 0.0
        %4938 = vmatprep.subr.mxu0 0.0
        %4939 = vmatpush2.msra.mxu0 0.0
        %4940 = vmatprep.subr.mxu0 0.0
        %4941 = vmatpush2.msra.mxu0 0.0
        %4942 = vmatprep.subr.mxu0 0.0
        %4943 = vmatpush2.msra.mxu0 0.0
        %4944 = vmatprep.subr.mxu0 0.0
        %4945 = vmatpush2.msra.mxu0 0.0
        %4946 = vmatprep.mubr.f32.mxu0 0.0
        %4947 = vmatmul.mubr.f32.gmra.mxu0 %v4310
        %v4948 = vpop.f32.mrf.mxu0
        %v4949 = vadd.f32 0.0, %v4948
        %v4950 = vpop.f32.mrf.mxu0
        %4951 = vdwg.mxu0
        %v4952 = vpack.c.bf16 %v4949, %v4949
        %v4954 = vunpack.c.l.b16 %v4952
        %v4955 = vpack.c.b16 %v4954, %v4954
        %v4957 = vshrl.u32 %v4955, 16
        %v4959 = vrot.slane %v4957, 7
        %v4960 = vshll.u32 %v4955, 16
        %v4962 = vor.u32 %v4959, %v4960
        %v4963 = vrot.slane %v4959, 4
        %s4966 = scalar_lea.vmem %s266, 56 [#allocation2]
        %v4967 = vld [vmem:[%s4966] sm:$0xf]
        %v4968 = vsel %vm4399, %v4962, %v4967
        %4969 = vst [vmem:[%s4966] sm:$0xf] %v4968
        %v4970 = vld [vmem:[%s4966 + $0x4] sm:$0x1]
        %v4971 = vsel %vm4405, %v4963, %v4970
        %4972 = vst [vmem:[%s4966 + $0x4] sm:$0x1] %v4971
        %v4973 = vadd.f32 %v4275, %v4278
        %v4974 = vadd.f32 %v4276, %v4279
        %v4975 = vadd.f32 %v4277, %v4280
        %4976 = vmatprep.subr.mxu0 0.0
        %4977 = vmatpush1.msra.mxu0 0.0
        %4978 = vmatprep.subr.mxu0 0.0
        %4979 = vmatpush1.msra.mxu0 0.0
        %4980 = vmatprep.subr.mxu0 0.0
        %4981 = vmatpush1.msra.mxu0 0.0
        %4982 = vmatprep.subr.mxu0 0.0
        %4983 = vmatpush1.msra.mxu0 0.0
        %4984 = vmatprep.subr.mxu0 0.0
        %4985 = vmatpush1.msra.mxu0 0.0
        %4986 = vmatprep.subr.mxu0 0.0
        %4987 = vmatpush1.msra.mxu0 0.0
        %4988 = vmatprep.subr.mxu0 0.0
        %4989 = vmatpush1.msra.mxu0 0.0
        %4990 = vmatprep.subr.mxu0 0.0
        %4991 = vmatpush1.msra.mxu0 0.0
        %4992 = vmatprep.subr.mxu0 0.0
        %4993 = vmatpush1.msra.mxu0 0.0
        %4994 = vmatprep.subr.mxu0 0.0
        %4995 = vmatpush1.msra.mxu0 0.0
        %4996 = vmatprep.subr.mxu0 0.0
        %4997 = vmatpush1.msra.mxu0 0.0
        %4998 = vmatprep.subr.mxu0 0.0
        %4999 = vmatpush1.msra.mxu0 0.0
        %5000 = vmatprep.subr.mxu0 0.0
        %5001 = vmatpush1.msra.mxu0 0.0
        %5002 = vmatprep.subr.mxu0 0.0
        %5003 = vmatpush1.msra.mxu0 %v4975
        %5004 = vmatprep.subr.mxu0 0.0
        %5005 = vmatpush1.msra.mxu0 %v4974
        %5006 = vmatprep.subr.mxu0 0.0
        %5007 = vmatpush1.msra.mxu0 %v4973
        %5008 = vmatprep.subr.mxu0 0.0
        %5009 = vmatpush2.msra.mxu0 0.0
        %5010 = vmatprep.subr.mxu0 0.0
        %5011 = vmatpush2.msra.mxu0 0.0
        %5012 = vmatprep.subr.mxu0 0.0
        %5013 = vmatpush2.msra.mxu0 0.0
        %5014 = vmatprep.subr.mxu0 0.0
        %5015 = vmatpush2.msra.mxu0 0.0
        %5016 = vmatprep.subr.mxu0 0.0
        %5017 = vmatpush2.msra.mxu0 0.0
        %5018 = vmatprep.subr.mxu0 0.0
        %5019 = vmatpush2.msra.mxu0 0.0
        %5020 = vmatprep.subr.mxu0 0.0
        %5021 = vmatpush2.msra.mxu0 0.0
        %5022 = vmatprep.subr.mxu0 0.0
        %5023 = vmatpush2.msra.mxu0 0.0
        %5024 = vmatprep.subr.mxu0 0.0
        %5025 = vmatpush2.msra.mxu0 0.0
        %5026 = vmatprep.subr.mxu0 0.0
        %5027 = vmatpush2.msra.mxu0 0.0
        %5028 = vmatprep.subr.mxu0 0.0
        %5029 = vmatpush2.msra.mxu0 0.0
        %5030 = vmatprep.subr.mxu0 0.0
        %5031 = vmatpush2.msra.mxu0 0.0
        %5032 = vmatprep.subr.mxu0 0.0
        %5033 = vmatpush2.msra.mxu0 0.0
        %5034 = vmatprep.subr.mxu0 0.0
        %5035 = vmatpush2.msra.mxu0 0.0
        %5036 = vmatprep.subr.mxu0 0.0
        %5037 = vmatpush2.msra.mxu0 0.0
        %5038 = vmatprep.subr.mxu0 0.0
        %5039 = vmatpush2.msra.mxu0 0.0
        %5040 = vmatprep.mubr.f32.mxu0 0.0
        %5041 = vmatmul.mubr.f32.gmra.mxu0 %v4310
        %v5042 = vpop.f32.mrf.mxu0
        %v5043 = vadd.f32 0.0, %v5042
        %v5044 = vpop.f32.mrf.mxu0
        %5045 = vdwg.mxu0
        %v5046 = vpack.c.bf16 %v5043, %v5043
        %v5048 = vunpack.c.l.b16 %v5046
        %v5049 = vpack.c.b16 %v5048, %v5048
        %v5051 = vshrl.u32 %v5049, 16
        %v5053 = vrot.slane %v5051, 7
        %v5054 = vshll.u32 %v5049, 16
        %v5056 = vor.u32 %v5053, %v5054
        %v5057 = vrot.slane %v5053, 4
        %s5060 = scalar_lea.vmem %s266, 64 [#allocation2]
        %v5061 = vld [vmem:[%s5060] sm:$0xf]
        %v5062 = vsel %vm4399, %v5056, %v5061
        %5063 = vst [vmem:[%s5060] sm:$0xf] %v5062
        %v5064 = vld [vmem:[%s5060 + $0x4] sm:$0x1]
        %v5065 = vsel %vm4405, %v5057, %v5064
        %5066 = vst [vmem:[%s5060 + $0x4] sm:$0x1] %v5065
        %s5067 = sand.u32 %s166, 1
        %s5068 = scalar_lea.sflag [#allocation3], %s5067
        %s5069 = sand.u32 %s166, 1
        %s5070 = smul.addr %s5069, 88
        %s5071 = scalar_lea.vmem [#allocation2], %s5070
        // Predicated region
        $region41: #{tpu_custom_call.1} parent=39 // pred_check
          %p5072 = pneg %p176
        $region42: #{tpu_custom_call.1} parent=39 // pred_check_branch
          %5074 = sbr.rel (%p5072) target = $region44
        $region43: #{tpu_custom_call.1} parent=39 // pred_region
          %s5076 = ssub.s32 1408, 1408
          %5077 = vsyncadd %s5068, %s5076
          %s5078 = smul.addr %s23, 22
          %s5079 = sadd.s32 %s24, %s5078
          %s5080 = smul.addr %s5079, 64
          %s5081 = scalar_lea.hbm %s5, %s5080
          %s5082 = sshll.u32 %s5071, 4
          %s5083 = int_to_ptr.vmem [resolvable:$true] %s5082
          %5088 = dma.vmem_to_hbm [thread:$0]  %s5083, 1408, %s5081, %s5068, 64, 64, 4
        $region44: #{tpu_custom_call.1} parent=39 // pred_fallthru
          _
      $region40: #{tpu_custom_call.1} parent=5 // pred_fallthru
        _
      %p5089 = scmp.le.s32.totalorder 2, %s14
      // Predicated region
      $region45: #{tpu_custom_call.1} parent=5 // pred_check
        %p5090 = pneg %p5089
      $region46: #{tpu_custom_call.1} parent=5 // pred_check_branch
        %5092 = sbr.rel (%p5090) target = $region48
      $region47: #{tpu_custom_call.1} parent=5 // pred_region
        %s5093 = ssub.s32 %s14, 2
        // Predicated region
        $region49: #{tpu_custom_call.1} parent=47 // pred_check
          %p5094 = pneg %p182
        $region50: #{tpu_custom_call.1} parent=47 // pred_check_branch
          %5096 = sbr.rel (%p5094) target = $region52
        $region51: #{tpu_custom_call.1} parent=47 // pred_region
          %s5097 = sand.u32 %s167, 1
          %s5098 = scalar_lea.sflag [#allocation3], %s5097
          %s5099 = sand.u32 %s167, 1
          %s5100 = smul.addr %s5099, 88
          %s5101 = scalar_lea.vmem [#allocation2], %s5100
          %5102 = dma.done %s5098, 1408
        $region52: #{tpu_custom_call.1} parent=47 // pred_fallthru
          _
      $region48: #{tpu_custom_call.1} parent=5 // pred_fallthru
        _
    $region6: #{tpu_custom_call.1} parent=1 // loop_footer
      %s18 = sadd.s32 1, %s14
    $region7: #{tpu_custom_call.1} parent=1 // loop_footer_branch
      %13 = sbr.rel target = $region3
    $region8: #{tpu_custom_call.1} parent=1 // loop_exit
      _
    %5103 = vsyncpa [#allocation3], 1
    %s5104 = scalar_lea.sflag [#allocation3], 1
    %5105 = vsyncpa %s5104, 1

</llo_original>
